<compile_context>
chip_gen: v7x
topology: tpu7x:2x2x1
jax: 0.10.0
libtpu: 0.0.40
codegen_flags: <defaults>
</compile_context>

<pallas_src>
import functools
from dataclasses import dataclass

import jax
import jax.numpy as jnp
from jax import lax
from jax.experimental import pallas as pl
from jax.experimental.pallas import tpu as pltpu


# ------------------------------ helpers ----------------------------------- #
def _round_up(x, m):
    return ((x + m - 1) // m) * m


def _cdiv(a, b):
    return -(-a // b)


def _space_to_depth2(x):
    """(B, 2H, 2W, C) -> (B, H, W, 4C), channel groups ordered (row-par, col-par, c)."""
    B, H2, W2, C = x.shape
    x = x.reshape(B, H2 // 2, 2, W2 // 2, 2, C)
    x = jnp.transpose(x, (0, 1, 3, 2, 4, 5))
    return x.reshape(B, H2 // 2, W2 // 2, 4 * C)


def _fold_weight_stride1(w):
    """(O, C, K, K) -> (K*K, C, O), tap order t = kh*K + kw."""
    O, C, K, _ = w.shape
    return jnp.transpose(w, (2, 3, 1, 0)).reshape(K * K, C, O)


def _fold_weight_stride2(w):
    """(O, C, 3, 3) stride-2 conv -> effective 2x2 conv weights over
    space-to-depth input: (4, 4*C, O), tap order t = akh*2 + akw, channel
    groups ordered (row parity, col parity, c) to match _space_to_depth2."""
    O, C, _, _ = w.shape
    w4 = jnp.pad(w, ((0, 0), (0, 0), (0, 1), (0, 1)))        # (O, C, 4, 4)
    w4 = w4.reshape(O, C, 2, 2, 2, 2)                        # (O, C, akh, rkh, akw, rkw)
    w4 = jnp.transpose(w4, (2, 4, 3, 5, 1, 0))               # (akh, akw, rkh, rkw, C, O)
    return w4.reshape(4, 4 * C, O)


# ----------------------------- Pallas kernel ------------------------------ #
def _conv_slab_kernel(x_ref, w_ref, b_ref, o_ref, slab_ref, carry_ref, *,
                      kh_eff, kw_eff, wp, m_rows, use_relu):
    # x_ref   : (1, m_rows, Ceff)           current row-tile (flattened rows*cols)
    # w_ref   : (kh*kw, Ceff, Cout_pad)     per-tap weight matrices (BN folded)
    # b_ref   : (1, Cout_pad)               folded bias (f32)
    # o_ref   : (1, m_rows, Cout_pad)
    # slab_ref: ((th+kh-1)*wp + kw-1, Ceff) halo'd slab (persistent scratch)
    # carry_ref: ((kh-1)*wp, Ceff)          halo rows carried to next row tile
    i = pl.program_id(1)
    halo = (kh_eff - 1) * wp

    @pl.when(i == 0)
    def _init():
        # zero top halo (top rows of the first tile are discarded junk anyway)
        # and the small tail pad that only feeds junk columns.
        slab_ref[...] = jnp.zeros_like(slab_ref)
        carry_ref[...] = jnp.zeros_like(carry_ref)

    # assemble halo'd slab: [carry rows from previous tile | current block]
    slab_ref[pl.ds(0, halo), :] = carry_ref[...]
    slab_ref[pl.ds(halo, m_rows), :] = x_ref[0]
    # stash the last (kh_eff - 1) image rows of this block for the next tile
    carry_ref[...] = slab_ref[pl.ds(m_rows, halo), :]

    # direct conv: sum of shifted contiguous slices @ per-tap weight matrices
    acc = jnp.zeros((m_rows, o_ref.shape[-1]), jnp.float32)
    for t in range(kh_eff * kw_eff):
        kh, kw = t // kw_eff, t % kw_eff
        lhs = slab_ref[pl.ds(kh * wp + kw, m_rows), :]
        acc = acc + jnp.dot(lhs, w_ref[t], preferred_element_type=jnp.float32)

    y = acc + b_ref[...]
    if use_relu:
        y = jnp.maximum(y, 0.0)
    o_ref[0] = y.astype(o_ref.dtype)


# ------------------------- fused conv wrapper ------------------------------ #
def fused_conv_bn_act(x_nhwc, w_fused, bias, *, stride, use_relu,
                      tile_rows=None, compute_dtype=jnp.bfloat16):
    """Direct 3x3 conv (pad=1, stride 1 or 2) with folded BN bias + optional ReLU.

    x_nhwc: (B, H, W, Cin), w_fused: (Cout, Cin, 3, 3) f32, bias: (Cout,) f32.
    Returns (B, Ho, Wo, Cout) in compute_dtype.
    """
    B, H, W, Cin = x_nhwc.shape
    Cout = w_fused.shape[0]
    assert w_fused.shape == (Cout, Cin, 3, 3)
    assert stride in (1, 2)

    Ho = (H + 2 - 3) // stride + 1
    Wo = (W + 2 - 3) // stride + 1

    x = x_nhwc.astype(compute_dtype)
    if stride == 1:
        xs = jnp.pad(x, ((0, 0), (1, 1), (1, 1), (0, 0)))
        w_taps = _fold_weight_stride1(w_fused)
        kh_eff = kw_eff = 3
    else:
        # stride-2 conv == stride-1 2x2 conv over space-to-depth input
        xp = jnp.pad(x, ((0, 0), (1, 1 + H % 2), (1, 1 + W % 2), (0, 0)))
        xs = _space_to_depth2(xp)
        w_taps = _fold_weight_stride2(w_fused)
        kh_eff = kw_eff = 2

    _, Hin, Wp, Ceff = xs.shape
    assert Wp == Wo + kw_eff - 1 and Hin == Ho + kh_eff - 1

    # ---- row tiling (th output rows per grid step) ------------------------
    if tile_rows is None:
        target_m = 1024                                # matmul rows per step
        tile_rows = max(8, min(_round_up(Hin, 8),
                               _round_up(_cdiv(target_m, Wp), 8)))
    th = _round_up(max(int(tile_rows), 8), 8)          # keeps th*Wp % 8 == 0
    n_t = _cdiv(Hin, th)
    R = n_t * th
    m_rows = th * Wp

    xs = jnp.pad(xs, ((0, 0), (0, R - Hin), (0, 0), (0, 0)))
    x_flat = xs.reshape(B, R * Wp, Ceff)

    # ---- weights / bias; lane-dense output channels -----------------------
    Cout_pad = _round_up(Cout, 128)
    w_taps = jnp.pad(w_taps.astype(compute_dtype),
                     ((0, 0), (0, 0), (0, Cout_pad - Cout)))
    bias_p = jnp.pad(bias.astype(jnp.float32),
                     (0, Cout_pad - Cout)).reshape(1, Cout_pad)

    halo = (kh_eff - 1) * Wp
    slab_len = (th + kh_eff - 1) * Wp + (kw_eff - 1)

    kernel = functools.partial(_conv_slab_kernel, kh_eff=kh_eff, kw_eff=kw_eff,
                               wp=Wp, m_rows=m_rows, use_relu=use_relu)

    out_flat = pl.pallas_call(
        kernel,
        out_shape=jax.ShapeDtypeStruct((B, R * Wp, Cout_pad), compute_dtype),
        grid_spec=pltpu.PrefetchScalarGridSpec(
            num_scalar_prefetch=0,
            grid=(B, n_t),
            in_specs=[
                pl.BlockSpec((1, m_rows, Ceff), lambda b, i: (b, i, 0)),
                pl.BlockSpec((kh_eff * kw_eff, Ceff, Cout_pad),
                             lambda b, i: (0, 0, 0)),
                pl.BlockSpec((1, Cout_pad), lambda b, i: (0, 0)),
            ],
            out_specs=pl.BlockSpec((1, m_rows, Cout_pad), lambda b, i: (b, i, 0)),
            scratch_shapes=[
                pltpu.VMEM((slab_len, Ceff), compute_dtype),
                pltpu.VMEM((halo, Ceff), compute_dtype),
            ],
        ),
        # batch axis megacore-parallel; row axis sequential (carries the halo).
        # For large real shapes, raise vmem_limit_bytes when tile_rows is big.
        compiler_params=pltpu.CompilerParams(
            dimension_semantics=("parallel", "arbitrary")),
    )(x_flat, w_taps, bias_p)

    out = out_flat.reshape(B, R, Wp, Cout_pad)
    # drop the top junk rows, right junk columns and padded channels
    return out[:, kh_eff - 1: kh_eff - 1 + Ho, :Wo, :Cout]


# ------------------------ RepVGG block / backbone -------------------------- #
def _fuse_repvgg_block(p, bn_eps, id_bn_eps=1e-5):
    """Fold conv3x3+BN, conv1x1+BN and identity-BN (eval mode) into one
    3x3 conv weight + bias (classic RepVGG re-parameterisation)."""
    w3, (g1, b1, m1, v1) = p["conv1_w"], p["bn1"]
    w1, (g2, b2, m2, v2) = p["conv2_w"], p["bn2"]
    a1 = g1 / jnp.sqrt(v1 + bn_eps)
    a2 = g2 / jnp.sqrt(v2 + bn_eps)
    w = w3 * a1[:, None, None, None]
    bias = b1 - a1 * m1
    w = w.at[:, :, 1, 1].add(w1[:, :, 0, 0] * a2[:, None])
    bias = bias + (b2 - a2 * m2)
    if p["bn_id"] is not None:
        gi, bi, mi, vi = p["bn_id"]
        ai = gi / jnp.sqrt(vi + id_bn_eps)
        w = w.at[:, :, 1, 1].add(jnp.diag(ai))
        bias = bias + (bi - ai * mi)
    return w, bias


def repvgg_block_forward(x_nhwc, p, *, stride, bn_eps, activation, tile_rows=None):
    if activation not in (None, "relu"):
        # TODO(synk): only relu / identity activations are implemented here.
        raise NotImplementedError(f"activation {activation!r} not supported")
    w, bias = _fuse_repvgg_block(p, bn_eps)
    return fused_conv_bn_act(x_nhwc, w, bias, stride=stride,
                             use_relu=(activation == "relu"),
                             tile_rows=tile_rows)


def efficient_loftr_repvgg_forward(x_nchw, params, config, *, tile_rows=None):
    """Full EfficientLoFTRepVGG forward (eval mode). Returns stage outputs[1:]
    as NCHW float32, matching the PyTorch module."""
    x = jnp.transpose(x_nchw, (0, 2, 3, 1))  # NCHW -> NHWC
    outputs = []
    for s_idx, stage_params in enumerate(params):
        for b_idx, p in enumerate(stage_params):
            stride = config.stage_block_stride[s_idx][b_idx]
            x = repvgg_block_forward(
                x, p, stride=stride, bn_eps=config.batch_norm_eps,
                activation=config.activation_function, tile_rows=tile_rows)
        outputs.append(jnp.transpose(x, (0, 3, 1, 2)).astype(jnp.float32))
    return outputs[1:]


# --------------------------- reference (plain JAX) ------------------------- #
def _bn_eval_nchw(x, bn, eps):
    g, b, m, v = bn
    a = g / jnp.sqrt(v + eps)
    return x * a[None, :, None, None] + (b - a * m)[None, :, None, None]


def _conv_nchw(x, w, stride, pad):
    return lax.conv_general_dilated(
        x, w, (stride, stride), [(pad, pad), (pad, pad)],
        dimension_numbers=("NCHW", "OIHW", "NCHW"))


def _reference_block(x, p, stride, eps, activation):
    y = _bn_eval_nchw(_conv_nchw(x, p["conv1_w"], stride, 1), p["bn1"], eps)
    y = y + _bn_eval_nchw(_conv_nchw(x, p["conv2_w"], stride, 0), p["bn2"], eps)
    if p["bn_id"] is not None:
        y = y + _bn_eval_nchw(x, p["bn_id"], 1e-5)
    if activation == "relu":
        y = jnp.maximum(y, 0.0)
    return y


def _reference_forward(x_nchw, params, config):
    x = x_nchw.astype(jnp.float32)
    outs = []
    for s_idx, stage_params in enumerate(params):
        for b_idx, p in enumerate(stage_params):
            x = _reference_block(x, p, config.stage_block_stride[s_idx][b_idx],
                                 config.batch_norm_eps,
                                 config.activation_function)
        outs.append(x)
    return outs[1:]


# --------------------------------- demo ------------------------------------ #
@dataclass
class DemoConfig:
    batch_norm_eps: float = 1e-5
    activation_function: str = "relu"
    stage_num_blocks: tuple = (1, 1, 2)
    stage_stride: tuple = (2, 1, 2)
    stage_block_in_channels: tuple = ((4,), (8,), (8, 16))
    stage_block_out_channels: tuple = ((8,), (8,), (16, 16))
    stage_block_stride: tuple = ((2,), (1,), (2, 1))


def _make_bn(key, c):
    kg, kb, km, kv = jax.random.split(key, 4)
    gamma = 1.0 + 0.1 * jax.random.normal(kg, (c,), jnp.float32)
    beta = 0.1 * jax.random.normal(kb, (c,), jnp.float32)
    mean = 0.1 * jax.random.normal(km, (c,), jnp.float32)
    var = 0.5 + jax.random.uniform(kv, (c,), jnp.float32)
    return (gamma, beta, mean, var)


def _make_block_params(key, cin, cout, has_identity):
    k1, k2, k3, k4, k5 = jax.random.split(key, 5)
    return {
        "conv1_w": 0.1 * jax.random.normal(k1, (cout, cin, 3, 3), jnp.float32),
        "bn1": _make_bn(k2, cout),
        "conv2_w": 0.1 * jax.random.normal(k3, (cout, cin, 1, 1), jnp.float32),
        "bn2": _make_bn(k4, cout),
        "bn_id": _make_bn(k5, cin) if has_identity else None,
    }


if __name__ == "__main__":
    config = DemoConfig()
    key = jax.random.PRNGKey(0)
    key, kx = jax.random.split(key)

    B, Cin0, H, W = 2, 4, 16, 16
    x = jax.random.normal(kx, (B, Cin0, H, W), jnp.float32)

    params = []
    for s_idx in range(len(config.stage_stride)):
        stage_params = []
        for b_idx in range(config.stage_num_blocks[s_idx]):
            key, kb = jax.random.split(key)
            cin = config.stage_block_in_channels[s_idx][b_idx]
            cout = config.stage_block_out_channels[s_idx][b_idx]
            stride = config.stage_block_stride[s_idx][b_idx]
            stage_params.append(
                _make_block_params(kb, cin, cout,
                                   has_identity=(cin == cout and stride == 1)))
        params.append(stage_params)

    # tile_rows=8 keeps several row tiles per image at these small shapes so
    # the halo-carry path is exercised; leave tile_rows=None for real sizes.
    @jax.jit
    def fwd(x_in, ps):
        return efficient_loftr_repvgg_forward(x_in, ps, config, tile_rows=8)

    outs = jax.block_until_ready(fwd(x, params))
    refs = _reference_forward(x, params, config)

    assert len(outs) == len(refs)
    for o, r in zip(outs, refs):
        assert o.shape == r.shape, (o.shape, r.shape)
        max_err = float(jnp.max(jnp.abs(o - r)))
        assert jnp.allclose(o, r, atol=8e-2, rtol=8e-2), max_err
    print("KERNEL_OK")
</pallas_src>

<mosaic_0001>
module attributes {stable_mosaic.version = 11 : i64} {
  func.func @_conv_slab_kernel(%arg0: i32, %arg1: i32, %arg2: memref<1x72x16xbf16, #tpu.memory_space<vmem>>, %arg3: memref<4x16x128xbf16, #tpu.memory_space<vmem>>, %arg4: memref<1x128xf32, #tpu.memory_space<vmem>>, %arg5: memref<1x72x128xbf16, #tpu.memory_space<vmem>>, %arg6: memref<82x16xbf16, #tpu.memory_space<vmem>>, %arg7: memref<9x16xbf16, #tpu.memory_space<vmem>>) attributes {dimension_semantics = [#tpu.dimension_semantics<parallel>, #tpu.dimension_semantics<arbitrary>], iteration_bounds = array<i64: 2, 2>, scalar_prefetch = 0 : i64, scratch_operands = 2 : i64, tpu.core_type = #tpu.core_type<tc>, window_params = [{transform_indices = @transform_0, window_bounds = array<i64: 1, 72, 16>}, {pipeline_mode = #tpu.pipeline_mode<synchronous>, transform_indices = @transform_1, window_bounds = array<i64: 4, 16, 128>}, {pipeline_mode = #tpu.pipeline_mode<synchronous>, transform_indices = @transform_2, window_bounds = array<i64: 1, 128>}, {transform_indices = @transform_3, window_bounds = array<i64: 1, 72, 128>}]} {
    %c0_i32 = arith.constant 0 : i32
    %0 = arith.cmpi eq, %arg1, %c0_i32 : i32
    %1 = arith.extui %0 : i1 to i32
    %c0_i32_0 = arith.constant 0 : i32
    %2 = arith.cmpi ne, %1, %c0_i32_0 : i32
    scf.if %2 {
      %cst_37 = arith.constant 0.000000e+00 : bf16
      %40 = vector.broadcast %cst_37 : bf16 to vector<82x16xbf16>
      %c0_38 = arith.constant 0 : index
      %c0_39 = arith.constant 0 : index
      %41 = vector.load %arg6[%c0_38, %c0_39] : memref<82x16xbf16, #tpu.memory_space<vmem>>, vector<82x16xbf16>
      tpu.vector_store %arg6[%c0_38, %c0_39], %40 {strides = array<i32>} : memref<82x16xbf16, #tpu.memory_space<vmem>>, vector<82x16xbf16>,
      %cst_40 = arith.constant 0.000000e+00 : bf16
      %42 = vector.broadcast %cst_40 : bf16 to vector<9x16xbf16>
      %c0_41 = arith.constant 0 : index
      %c0_42 = arith.constant 0 : index
      %43 = vector.load %arg7[%c0_41, %c0_42] : memref<9x16xbf16, #tpu.memory_space<vmem>>, vector<9x16xbf16>
      tpu.vector_store %arg7[%c0_41, %c0_42], %42 {strides = array<i32>} : memref<9x16xbf16, #tpu.memory_space<vmem>>, vector<9x16xbf16>,
    } else {
    }
    %c0 = arith.constant 0 : index
    %c0_1 = arith.constant 0 : index
    %3 = vector.load %arg7[%c0, %c0_1] : memref<9x16xbf16, #tpu.memory_space<vmem>>, vector<9x16xbf16>
    %c0_2 = arith.constant 0 : index
    %c0_3 = arith.constant 0 : index
    %4 = vector.load %arg6[%c0_2, %c0_3] : memref<82x16xbf16, #tpu.memory_space<vmem>>, vector<9x16xbf16>
    tpu.vector_store %arg6[%c0_2, %c0_3], %3 {strides = array<i32>} : memref<82x16xbf16, #tpu.memory_space<vmem>>, vector<9x16xbf16>,
    %c0_4 = arith.constant 0 : index
    %c0_5 = arith.constant 0 : index
    %c0_6 = arith.constant 0 : index
    %5 = vector.load %arg2[%c0_4, %c0_5, %c0_6] : memref<1x72x16xbf16, #tpu.memory_space<vmem>>, vector<1x72x16xbf16>
    %6 = vector.shape_cast %5 : vector<1x72x16xbf16> to vector<72x16xbf16>
    %c9 = arith.constant 9 : index
    %c0_7 = arith.constant 0 : index
    %7 = vector.load %arg6[%c9, %c0_7] : memref<82x16xbf16, #tpu.memory_space<vmem>>, vector<72x16xbf16>
    tpu.vector_store %arg6[%c9, %c0_7], %6 {strides = array<i32>} : memref<82x16xbf16, #tpu.memory_space<vmem>>, vector<72x16xbf16>,
    %c72 = arith.constant 72 : index
    %c0_8 = arith.constant 0 : index
    %8 = vector.load %arg6[%c72, %c0_8] : memref<82x16xbf16, #tpu.memory_space<vmem>>, vector<9x16xbf16>
    %c0_9 = arith.constant 0 : index
    %c0_10 = arith.constant 0 : index
    %9 = vector.load %arg7[%c0_9, %c0_10] : memref<9x16xbf16, #tpu.memory_space<vmem>>, vector<9x16xbf16>
    tpu.vector_store %arg7[%c0_9, %c0_10], %8 {strides = array<i32>} : memref<9x16xbf16, #tpu.memory_space<vmem>>, vector<9x16xbf16>,
    %cst = arith.constant 0.000000e+00 : f32
    %10 = vector.broadcast %cst : f32 to vector<72x128xf32>
    %c0_11 = arith.constant 0 : index
    %c0_12 = arith.constant 0 : index
    %11 = vector.load %arg6[%c0_11, %c0_12] : memref<82x16xbf16, #tpu.memory_space<vmem>>, vector<72x16xbf16>
    %c0_13 = arith.constant 0 : index
    %c0_14 = arith.constant 0 : index
    %c0_15 = arith.constant 0 : index
    %12 = vector.load %arg3[%c0_13, %c0_14, %c0_15] : memref<4x16x128xbf16, #tpu.memory_space<vmem>>, vector<1x16x128xbf16>
    %13 = vector.shape_cast %12 : vector<1x16x128xbf16> to vector<16x128xbf16>
    %cst_16 = arith.constant dense<0.000000e+00> : vector<72x128xf32>
    %14 = tpu.matmul %11, %13, %cst_16 {dimension_numbers = #tpu.dot_dimension_numbers<[1], [0], [0], [1], [0, 0, 1, 1], [], []>} : vector<72x16xbf16>, vector<16x128xbf16>, vector<72x128xf32> -> vector<72x128xf32>
    %15 = arith.addf %10, %14 : vector<72x128xf32>
    %c1 = arith.constant 1 : index
    %c0_17 = arith.constant 0 : index
    %16 = vector.load %arg6[%c1, %c0_17] : memref<82x16xbf16, #tpu.memory_space<vmem>>, vector<72x16xbf16>
    %c1_18 = arith.constant 1 : index
    %c0_19 = arith.constant 0 : index
    %c0_20 = arith.constant 0 : index
    %17 = vector.load %arg3[%c1_18, %c0_19, %c0_20] : memref<4x16x128xbf16, #tpu.memory_space<vmem>>, vector<1x16x128xbf16>
    %18 = vector.shape_cast %17 : vector<1x16x128xbf16> to vector<16x128xbf16>
    %cst_21 = arith.constant dense<0.000000e+00> : vector<72x128xf32>
    %19 = tpu.matmul %16, %18, %cst_21 {dimension_numbers = #tpu.dot_dimension_numbers<[1], [0], [0], [1], [0, 0, 1, 1], [], []>} : vector<72x16xbf16>, vector<16x128xbf16>, vector<72x128xf32> -> vector<72x128xf32>
    %20 = arith.addf %15, %19 : vector<72x128xf32>
    %c9_22 = arith.constant 9 : index
    %c0_23 = arith.constant 0 : index
    %21 = vector.load %arg6[%c9_22, %c0_23] : memref<82x16xbf16, #tpu.memory_space<vmem>>, vector<72x16xbf16>
    %c2 = arith.constant 2 : index
    %c0_24 = arith.constant 0 : index
    %c0_25 = arith.constant 0 : index
    %22 = vector.load %arg3[%c2, %c0_24, %c0_25] : memref<4x16x128xbf16, #tpu.memory_space<vmem>>, vector<1x16x128xbf16>
    %23 = vector.shape_cast %22 : vector<1x16x128xbf16> to vector<16x128xbf16>
    %cst_26 = arith.constant dense<0.000000e+00> : vector<72x128xf32>
    %24 = tpu.matmul %21, %23, %cst_26 {dimension_numbers = #tpu.dot_dimension_numbers<[1], [0], [0], [1], [0, 0, 1, 1], [], []>} : vector<72x16xbf16>, vector<16x128xbf16>, vector<72x128xf32> -> vector<72x128xf32>
    %25 = arith.addf %20, %24 : vector<72x128xf32>
    %c10 = arith.constant 10 : index
    %c0_27 = arith.constant 0 : index
    %26 = vector.load %arg6[%c10, %c0_27] : memref<82x16xbf16, #tpu.memory_space<vmem>>, vector<72x16xbf16>
    %c3 = arith.constant 3 : index
    %c0_28 = arith.constant 0 : index
    %c0_29 = arith.constant 0 : index
    %27 = vector.load %arg3[%c3, %c0_28, %c0_29] : memref<4x16x128xbf16, #tpu.memory_space<vmem>>, vector<1x16x128xbf16>
    %28 = vector.shape_cast %27 : vector<1x16x128xbf16> to vector<16x128xbf16>
    %cst_30 = arith.constant dense<0.000000e+00> : vector<72x128xf32>
    %29 = tpu.matmul %26, %28, %cst_30 {dimension_numbers = #tpu.dot_dimension_numbers<[1], [0], [0], [1], [0, 0, 1, 1], [], []>} : vector<72x16xbf16>, vector<16x128xbf16>, vector<72x128xf32> -> vector<72x128xf32>
    %30 = arith.addf %25, %29 : vector<72x128xf32>
    %c0_31 = arith.constant 0 : index
    %c0_32 = arith.constant 0 : index
    %31 = vector.load %arg4[%c0_31, %c0_32] : memref<1x128xf32, #tpu.memory_space<vmem>>, vector<1x128xf32>
    %32 = vector.broadcast %31 : vector<1x128xf32> to vector<72x128xf32>
    %33 = arith.addf %30, %32 : vector<72x128xf32>
    %cst_33 = arith.constant 0.000000e+00 : f32
    %34 = vector.broadcast %cst_33 : f32 to vector<72x128xf32>
    %35 = arith.maximumf %33, %34 : vector<72x128xf32>
    %36 = arith.truncf %35 : vector<72x128xf32> to vector<72x128xbf16>
    %c0_34 = arith.constant 0 : index
    %c0_35 = arith.constant 0 : index
    %c0_36 = arith.constant 0 : index
    %37 = vector.load %arg5[%c0_34, %c0_35, %c0_36] : memref<1x72x128xbf16, #tpu.memory_space<vmem>>, vector<1x72x128xbf16>
    %38 = vector.shape_cast %37 : vector<1x72x128xbf16> to vector<72x128xbf16>
    %39 = vector.shape_cast %36 : vector<72x128xbf16> to vector<1x72x128xbf16>
    tpu.vector_store %arg5[%c0_34, %c0_35, %c0_36], %39 {strides = array<i32>} : memref<1x72x128xbf16, #tpu.memory_space<vmem>>, vector<1x72x128xbf16>,
    return
  }
  func.func @transform_0(%arg0: i32, %arg1: i32) -> (i32, i32, i32) {
    %c0_i32 = arith.constant 0 : i32
    %c0_i32_0 = arith.constant 0 : i32
    return %arg0, %arg1, %c0_i32 : i32, i32, i32
  }
  func.func @transform_1(%arg0: i32, %arg1: i32) -> (i32, i32, i32) {
    %c0_i32 = arith.constant 0 : i32
    %c0_i32_0 = arith.constant 0 : i32
    %c0_i32_1 = arith.constant 0 : i32
    %c0_i32_2 = arith.constant 0 : i32
    return %c0_i32, %c0_i32_0, %c0_i32_1 : i32, i32, i32
  }
  func.func @transform_2(%arg0: i32, %arg1: i32) -> (i32, i32) {
    %c0_i32 = arith.constant 0 : i32
    %c0_i32_0 = arith.constant 0 : i32
    %c0_i32_1 = arith.constant 0 : i32
    return %c0_i32, %c0_i32_0 : i32, i32
  }
  func.func @transform_3(%arg0: i32, %arg1: i32) -> (i32, i32, i32) {
    %c0_i32 = arith.constant 0 : i32
    %c0_i32_0 = arith.constant 0 : i32
    return %arg0, %arg1, %c0_i32 : i32, i32, i32
  }
}

module attributes {stable_mosaic.version = 11 : i64} {
  func.func @_conv_slab_kernel(%arg0: i32, %arg1: i32, %arg2: memref<1x80x8xbf16, #tpu.memory_space<vmem>>, %arg3: memref<9x8x128xbf16, #tpu.memory_space<vmem>>, %arg4: memref<1x128xf32, #tpu.memory_space<vmem>>, %arg5: memref<1x80x128xbf16, #tpu.memory_space<vmem>>, %arg6: memref<102x8xbf16, #tpu.memory_space<vmem>>, %arg7: memref<20x8xbf16, #tpu.memory_space<vmem>>) attributes {dimension_semantics = [#tpu.dimension_semantics<parallel>, #tpu.dimension_semantics<arbitrary>], iteration_bounds = array<i64: 2, 2>, scalar_prefetch = 0 : i64, scratch_operands = 2 : i64, tpu.core_type = #tpu.core_type<tc>, window_params = [{transform_indices = @transform_0, window_bounds = array<i64: 1, 80, 8>}, {pipeline_mode = #tpu.pipeline_mode<synchronous>, transform_indices = @transform_1, window_bounds = array<i64: 9, 8, 128>}, {pipeline_mode = #tpu.pipeline_mode<synchronous>, transform_indices = @transform_2, window_bounds = array<i64: 1, 128>}, {transform_indices = @transform_3, window_bounds = array<i64: 1, 80, 128>}]} {
    %c0_i32 = arith.constant 0 : i32
    %0 = arith.cmpi eq, %arg1, %c0_i32 : i32
    %1 = arith.extui %0 : i1 to i32
    %c0_i32_0 = arith.constant 0 : i32
    %2 = arith.cmpi ne, %1, %c0_i32_0 : i32
    scf.if %2 {
      %cst_58 = arith.constant 0.000000e+00 : bf16
      %65 = vector.broadcast %cst_58 : bf16 to vector<102x8xbf16>
      %c0_59 = arith.constant 0 : index
      %c0_60 = arith.constant 0 : index
      %66 = vector.load %arg6[%c0_59, %c0_60] : memref<102x8xbf16, #tpu.memory_space<vmem>>, vector<102x8xbf16>
      tpu.vector_store %arg6[%c0_59, %c0_60], %65 {strides = array<i32>} : memref<102x8xbf16, #tpu.memory_space<vmem>>, vector<102x8xbf16>,
      %cst_61 = arith.constant 0.000000e+00 : bf16
      %67 = vector.broadcast %cst_61 : bf16 to vector<20x8xbf16>
      %c0_62 = arith.constant 0 : index
      %c0_63 = arith.constant 0 : index
      %68 = vector.load %arg7[%c0_62, %c0_63] : memref<20x8xbf16, #tpu.memory_space<vmem>>, vector<20x8xbf16>
      tpu.vector_store %arg7[%c0_62, %c0_63], %67 {strides = array<i32>} : memref<20x8xbf16, #tpu.memory_space<vmem>>, vector<20x8xbf16>,
    } else {
    }
    %c0 = arith.constant 0 : index
    %c0_1 = arith.constant 0 : index
    %3 = vector.load %arg7[%c0, %c0_1] : memref<20x8xbf16, #tpu.memory_space<vmem>>, vector<20x8xbf16>
    %c0_2 = arith.constant 0 : index
    %c0_3 = arith.constant 0 : index
    %4 = vector.load %arg6[%c0_2, %c0_3] : memref<102x8xbf16, #tpu.memory_space<vmem>>, vector<20x8xbf16>
    tpu.vector_store %arg6[%c0_2, %c0_3], %3 {strides = array<i32>} : memref<102x8xbf16, #tpu.memory_space<vmem>>, vector<20x8xbf16>,
    %c0_4 = arith.constant 0 : index
    %c0_5 = arith.constant 0 : index
    %c0_6 = arith.constant 0 : index
    %5 = vector.load %arg2[%c0_4, %c0_5, %c0_6] : memref<1x80x8xbf16, #tpu.memory_space<vmem>>, vector<1x80x8xbf16>
    %6 = vector.shape_cast %5 : vector<1x80x8xbf16> to vector<80x8xbf16>
    %c20 = arith.constant 20 : index
    %c0_7 = arith.constant 0 : index
    %7 = vector.load %arg6[%c20, %c0_7] : memref<102x8xbf16, #tpu.memory_space<vmem>>, vector<80x8xbf16>
    tpu.vector_store %arg6[%c20, %c0_7], %6 {strides = array<i32>} : memref<102x8xbf16, #tpu.memory_space<vmem>>, vector<80x8xbf16>,
    %c80 = arith.constant 80 : index
    %c0_8 = arith.constant 0 : index
    %8 = vector.load %arg6[%c80, %c0_8] : memref<102x8xbf16, #tpu.memory_space<vmem>>, vector<20x8xbf16>
    %c0_9 = arith.constant 0 : index
    %c0_10 = arith.constant 0 : index
    %9 = vector.load %arg7[%c0_9, %c0_10] : memref<20x8xbf16, #tpu.memory_space<vmem>>, vector<20x8xbf16>
    tpu.vector_store %arg7[%c0_9, %c0_10], %8 {strides = array<i32>} : memref<20x8xbf16, #tpu.memory_space<vmem>>, vector<20x8xbf16>,
    %cst = arith.constant 0.000000e+00 : f32
    %10 = vector.broadcast %cst : f32 to vector<80x128xf32>
    %c0_11 = arith.constant 0 : index
    %c0_12 = arith.constant 0 : index
    %11 = vector.load %arg6[%c0_11, %c0_12] : memref<102x8xbf16, #tpu.memory_space<vmem>>, vector<80x8xbf16>
    %c0_13 = arith.constant 0 : index
    %c0_14 = arith.constant 0 : index
    %c0_15 = arith.constant 0 : index
    %12 = vector.load %arg3[%c0_13, %c0_14, %c0_15] : memref<9x8x128xbf16, #tpu.memory_space<vmem>>, vector<1x8x128xbf16>
    %13 = vector.shape_cast %12 : vector<1x8x128xbf16> to vector<8x128xbf16>
    %cst_16 = arith.constant dense<0.000000e+00> : vector<80x128xf32>
    %14 = tpu.matmul %11, %13, %cst_16 {dimension_numbers = #tpu.dot_dimension_numbers<[1], [0], [0], [1], [0, 0, 1, 1], [], []>} : vector<80x8xbf16>, vector<8x128xbf16>, vector<80x128xf32> -> vector<80x128xf32>
    %15 = arith.addf %10, %14 : vector<80x128xf32>
    %c1 = arith.constant 1 : index
    %c0_17 = arith.constant 0 : index
    %16 = vector.load %arg6[%c1, %c0_17] : memref<102x8xbf16, #tpu.memory_space<vmem>>, vector<80x8xbf16>
    %c1_18 = arith.constant 1 : index
    %c0_19 = arith.constant 0 : index
    %c0_20 = arith.constant 0 : index
    %17 = vector.load %arg3[%c1_18, %c0_19, %c0_20] : memref<9x8x128xbf16, #tpu.memory_space<vmem>>, vector<1x8x128xbf16>
    %18 = vector.shape_cast %17 : vector<1x8x128xbf16> to vector<8x128xbf16>
    %cst_21 = arith.constant dense<0.000000e+00> : vector<80x128xf32>
    %19 = tpu.matmul %16, %18, %cst_21 {dimension_numbers = #tpu.dot_dimension_numbers<[1], [0], [0], [1], [0, 0, 1, 1], [], []>} : vector<80x8xbf16>, vector<8x128xbf16>, vector<80x128xf32> -> vector<80x128xf32>
    %20 = arith.addf %15, %19 : vector<80x128xf32>
    %c2 = arith.constant 2 : index
    %c0_22 = arith.constant 0 : index
    %21 = vector.load %arg6[%c2, %c0_22] : memref<102x8xbf16, #tpu.memory_space<vmem>>, vector<80x8xbf16>
    %c2_23 = arith.constant 2 : index
    %c0_24 = arith.constant 0 : index
    %c0_25 = arith.constant 0 : index
    %22 = vector.load %arg3[%c2_23, %c0_24, %c0_25] : memref<9x8x128xbf16, #tpu.memory_space<vmem>>, vector<1x8x128xbf16>
    %23 = vector.shape_cast %22 : vector<1x8x128xbf16> to vector<8x128xbf16>
    %cst_26 = arith.constant dense<0.000000e+00> : vector<80x128xf32>
    %24 = tpu.matmul %21, %23, %cst_26 {dimension_numbers = #tpu.dot_dimension_numbers<[1], [0], [0], [1], [0, 0, 1, 1], [], []>} : vector<80x8xbf16>, vector<8x128xbf16>, vector<80x128xf32> -> vector<80x128xf32>
    %25 = arith.addf %20, %24 : vector<80x128xf32>
    %c10 = arith.constant 10 : index
    %c0_27 = arith.constant 0 : index
    %26 = vector.load %arg6[%c10, %c0_27] : memref<102x8xbf16, #tpu.memory_space<vmem>>, vector<80x8xbf16>
    %c3 = arith.constant 3 : index
    %c0_28 = arith.constant 0 : index
    %c0_29 = arith.constant 0 : index
    %27 = vector.load %arg3[%c3, %c0_28, %c0_29] : memref<9x8x128xbf16, #tpu.memory_space<vmem>>, vector<1x8x128xbf16>
    %28 = vector.shape_cast %27 : vector<1x8x128xbf16> to vector<8x128xbf16>
    %cst_30 = arith.constant dense<0.000000e+00> : vector<80x128xf32>
    %29 = tpu.matmul %26, %28, %cst_30 {dimension_numbers = #tpu.dot_dimension_numbers<[1], [0], [0], [1], [0, 0, 1, 1], [], []>} : vector<80x8xbf16>, vector<8x128xbf16>, vector<80x128xf32> -> vector<80x128xf32>
    %30 = arith.addf %25, %29 : vector<80x128xf32>
    %c11 = arith.constant 11 : index
    %c0_31 = arith.constant 0 : index
    %31 = vector.load %arg6[%c11, %c0_31] : memref<102x8xbf16, #tpu.memory_space<vmem>>, vector<80x8xbf16>
    %c4 = arith.constant 4 : index
    %c0_32 = arith.constant 0 : index
    %c0_33 = arith.constant 0 : index
    %32 = vector.load %arg3[%c4, %c0_32, %c0_33] : memref<9x8x128xbf16, #tpu.memory_space<vmem>>, vector<1x8x128xbf16>
    %33 = vector.shape_cast %32 : vector<1x8x128xbf16> to vector<8x128xbf16>
    %cst_34 = arith.constant dense<0.000000e+00> : vector<80x128xf32>
    %34 = tpu.matmul %31, %33, %cst_34 {dimension_numbers = #tpu.dot_dimension_numbers<[1], [0], [0], [1], [0, 0, 1, 1], [], []>} : vector<80x8xbf16>, vector<8x128xbf16>, vector<80x128xf32> -> vector<80x128xf32>
    %35 = arith.addf %30, %34 : vector<80x128xf32>
    %c12 = arith.constant 12 : index
    %c0_35 = arith.constant 0 : index
    %36 = vector.load %arg6[%c12, %c0_35] : memref<102x8xbf16, #tpu.memory_space<vmem>>, vector<80x8xbf16>
    %c5 = arith.constant 5 : index
    %c0_36 = arith.constant 0 : index
    %c0_37 = arith.constant 0 : index
    %37 = vector.load %arg3[%c5, %c0_36, %c0_37] : memref<9x8x128xbf16, #tpu.memory_space<vmem>>, vector<1x8x128xbf16>
    %38 = vector.shape_cast %37 : vector<1x8x128xbf16> to vector<8x128xbf16>
    %cst_38 = arith.constant dense<0.000000e+00> : vector<80x128xf32>
    %39 = tpu.matmul %36, %38, %cst_38 {dimension_numbers = #tpu.dot_dimension_numbers<[1], [0], [0], [1], [0, 0, 1, 1], [], []>} : vector<80x8xbf16>, vector<8x128xbf16>, vector<80x128xf32> -> vector<80x128xf32>
    %40 = arith.addf %35, %39 : vector<80x128xf32>
    %c20_39 = arith.constant 20 : index
    %c0_40 = arith.constant 0 : index
    %41 = vector.load %arg6[%c20_39, %c0_40] : memref<102x8xbf16, #tpu.memory_space<vmem>>, vector<80x8xbf16>
    %c6 = arith.constant 6 : index
    %c0_41 = arith.constant 0 : index
    %c0_42 = arith.constant 0 : index
    %42 = vector.load %arg3[%c6, %c0_41, %c0_42] : memref<9x8x128xbf16, #tpu.memory_space<vmem>>, vector<1x8x128xbf16>
    %43 = vector.shape_cast %42 : vector<1x8x128xbf16> to vector<8x128xbf16>
    %cst_43 = arith.constant dense<0.000000e+00> : vector<80x128xf32>
    %44 = tpu.matmul %41, %43, %cst_43 {dimension_numbers = #tpu.dot_dimension_numbers<[1], [0], [0], [1], [0, 0, 1, 1], [], []>} : vector<80x8xbf16>, vector<8x128xbf16>, vector<80x128xf32> -> vector<80x128xf32>
    %45 = arith.addf %40, %44 : vector<80x128xf32>
    %c21 = arith.constant 21 : index
    %c0_44 = arith.constant 0 : index
    %46 = vector.load %arg6[%c21, %c0_44] : memref<102x8xbf16, #tpu.memory_space<vmem>>, vector<80x8xbf16>
    %c7 = arith.constant 7 : index
    %c0_45 = arith.constant 0 : index
    %c0_46 = arith.constant 0 : index
    %47 = vector.load %arg3[%c7, %c0_45, %c0_46] : memref<9x8x128xbf16, #tpu.memory_space<vmem>>, vector<1x8x128xbf16>
    %48 = vector.shape_cast %47 : vector<1x8x128xbf16> to vector<8x128xbf16>
    %cst_47 = arith.constant dense<0.000000e+00> : vector<80x128xf32>
    %49 = tpu.matmul %46, %48, %cst_47 {dimension_numbers = #tpu.dot_dimension_numbers<[1], [0], [0], [1], [0, 0, 1, 1], [], []>} : vector<80x8xbf16>, vector<8x128xbf16>, vector<80x128xf32> -> vector<80x128xf32>
    %50 = arith.addf %45, %49 : vector<80x128xf32>
    %c22 = arith.constant 22 : index
    %c0_48 = arith.constant 0 : index
    %51 = vector.load %arg6[%c22, %c0_48] : memref<102x8xbf16, #tpu.memory_space<vmem>>, vector<80x8xbf16>
    %c8 = arith.constant 8 : index
    %c0_49 = arith.constant 0 : index
    %c0_50 = arith.constant 0 : index
    %52 = vector.load %arg3[%c8, %c0_49, %c0_50] : memref<9x8x128xbf16, #tpu.memory_space<vmem>>, vector<1x8x128xbf16>
    %53 = vector.shape_cast %52 : vector<1x8x128xbf16> to vector<8x128xbf16>
    %cst_51 = arith.constant dense<0.000000e+00> : vector<80x128xf32>
    %54 = tpu.matmul %51, %53, %cst_51 {dimension_numbers = #tpu.dot_dimension_numbers<[1], [0], [0], [1], [0, 0, 1, 1], [], []>} : vector<80x8xbf16>, vector<8x128xbf16>, vector<80x128xf32> -> vector<80x128xf32>
    %55 = arith.addf %50, %54 : vector<80x128xf32>
    %c0_52 = arith.constant 0 : index
    %c0_53 = arith.constant 0 : index
    %56 = vector.load %arg4[%c0_52, %c0_53] : memref<1x128xf32, #tpu.memory_space<vmem>>, vector<1x128xf32>
    %57 = vector.broadcast %56 : vector<1x128xf32> to vector<80x128xf32>
    %58 = arith.addf %55, %57 : vector<80x128xf32>
    %cst_54 = arith.constant 0.000000e+00 : f32
    %59 = vector.broadcast %cst_54 : f32 to vector<80x128xf32>
    %60 = arith.maximumf %58, %59 : vector<80x128xf32>
    %61 = arith.truncf %60 : vector<80x128xf32> to vector<80x128xbf16>
    %c0_55 = arith.constant 0 : index
    %c0_56 = arith.constant 0 : index
    %c0_57 = arith.constant 0 : index
    %62 = vector.load %arg5[%c0_55, %c0_56, %c0_57] : memref<1x80x128xbf16, #tpu.memory_space<vmem>>, vector<1x80x128xbf16>
    %63 = vector.shape_cast %62 : vector<1x80x128xbf16> to vector<80x128xbf16>
    %64 = vector.shape_cast %61 : vector<80x128xbf16> to vector<1x80x128xbf16>
    tpu.vector_store %arg5[%c0_55, %c0_56, %c0_57], %64 {strides = array<i32>} : memref<1x80x128xbf16, #tpu.memory_space<vmem>>, vector<1x80x128xbf16>,
    return
  }
  func.func @transform_0(%arg0: i32, %arg1: i32) -> (i32, i32, i32) {
    %c0_i32 = arith.constant 0 : i32
    %c0_i32_0 = arith.constant 0 : i32
    return %arg0, %arg1, %c0_i32 : i32, i32, i32
  }
  func.func @transform_1(%arg0: i32, %arg1: i32) -> (i32, i32, i32) {
    %c0_i32 = arith.constant 0 : i32
    %c0_i32_0 = arith.constant 0 : i32
    %c0_i32_1 = arith.constant 0 : i32
    %c0_i32_2 = arith.constant 0 : i32
    return %c0_i32, %c0_i32_0, %c0_i32_1 : i32, i32, i32
  }
  func.func @transform_2(%arg0: i32, %arg1: i32) -> (i32, i32) {
    %c0_i32 = arith.constant 0 : i32
    %c0_i32_0 = arith.constant 0 : i32
    %c0_i32_1 = arith.constant 0 : i32
    return %c0_i32, %c0_i32_0 : i32, i32
  }
  func.func @transform_3(%arg0: i32, %arg1: i32) -> (i32, i32, i32) {
    %c0_i32 = arith.constant 0 : i32
    %c0_i32_0 = arith.constant 0 : i32
    return %arg0, %arg1, %c0_i32 : i32, i32, i32
  }
}

module attributes {stable_mosaic.version = 11 : i64} {
  func.func @_conv_slab_kernel(%arg0: i32, %arg1: i32, %arg2: memref<1x40x32xbf16, #tpu.memory_space<vmem>>, %arg3: memref<4x32x128xbf16, #tpu.memory_space<vmem>>, %arg4: memref<1x128xf32, #tpu.memory_space<vmem>>, %arg5: memref<1x40x128xbf16, #tpu.memory_space<vmem>>, %arg6: memref<46x32xbf16, #tpu.memory_space<vmem>>, %arg7: memref<5x32xbf16, #tpu.memory_space<vmem>>) attributes {dimension_semantics = [#tpu.dimension_semantics<parallel>, #tpu.dimension_semantics<arbitrary>], iteration_bounds = array<i64: 2, 1>, scalar_prefetch = 0 : i64, scratch_operands = 2 : i64, tpu.core_type = #tpu.core_type<tc>, window_params = [{transform_indices = @transform_0, window_bounds = array<i64: 1, 40, 32>}, {pipeline_mode = #tpu.pipeline_mode<synchronous>, transform_indices = @transform_1, window_bounds = array<i64: 4, 32, 128>}, {pipeline_mode = #tpu.pipeline_mode<synchronous>, transform_indices = @transform_2, window_bounds = array<i64: 1, 128>}, {transform_indices = @transform_3, window_bounds = array<i64: 1, 40, 128>}]} {
    %c0_i32 = arith.constant 0 : i32
    %0 = arith.cmpi eq, %arg1, %c0_i32 : i32
    %1 = arith.extui %0 : i1 to i32
    %c0_i32_0 = arith.constant 0 : i32
    %2 = arith.cmpi ne, %1, %c0_i32_0 : i32
    scf.if %2 {
      %cst_37 = arith.constant 0.000000e+00 : bf16
      %40 = vector.broadcast %cst_37 : bf16 to vector<46x32xbf16>
      %c0_38 = arith.constant 0 : index
      %c0_39 = arith.constant 0 : index
      %41 = vector.load %arg6[%c0_38, %c0_39] : memref<46x32xbf16, #tpu.memory_space<vmem>>, vector<46x32xbf16>
      tpu.vector_store %arg6[%c0_38, %c0_39], %40 {strides = array<i32>} : memref<46x32xbf16, #tpu.memory_space<vmem>>, vector<46x32xbf16>,
      %cst_40 = arith.constant 0.000000e+00 : bf16
      %42 = vector.broadcast %cst_40 : bf16 to vector<5x32xbf16>
      %c0_41 = arith.constant 0 : index
      %c0_42 = arith.constant 0 : index
      %43 = vector.load %arg7[%c0_41, %c0_42] : memref<5x32xbf16, #tpu.memory_space<vmem>>, vector<5x32xbf16>
      tpu.vector_store %arg7[%c0_41, %c0_42], %42 {strides = array<i32>} : memref<5x32xbf16, #tpu.memory_space<vmem>>, vector<5x32xbf16>,
    } else {
    }
    %c0 = arith.constant 0 : index
    %c0_1 = arith.constant 0 : index
    %3 = vector.load %arg7[%c0, %c0_1] : memref<5x32xbf16, #tpu.memory_space<vmem>>, vector<5x32xbf16>
    %c0_2 = arith.constant 0 : index
    %c0_3 = arith.constant 0 : index
    %4 = vector.load %arg6[%c0_2, %c0_3] : memref<46x32xbf16, #tpu.memory_space<vmem>>, vector<5x32xbf16>
    tpu.vector_store %arg6[%c0_2, %c0_3], %3 {strides = array<i32>} : memref<46x32xbf16, #tpu.memory_space<vmem>>, vector<5x32xbf16>,
    %c0_4 = arith.constant 0 : index
    %c0_5 = arith.constant 0 : index
    %c0_6 = arith.constant 0 : index
    %5 = vector.load %arg2[%c0_4, %c0_5, %c0_6] : memref<1x40x32xbf16, #tpu.memory_space<vmem>>, vector<1x40x32xbf16>
    %6 = vector.shape_cast %5 : vector<1x40x32xbf16> to vector<40x32xbf16>
    %c5 = arith.constant 5 : index
    %c0_7 = arith.constant 0 : index
    %7 = vector.load %arg6[%c5, %c0_7] : memref<46x32xbf16, #tpu.memory_space<vmem>>, vector<40x32xbf16>
    tpu.vector_store %arg6[%c5, %c0_7], %6 {strides = array<i32>} : memref<46x32xbf16, #tpu.memory_space<vmem>>, vector<40x32xbf16>,
    %c40 = arith.constant 40 : index
    %c0_8 = arith.constant 0 : index
    %8 = vector.load %arg6[%c40, %c0_8] : memref<46x32xbf16, #tpu.memory_space<vmem>>, vector<5x32xbf16>
    %c0_9 = arith.constant 0 : index
    %c0_10 = arith.constant 0 : index
    %9 = vector.load %arg7[%c0_9, %c0_10] : memref<5x32xbf16, #tpu.memory_space<vmem>>, vector<5x32xbf16>
    tpu.vector_store %arg7[%c0_9, %c0_10], %8 {strides = array<i32>} : memref<5x32xbf16, #tpu.memory_space<vmem>>, vector<5x32xbf16>,
    %cst = arith.constant 0.000000e+00 : f32
    %10 = vector.broadcast %cst : f32 to vector<40x128xf32>
    %c0_11 = arith.constant 0 : index
    %c0_12 = arith.constant 0 : index
    %11 = vector.load %arg6[%c0_11, %c0_12] : memref<46x32xbf16, #tpu.memory_space<vmem>>, vector<40x32xbf16>
    %c0_13 = arith.constant 0 : index
    %c0_14 = arith.constant 0 : index
    %c0_15 = arith.constant 0 : index
    %12 = vector.load %arg3[%c0_13, %c0_14, %c0_15] : memref<4x32x128xbf16, #tpu.memory_space<vmem>>, vector<1x32x128xbf16>
    %13 = vector.shape_cast %12 : vector<1x32x128xbf16> to vector<32x128xbf16>
    %cst_16 = arith.constant dense<0.000000e+00> : vector<40x128xf32>
    %14 = tpu.matmul %11, %13, %cst_16 {dimension_numbers = #tpu.dot_dimension_numbers<[1], [0], [0], [1], [0, 0, 1, 1], [], []>} : vector<40x32xbf16>, vector<32x128xbf16>, vector<40x128xf32> -> vector<40x128xf32>
    %15 = arith.addf %10, %14 : vector<40x128xf32>
    %c1 = arith.constant 1 : index
    %c0_17 = arith.constant 0 : index
    %16 = vector.load %arg6[%c1, %c0_17] : memref<46x32xbf16, #tpu.memory_space<vmem>>, vector<40x32xbf16>
    %c1_18 = arith.constant 1 : index
    %c0_19 = arith.constant 0 : index
    %c0_20 = arith.constant 0 : index
    %17 = vector.load %arg3[%c1_18, %c0_19, %c0_20] : memref<4x32x128xbf16, #tpu.memory_space<vmem>>, vector<1x32x128xbf16>
    %18 = vector.shape_cast %17 : vector<1x32x128xbf16> to vector<32x128xbf16>
    %cst_21 = arith.constant dense<0.000000e+00> : vector<40x128xf32>
    %19 = tpu.matmul %16, %18, %cst_21 {dimension_numbers = #tpu.dot_dimension_numbers<[1], [0], [0], [1], [0, 0, 1, 1], [], []>} : vector<40x32xbf16>, vector<32x128xbf16>, vector<40x128xf32> -> vector<40x128xf32>
    %20 = arith.addf %15, %19 : vector<40x128xf32>
    %c5_22 = arith.constant 5 : index
    %c0_23 = arith.constant 0 : index
    %21 = vector.load %arg6[%c5_22, %c0_23] : memref<46x32xbf16, #tpu.memory_space<vmem>>, vector<40x32xbf16>
    %c2 = arith.constant 2 : index
    %c0_24 = arith.constant 0 : index
    %c0_25 = arith.constant 0 : index
    %22 = vector.load %arg3[%c2, %c0_24, %c0_25] : memref<4x32x128xbf16, #tpu.memory_space<vmem>>, vector<1x32x128xbf16>
    %23 = vector.shape_cast %22 : vector<1x32x128xbf16> to vector<32x128xbf16>
    %cst_26 = arith.constant dense<0.000000e+00> : vector<40x128xf32>
    %24 = tpu.matmul %21, %23, %cst_26 {dimension_numbers = #tpu.dot_dimension_numbers<[1], [0], [0], [1], [0, 0, 1, 1], [], []>} : vector<40x32xbf16>, vector<32x128xbf16>, vector<40x128xf32> -> vector<40x128xf32>
    %25 = arith.addf %20, %24 : vector<40x128xf32>
    %c6 = arith.constant 6 : index
    %c0_27 = arith.constant 0 : index
    %26 = vector.load %arg6[%c6, %c0_27] : memref<46x32xbf16, #tpu.memory_space<vmem>>, vector<40x32xbf16>
    %c3 = arith.constant 3 : index
    %c0_28 = arith.constant 0 : index
    %c0_29 = arith.constant 0 : index
    %27 = vector.load %arg3[%c3, %c0_28, %c0_29] : memref<4x32x128xbf16, #tpu.memory_space<vmem>>, vector<1x32x128xbf16>
    %28 = vector.shape_cast %27 : vector<1x32x128xbf16> to vector<32x128xbf16>
    %cst_30 = arith.constant dense<0.000000e+00> : vector<40x128xf32>
    %29 = tpu.matmul %26, %28, %cst_30 {dimension_numbers = #tpu.dot_dimension_numbers<[1], [0], [0], [1], [0, 0, 1, 1], [], []>} : vector<40x32xbf16>, vector<32x128xbf16>, vector<40x128xf32> -> vector<40x128xf32>
    %30 = arith.addf %25, %29 : vector<40x128xf32>
    %c0_31 = arith.constant 0 : index
    %c0_32 = arith.constant 0 : index
    %31 = vector.load %arg4[%c0_31, %c0_32] : memref<1x128xf32, #tpu.memory_space<vmem>>, vector<1x128xf32>
    %32 = vector.broadcast %31 : vector<1x128xf32> to vector<40x128xf32>
    %33 = arith.addf %30, %32 : vector<40x128xf32>
    %cst_33 = arith.constant 0.000000e+00 : f32
    %34 = vector.broadcast %cst_33 : f32 to vector<40x128xf32>
    %35 = arith.maximumf %33, %34 : vector<40x128xf32>
    %36 = arith.truncf %35 : vector<40x128xf32> to vector<40x128xbf16>
    %c0_34 = arith.constant 0 : index
    %c0_35 = arith.constant 0 : index
    %c0_36 = arith.constant 0 : index
    %37 = vector.load %arg5[%c0_34, %c0_35, %c0_36] : memref<1x40x128xbf16, #tpu.memory_space<vmem>>, vector<1x40x128xbf16>
    %38 = vector.shape_cast %37 : vector<1x40x128xbf16> to vector<40x128xbf16>
    %39 = vector.shape_cast %36 : vector<40x128xbf16> to vector<1x40x128xbf16>
    tpu.vector_store %arg5[%c0_34, %c0_35, %c0_36], %39 {strides = array<i32>} : memref<1x40x128xbf16, #tpu.memory_space<vmem>>, vector<1x40x128xbf16>,
    return
  }
  func.func @transform_0(%arg0: i32, %arg1: i32) -> (i32, i32, i32) {
    %c0_i32 = arith.constant 0 : i32
    %c0_i32_0 = arith.constant 0 : i32
    return %arg0, %arg1, %c0_i32 : i32, i32, i32
  }
  func.func @transform_1(%arg0: i32, %arg1: i32) -> (i32, i32, i32) {
    %c0_i32 = arith.constant 0 : i32
    %c0_i32_0 = arith.constant 0 : i32
    %c0_i32_1 = arith.constant 0 : i32
    %c0_i32_2 = arith.constant 0 : i32
    return %c0_i32, %c0_i32_0, %c0_i32_1 : i32, i32, i32
  }
  func.func @transform_2(%arg0: i32, %arg1: i32) -> (i32, i32) {
    %c0_i32 = arith.constant 0 : i32
    %c0_i32_0 = arith.constant 0 : i32
    %c0_i32_1 = arith.constant 0 : i32
    return %c0_i32, %c0_i32_0 : i32, i32
  }
  func.func @transform_3(%arg0: i32, %arg1: i32) -> (i32, i32, i32) {
    %c0_i32 = arith.constant 0 : i32
    %c0_i32_0 = arith.constant 0 : i32
    return %arg0, %arg1, %c0_i32 : i32, i32, i32
  }
}

module attributes {stable_mosaic.version = 11 : i64} {
  func.func @_conv_slab_kernel(%arg0: i32, %arg1: i32, %arg2: memref<1x48x16xbf16, #tpu.memory_space<vmem>>, %arg3: memref<9x16x128xbf16, #tpu.memory_space<vmem>>, %arg4: memref<1x128xf32, #tpu.memory_space<vmem>>, %arg5: memref<1x48x128xbf16, #tpu.memory_space<vmem>>, %arg6: memref<62x16xbf16, #tpu.memory_space<vmem>>, %arg7: memref<12x16xbf16, #tpu.memory_space<vmem>>) attributes {dimension_semantics = [#tpu.dimension_semantics<parallel>, #tpu.dimension_semantics<arbitrary>], iteration_bounds = array<i64: 2, 1>, scalar_prefetch = 0 : i64, scratch_operands = 2 : i64, tpu.core_type = #tpu.core_type<tc>, window_params = [{transform_indices = @transform_0, window_bounds = array<i64: 1, 48, 16>}, {pipeline_mode = #tpu.pipeline_mode<synchronous>, transform_indices = @transform_1, window_bounds = array<i64: 9, 16, 128>}, {pipeline_mode = #tpu.pipeline_mode<synchronous>, transform_indices = @transform_2, window_bounds = array<i64: 1, 128>}, {transform_indices = @transform_3, window_bounds = array<i64: 1, 48, 128>}]} {
    %c0_i32 = arith.constant 0 : i32
    %0 = arith.cmpi eq, %arg1, %c0_i32 : i32
    %1 = arith.extui %0 : i1 to i32
    %c0_i32_0 = arith.constant 0 : i32
    %2 = arith.cmpi ne, %1, %c0_i32_0 : i32
    scf.if %2 {
      %cst_61 = arith.constant 0.000000e+00 : bf16
      %65 = vector.broadcast %cst_61 : bf16 to vector<62x16xbf16>
      %c0_62 = arith.constant 0 : index
      %c0_63 = arith.constant 0 : index
      %66 = vector.load %arg6[%c0_62, %c0_63] : memref<62x16xbf16, #tpu.memory_space<vmem>>, vector<62x16xbf16>
      tpu.vector_store %arg6[%c0_62, %c0_63], %65 {strides = array<i32>} : memref<62x16xbf16, #tpu.memory_space<vmem>>, vector<62x16xbf16>,
      %cst_64 = arith.constant 0.000000e+00 : bf16
      %67 = vector.broadcast %cst_64 : bf16 to vector<12x16xbf16>
      %c0_65 = arith.constant 0 : index
      %c0_66 = arith.constant 0 : index
      %68 = vector.load %arg7[%c0_65, %c0_66] : memref<12x16xbf16, #tpu.memory_space<vmem>>, vector<12x16xbf16>
      tpu.vector_store %arg7[%c0_65, %c0_66], %67 {strides = array<i32>} : memref<12x16xbf16, #tpu.memory_space<vmem>>, vector<12x16xbf16>,
    } else {
    }
    %c0 = arith.constant 0 : index
    %c0_1 = arith.constant 0 : index
    %3 = vector.load %arg7[%c0, %c0_1] : memref<12x16xbf16, #tpu.memory_space<vmem>>, vector<12x16xbf16>
    %c0_2 = arith.constant 0 : index
    %c0_3 = arith.constant 0 : index
    %4 = vector.load %arg6[%c0_2, %c0_3] : memref<62x16xbf16, #tpu.memory_space<vmem>>, vector<12x16xbf16>
    tpu.vector_store %arg6[%c0_2, %c0_3], %3 {strides = array<i32>} : memref<62x16xbf16, #tpu.memory_space<vmem>>, vector<12x16xbf16>,
    %c0_4 = arith.constant 0 : index
    %c0_5 = arith.constant 0 : index
    %c0_6 = arith.constant 0 : index
    %5 = vector.load %arg2[%c0_4, %c0_5, %c0_6] : memref<1x48x16xbf16, #tpu.memory_space<vmem>>, vector<1x48x16xbf16>
    %6 = vector.shape_cast %5 : vector<1x48x16xbf16> to vector<48x16xbf16>
    %c12 = arith.constant 12 : index
    %c0_7 = arith.constant 0 : index
    %7 = vector.load %arg6[%c12, %c0_7] : memref<62x16xbf16, #tpu.memory_space<vmem>>, vector<48x16xbf16>
    tpu.vector_store %arg6[%c12, %c0_7], %6 {strides = array<i32>} : memref<62x16xbf16, #tpu.memory_space<vmem>>, vector<48x16xbf16>,
    %c48 = arith.constant 48 : index
    %c0_8 = arith.constant 0 : index
    %8 = vector.load %arg6[%c48, %c0_8] : memref<62x16xbf16, #tpu.memory_space<vmem>>, vector<12x16xbf16>
    %c0_9 = arith.constant 0 : index
    %c0_10 = arith.constant 0 : index
    %9 = vector.load %arg7[%c0_9, %c0_10] : memref<12x16xbf16, #tpu.memory_space<vmem>>, vector<12x16xbf16>
    tpu.vector_store %arg7[%c0_9, %c0_10], %8 {strides = array<i32>} : memref<12x16xbf16, #tpu.memory_space<vmem>>, vector<12x16xbf16>,
    %cst = arith.constant 0.000000e+00 : f32
    %10 = vector.broadcast %cst : f32 to vector<48x128xf32>
    %c0_11 = arith.constant 0 : index
    %c0_12 = arith.constant 0 : index
    %11 = vector.load %arg6[%c0_11, %c0_12] : memref<62x16xbf16, #tpu.memory_space<vmem>>, vector<48x16xbf16>
    %c0_13 = arith.constant 0 : index
    %c0_14 = arith.constant 0 : index
    %c0_15 = arith.constant 0 : index
    %12 = vector.load %arg3[%c0_13, %c0_14, %c0_15] : memref<9x16x128xbf16, #tpu.memory_space<vmem>>, vector<1x16x128xbf16>
    %13 = vector.shape_cast %12 : vector<1x16x128xbf16> to vector<16x128xbf16>
    %cst_16 = arith.constant dense<0.000000e+00> : vector<48x128xf32>
    %14 = tpu.matmul %11, %13, %cst_16 {dimension_numbers = #tpu.dot_dimension_numbers<[1], [0], [0], [1], [0, 0, 1, 1], [], []>} : vector<48x16xbf16>, vector<16x128xbf16>, vector<48x128xf32> -> vector<48x128xf32>
    %15 = arith.addf %10, %14 : vector<48x128xf32>
    %c1 = arith.constant 1 : index
    %c0_17 = arith.constant 0 : index
    %16 = vector.load %arg6[%c1, %c0_17] : memref<62x16xbf16, #tpu.memory_space<vmem>>, vector<48x16xbf16>
    %c1_18 = arith.constant 1 : index
    %c0_19 = arith.constant 0 : index
    %c0_20 = arith.constant 0 : index
    %17 = vector.load %arg3[%c1_18, %c0_19, %c0_20] : memref<9x16x128xbf16, #tpu.memory_space<vmem>>, vector<1x16x128xbf16>
    %18 = vector.shape_cast %17 : vector<1x16x128xbf16> to vector<16x128xbf16>
    %cst_21 = arith.constant dense<0.000000e+00> : vector<48x128xf32>
    %19 = tpu.matmul %16, %18, %cst_21 {dimension_numbers = #tpu.dot_dimension_numbers<[1], [0], [0], [1], [0, 0, 1, 1], [], []>} : vector<48x16xbf16>, vector<16x128xbf16>, vector<48x128xf32> -> vector<48x128xf32>
    %20 = arith.addf %15, %19 : vector<48x128xf32>
    %c2 = arith.constant 2 : index
    %c0_22 = arith.constant 0 : index
    %21 = vector.load %arg6[%c2, %c0_22] : memref<62x16xbf16, #tpu.memory_space<vmem>>, vector<48x16xbf16>
    %c2_23 = arith.constant 2 : index
    %c0_24 = arith.constant 0 : index
    %c0_25 = arith.constant 0 : index
    %22 = vector.load %arg3[%c2_23, %c0_24, %c0_25] : memref<9x16x128xbf16, #tpu.memory_space<vmem>>, vector<1x16x128xbf16>
    %23 = vector.shape_cast %22 : vector<1x16x128xbf16> to vector<16x128xbf16>
    %cst_26 = arith.constant dense<0.000000e+00> : vector<48x128xf32>
    %24 = tpu.matmul %21, %23, %cst_26 {dimension_numbers = #tpu.dot_dimension_numbers<[1], [0], [0], [1], [0, 0, 1, 1], [], []>} : vector<48x16xbf16>, vector<16x128xbf16>, vector<48x128xf32> -> vector<48x128xf32>
    %25 = arith.addf %20, %24 : vector<48x128xf32>
    %c6 = arith.constant 6 : index
    %c0_27 = arith.constant 0 : index
    %26 = vector.load %arg6[%c6, %c0_27] : memref<62x16xbf16, #tpu.memory_space<vmem>>, vector<48x16xbf16>
    %c3 = arith.constant 3 : index
    %c0_28 = arith.constant 0 : index
    %c0_29 = arith.constant 0 : index
    %27 = vector.load %arg3[%c3, %c0_28, %c0_29] : memref<9x16x128xbf16, #tpu.memory_space<vmem>>, vector<1x16x128xbf16>
    %28 = vector.shape_cast %27 : vector<1x16x128xbf16> to vector<16x128xbf16>
    %cst_30 = arith.constant dense<0.000000e+00> : vector<48x128xf32>
    %29 = tpu.matmul %26, %28, %cst_30 {dimension_numbers = #tpu.dot_dimension_numbers<[1], [0], [0], [1], [0, 0, 1, 1], [], []>} : vector<48x16xbf16>, vector<16x128xbf16>, vector<48x128xf32> -> vector<48x128xf32>
    %30 = arith.addf %25, %29 : vector<48x128xf32>
    %c7 = arith.constant 7 : index
    %c0_31 = arith.constant 0 : index
    %31 = vector.load %arg6[%c7, %c0_31] : memref<62x16xbf16, #tpu.memory_space<vmem>>, vector<48x16xbf16>
    %c4 = arith.constant 4 : index
    %c0_32 = arith.constant 0 : index
    %c0_33 = arith.constant 0 : index
    %32 = vector.load %arg3[%c4, %c0_32, %c0_33] : memref<9x16x128xbf16, #tpu.memory_space<vmem>>, vector<1x16x128xbf16>
    %33 = vector.shape_cast %32 : vector<1x16x128xbf16> to vector<16x128xbf16>
    %cst_34 = arith.constant dense<0.000000e+00> : vector<48x128xf32>
    %34 = tpu.matmul %31, %33, %cst_34 {dimension_numbers = #tpu.dot_dimension_numbers<[1], [0], [0], [1], [0, 0, 1, 1], [], []>} : vector<48x16xbf16>, vector<16x128xbf16>, vector<48x128xf32> -> vector<48x128xf32>
    %35 = arith.addf %30, %34 : vector<48x128xf32>
    %c8 = arith.constant 8 : index
    %c0_35 = arith.constant 0 : index
    %36 = vector.load %arg6[%c8, %c0_35] : memref<62x16xbf16, #tpu.memory_space<vmem>>, vector<48x16xbf16>
    %c5 = arith.constant 5 : index
    %c0_36 = arith.constant 0 : index
    %c0_37 = arith.constant 0 : index
    %37 = vector.load %arg3[%c5, %c0_36, %c0_37] : memref<9x16x128xbf16, #tpu.memory_space<vmem>>, vector<1x16x128xbf16>
    %38 = vector.shape_cast %37 : vector<1x16x128xbf16> to vector<16x128xbf16>
    %cst_38 = arith.constant dense<0.000000e+00> : vector<48x128xf32>
    %39 = tpu.matmul %36, %38, %cst_38 {dimension_numbers = #tpu.dot_dimension_numbers<[1], [0], [0], [1], [0, 0, 1, 1], [], []>} : vector<48x16xbf16>, vector<16x128xbf16>, vector<48x128xf32> -> vector<48x128xf32>
    %40 = arith.addf %35, %39 : vector<48x128xf32>
    %c12_39 = arith.constant 12 : index
    %c0_40 = arith.constant 0 : index
    %41 = vector.load %arg6[%c12_39, %c0_40] : memref<62x16xbf16, #tpu.memory_space<vmem>>, vector<48x16xbf16>
    %c6_41 = arith.constant 6 : index
    %c0_42 = arith.constant 0 : index
    %c0_43 = arith.constant 0 : index
    %42 = vector.load %arg3[%c6_41, %c0_42, %c0_43] : memref<9x16x128xbf16, #tpu.memory_space<vmem>>, vector<1x16x128xbf16>
    %43 = vector.shape_cast %42 : vector<1x16x128xbf16> to vector<16x128xbf16>
    %cst_44 = arith.constant dense<0.000000e+00> : vector<48x128xf32>
    %44 = tpu.matmul %41, %43, %cst_44 {dimension_numbers = #tpu.dot_dimension_numbers<[1], [0], [0], [1], [0, 0, 1, 1], [], []>} : vector<48x16xbf16>, vector<16x128xbf16>, vector<48x128xf32> -> vector<48x128xf32>
    %45 = arith.addf %40, %44 : vector<48x128xf32>
    %c13 = arith.constant 13 : index
    %c0_45 = arith.constant 0 : index
    %46 = vector.load %arg6[%c13, %c0_45] : memref<62x16xbf16, #tpu.memory_space<vmem>>, vector<48x16xbf16>
    %c7_46 = arith.constant 7 : index
    %c0_47 = arith.constant 0 : index
    %c0_48 = arith.constant 0 : index
    %47 = vector.load %arg3[%c7_46, %c0_47, %c0_48] : memref<9x16x128xbf16, #tpu.memory_space<vmem>>, vector<1x16x128xbf16>
    %48 = vector.shape_cast %47 : vector<1x16x128xbf16> to vector<16x128xbf16>
    %cst_49 = arith.constant dense<0.000000e+00> : vector<48x128xf32>
    %49 = tpu.matmul %46, %48, %cst_49 {dimension_numbers = #tpu.dot_dimension_numbers<[1], [0], [0], [1], [0, 0, 1, 1], [], []>} : vector<48x16xbf16>, vector<16x128xbf16>, vector<48x128xf32> -> vector<48x128xf32>
    %50 = arith.addf %45, %49 : vector<48x128xf32>
    %c14 = arith.constant 14 : index
    %c0_50 = arith.constant 0 : index
    %51 = vector.load %arg6[%c14, %c0_50] : memref<62x16xbf16, #tpu.memory_space<vmem>>, vector<48x16xbf16>
    %c8_51 = arith.constant 8 : index
    %c0_52 = arith.constant 0 : index
    %c0_53 = arith.constant 0 : index
    %52 = vector.load %arg3[%c8_51, %c0_52, %c0_53] : memref<9x16x128xbf16, #tpu.memory_space<vmem>>, vector<1x16x128xbf16>
    %53 = vector.shape_cast %52 : vector<1x16x128xbf16> to vector<16x128xbf16>
    %cst_54 = arith.constant dense<0.000000e+00> : vector<48x128xf32>
    %54 = tpu.matmul %51, %53, %cst_54 {dimension_numbers = #tpu.dot_dimension_numbers<[1], [0], [0], [1], [0, 0, 1, 1], [], []>} : vector<48x16xbf16>, vector<16x128xbf16>, vector<48x128xf32> -> vector<48x128xf32>
    %55 = arith.addf %50, %54 : vector<48x128xf32>
    %c0_55 = arith.constant 0 : index
    %c0_56 = arith.constant 0 : index
    %56 = vector.load %arg4[%c0_55, %c0_56] : memref<1x128xf32, #tpu.memory_space<vmem>>, vector<1x128xf32>
    %57 = vector.broadcast %56 : vector<1x128xf32> to vector<48x128xf32>
    %58 = arith.addf %55, %57 : vector<48x128xf32>
    %cst_57 = arith.constant 0.000000e+00 : f32
    %59 = vector.broadcast %cst_57 : f32 to vector<48x128xf32>
    %60 = arith.maximumf %58, %59 : vector<48x128xf32>
    %61 = arith.truncf %60 : vector<48x128xf32> to vector<48x128xbf16>
    %c0_58 = arith.constant 0 : index
    %c0_59 = arith.constant 0 : index
    %c0_60 = arith.constant 0 : index
    %62 = vector.load %arg5[%c0_58, %c0_59, %c0_60] : memref<1x48x128xbf16, #tpu.memory_space<vmem>>, vector<1x48x128xbf16>
    %63 = vector.shape_cast %62 : vector<1x48x128xbf16> to vector<48x128xbf16>
    %64 = vector.shape_cast %61 : vector<48x128xbf16> to vector<1x48x128xbf16>
    tpu.vector_store %arg5[%c0_58, %c0_59, %c0_60], %64 {strides = array<i32>} : memref<1x48x128xbf16, #tpu.memory_space<vmem>>, vector<1x48x128xbf16>,
    return
  }
  func.func @transform_0(%arg0: i32, %arg1: i32) -> (i32, i32, i32) {
    %c0_i32 = arith.constant 0 : i32
    %c0_i32_0 = arith.constant 0 : i32
    return %arg0, %arg1, %c0_i32 : i32, i32, i32
  }
  func.func @transform_1(%arg0: i32, %arg1: i32) -> (i32, i32, i32) {
    %c0_i32 = arith.constant 0 : i32
    %c0_i32_0 = arith.constant 0 : i32
    %c0_i32_1 = arith.constant 0 : i32
    %c0_i32_2 = arith.constant 0 : i32
    return %c0_i32, %c0_i32_0, %c0_i32_1 : i32, i32, i32
  }
  func.func @transform_2(%arg0: i32, %arg1: i32) -> (i32, i32) {
    %c0_i32 = arith.constant 0 : i32
    %c0_i32_0 = arith.constant 0 : i32
    %c0_i32_1 = arith.constant 0 : i32
    return %c0_i32, %c0_i32_0 : i32, i32
  }
  func.func @transform_3(%arg0: i32, %arg1: i32) -> (i32, i32, i32) {
    %c0_i32 = arith.constant 0 : i32
    %c0_i32_0 = arith.constant 0 : i32
    return %arg0, %arg1, %c0_i32 : i32, i32, i32
  }
}

</mosaic_0001>

<llo_original>
// kernel: fwd.4
$region0: #{fwd.4}
  #allocation0 [shape = 'u32[]', space=smem, size = 0x4, offset = 0x4, fixed_abs, tag = 'smem constant byte address 0x4 - core index']
  #allocation1 [shape = 'u32[144,128]{1,0:T(1,128)}', space=vmem, size = 0x12000, scoped, tag = 'internal scratch']
  #allocation2 [shape = 'bf16[82,16]{1,0:T(8,128)(2,1)}', space=vmem, size = 0x5800, scoped, tag = 'scratch operand']
  #allocation3 [shape = 'bf16[9,16]{1,0:T(8,128)(2,1)}', space=vmem, size = 0x1000, scoped, tag = 'scratch operand']
  %s0 = inlined_call_operand.vmem [shape: bf16[2,144,16], index: 0, kind: input, shape index: {}]
  %s1 = inlined_call_operand.vmem [shape: bf16[4,16,128], index: 1, kind: input, shape index: {}]
  %s2 = inlined_call_operand.vmem [shape: f32[1,128], index: 2, kind: input, shape index: {}]
  %s3 = inlined_call_operand.vmem [shape: bf16[2,144,128], index: 3, kind: output, shape index: {}]
  %s4 = sld [smem:[#allocation0]]
  $region49: #{fwd.4} parent=0
    _
  %s6 = ssub.s32 1, %s4
  %s7 = scalar_select 0, %s6, %s4
  loop: start=0, step=1, limit=6
  $region2: #{fwd.4} parent=0 // loop_pre_header
    _
  $region3: #{fwd.4} parent=0 // loop_header
    %s9 = sphi 0, %s13
    %p10 = scmp.ge.s32.totalorder %s9, 6
    %s16 = sphi 0, %s28
    %s17 = sphi 0, %s24
    %s18 = sphi 0, %s16
    %s19 = sphi 0, %s17
    %s20 = sphi 0, %s18
    %s21 = sphi 0, %s19
    %s33 = sphi 0, %s35
    %s36 = sphi 0, %s33
    %s37 = sphi 0, %s36
    %s53 = sphi 0, %s37
    %s57 = sphi 0, %s57
    %s59 = sphi 0, %s57
    %s60 = sphi 0, %s59
    %s74 = sphi 0, %s60
    %s78 = sphi 0, %s78
    %s80 = sphi 0, %s78
    %s81 = sphi 0, %s80
    %s95 = sphi 0, %s81
    %s103 = sphi 0, %s105
    %s106 = sphi 0, %s103
    %s107 = sphi 0, %s106
    %s123 = sphi 0, %s107
  $region4: #{fwd.4} parent=0 // loop_header_branch
    %12 = sbr.rel (%p10) target = $region8
  $region5: #{fwd.4} parent=0 // loop_body
    %s14 = ssub.s32 %s9, 1
    %s15 = ssub.s32 %s9, 2
    %s22 = sadd.s32 1, %s17
    %p23 = scmp.ge.s32.totalorder %s22, 2
    %s24 = scalar_select %p23, 0, %s22
    %s25 = sadd.s32 1, %s16
    %s26 = scalar_select %p23, %s25, %s16
    %p27 = scmp.ge.s32.totalorder %s26, 2
    %s28 = scalar_select %p27, 0, %s26
    %s29 = ssub.s32 %s16, %s28
    %s30 = ssub.s32 %s17, %s24
    %s31 = sor.u32 %s29, %s30
    %p32 = scmp.eq.s32.totalorder %s31, 0
    %s34 = sadd.s32 %s33, 1
    %s35 = scalar_select %p32, %s33, %s34
    %p38 = pneg %p32
    %p39 = scmp.eq.s32.totalorder %s9, 3
    %p40 = por %p38, %p39
    %p41 = scmp.ne.s32.totalorder %s33, %s36
    %p42 = scmp.eq.s32.totalorder %s9, 0
    %p43 = por %p41, %p42
    %p44 = scmp.ne.s32.totalorder %s33, %s36
    %p45 = scmp.eq.s32.totalorder %s14, 3
    %p46 = por %p44, %p45
    %p47 = scmp.ne.s32.totalorder %s36, %s37
    %p48 = scmp.eq.s32.totalorder %s14, 0
    %p49 = por %p47, %p48
    %p50 = scmp.ne.s32.totalorder %s36, %s37
    %p51 = scmp.eq.s32.totalorder %s15, 3
    %p52 = por %p50, %p51
    %p54 = scmp.ne.s32.totalorder %s37, %s53
    %p55 = scmp.eq.s32.totalorder %s15, 0
    %p56 = por %p54, %p55
    %s58 = sadd.s32 %s57, 1
    %p61 = scmp.eq.s32.totalorder %s9, 3
    %p62 = scmp.ne.s32.totalorder %s57, %s59
    %p63 = scmp.eq.s32.totalorder %s9, 0
    %p64 = por %p62, %p63
    %p65 = scmp.ne.s32.totalorder %s57, %s59
    %p66 = scmp.eq.s32.totalorder %s14, 3
    %p67 = por %p65, %p66
    %p68 = scmp.ne.s32.totalorder %s59, %s60
    %p69 = scmp.eq.s32.totalorder %s14, 0
    %p70 = por %p68, %p69
    %p71 = scmp.ne.s32.totalorder %s59, %s60
    %p72 = scmp.eq.s32.totalorder %s15, 3
    %p73 = por %p71, %p72
    %p75 = scmp.ne.s32.totalorder %s60, %s74
    %p76 = scmp.eq.s32.totalorder %s15, 0
    %p77 = por %p75, %p76
    %s79 = sadd.s32 %s78, 1
    %p82 = scmp.eq.s32.totalorder %s9, 3
    %p83 = scmp.ne.s32.totalorder %s78, %s80
    %p84 = scmp.eq.s32.totalorder %s9, 0
    %p85 = por %p83, %p84
    %p86 = scmp.ne.s32.totalorder %s78, %s80
    %p87 = scmp.eq.s32.totalorder %s14, 3
    %p88 = por %p86, %p87
    %p89 = scmp.ne.s32.totalorder %s80, %s81
    %p90 = scmp.eq.s32.totalorder %s14, 0
    %p91 = por %p89, %p90
    %p92 = scmp.ne.s32.totalorder %s80, %s81
    %p93 = scmp.eq.s32.totalorder %s15, 3
    %p94 = por %p92, %p93
    %p96 = scmp.ne.s32.totalorder %s81, %s95
    %p97 = scmp.eq.s32.totalorder %s15, 0
    %p98 = por %p96, %p97
    %s99 = ssub.s32 %s16, %s28
    %s100 = ssub.s32 %s17, %s24
    %s101 = sor.u32 %s99, %s100
    %p102 = scmp.eq.s32.totalorder %s101, 0
    %s104 = sadd.s32 %s103, 1
    %s105 = scalar_select %p102, %s103, %s104
    %p108 = pneg %p102
    %p109 = scmp.eq.s32.totalorder %s9, 3
    %p110 = por %p108, %p109
    %p111 = scmp.ne.s32.totalorder %s103, %s106
    %p112 = scmp.eq.s32.totalorder %s9, 0
    %p113 = por %p111, %p112
    %p114 = scmp.ne.s32.totalorder %s103, %s106
    %p115 = scmp.eq.s32.totalorder %s14, 3
    %p116 = por %p114, %p115
    %p117 = scmp.ne.s32.totalorder %s106, %s107
    %p118 = scmp.eq.s32.totalorder %s14, 0
    %p119 = por %p117, %p118
    %p120 = scmp.ne.s32.totalorder %s106, %s107
    %p121 = scmp.eq.s32.totalorder %s15, 3
    %p122 = por %p120, %p121
    %p124 = scmp.ne.s32.totalorder %s107, %s123
    %p125 = scmp.eq.s32.totalorder %s15, 0
    %p126 = por %p124, %p125
    %p127 = scmp.le.s32.totalorder 1, %s9
    %p128 = scmp.lt.s32.totalorder %s9, 5
    %p129 = pnand %p127, %p128
    %p130 = pneg %p129
    // Predicated region
    $region9: #{fwd.4} parent=5 // pred_check
      _
    $region10: #{fwd.4} parent=5 // pred_check_branch
      %132 = sbr.rel (%p129) target = $region12
    $region11: #{fwd.4} parent=5 // pred_region
      %s133 = ssub.s32 %s9, 1
      // Predicated region
      $region13: #{fwd.4} parent=11 // pred_check
        %p134 = pneg %p70
      $region14: #{fwd.4} parent=11 // pred_check_branch
        %136 = sbr.rel (%p134) target = $region16
      $region15: #{fwd.4} parent=11 // pred_region
        _
      $region16: #{fwd.4} parent=11 // pred_fallthru
        _
      // Predicated region
      $region17: #{fwd.4} parent=11 // pred_check
        %p137 = pneg %p91
      $region18: #{fwd.4} parent=11 // pred_check_branch
        %139 = sbr.rel (%p137) target = $region20
      $region19: #{fwd.4} parent=11 // pred_region
        _
      $region20: #{fwd.4} parent=11 // pred_fallthru
        _
    $region12: #{fwd.4} parent=5 // pred_fallthru
      _
    %p140 = scmp.lt.s32.totalorder %s9, 4
    // Predicated region
    $region21: #{fwd.4} parent=5 // pred_check
      %p141 = pneg %p140
    $region22: #{fwd.4} parent=5 // pred_check_branch
      %143 = sbr.rel (%p141) target = $region24
    $region23: #{fwd.4} parent=5 // pred_region
      // Predicated region
      $region25: #{fwd.4} parent=23 // pred_check
        %p144 = pneg %p43
      $region26: #{fwd.4} parent=23 // pred_check_branch
        %146 = sbr.rel (%p144) target = $region28
      $region27: #{fwd.4} parent=23 // pred_region
        %s147 = smul.u32 9, %s17
        %p148 = scmp.lt.s32.totalorder %s16, 1
        %s149 = scalar_select %p148, %s16, 1
        %p150 = scmp.lt.s32.totalorder %s147, 17
        %s151 = scalar_select %p150, %s147, 17
        %s152 = smul.addr %s149, 18
        %s153 = sadd.s32 %s151, %s152
        %s154 = smul.addr %s153, 4
        %s155 = scalar_lea.vmem %s0, %s154
        %s156 = smul.u32 9, %s17
      $region28: #{fwd.4} parent=23 // pred_fallthru
        _
    $region24: #{fwd.4} parent=5 // pred_fallthru
      _
    %p157 = scmp.le.s32.totalorder 1, %s9
    %p158 = scmp.lt.s32.totalorder %s9, 5
    %p159 = pnand %p157, %p158
    %p160 = pneg %p159
    // Predicated region
    $region29: #{fwd.4} parent=5 // pred_check
      _
    $region30: #{fwd.4} parent=5 // pred_check_branch
      %162 = sbr.rel (%p159) target = $region32
    $region31: #{fwd.4} parent=5 // pred_region
      %s163 = ssub.s32 %s9, 1
      %s164 = smul.u32 9, %s19
      %p165 = scmp.lt.s32.totalorder %s18, 1
      %s166 = scalar_select %p165, %s18, 1
      %p167 = scmp.lt.s32.totalorder %s164, 17
      %s168 = scalar_select %p167, %s164, 17
      %s169 = smul.addr %s166, 18
      %s170 = sadd.s32 %s168, %s169
      %s171 = smul.addr %s170, 4
      %s172 = scalar_lea.vmem %s0, %s171
      %p173 = pneg %p49
      %p174 = pneg %p46
      %p175 = pneg %p70
      %p176 = pneg %p67
      %p177 = pneg %p91
      %p178 = pneg %p88
      %p179 = pneg %p119
      %p180 = pneg %p116
      %s181 = smul.u32 9, %s19
      %p182 = scmp.lt.s32.totalorder %s18, 1
      %s183 = scalar_select %p182, %s18, 1
      %p184 = scmp.lt.s32.totalorder %s181, 17
      %s185 = scalar_select %p184, %s181, 17
      %s186 = smul.addr %s183, 18
      %s187 = sadd.s32 %s185, %s186
      %s188 = smul.addr %s187, 4
      %s189 = scalar_lea.vmem %s3, %s188
      %s190 = smul.u32 9, %s19
      %p191 = scmp.lt.s32.totalorder %s18, 1
      %s192 = scalar_select %p191, %s18, 1
      %p193 = scmp.lt.s32.totalorder %s190, 17
      %s194 = scalar_select %p193, %s190, 17
      %s195 = smul.addr %s192, 18
      %s196 = sadd.s32 %s194, %s195
      %s197 = smul.addr %s196, 4
      %s198 = scalar_lea.vmem %s0, %s197
      %s199 = smul.u32 9, %s19
      %s200 = smul.u32 9, %s19
      %p201 = scmp.lt.s32.totalorder %s18, 1
      %s202 = scalar_select %p201, %s18, 1
      %p203 = scmp.lt.s32.totalorder %s200, 17
      %s204 = scalar_select %p203, %s200, 17
      %s205 = smul.addr %s202, 18
      %s206 = sadd.s32 %s204, %s205
      %s207 = smul.addr %s206, 4
      %s208 = scalar_lea.vmem %s3, %s207
      %s209 = smul.u32 9, %s19
      %p211 = scmp.eq.s32.totalorder %s19, 0
      // Predicated region
      $region33: #{fwd.4} parent=31 // pred_check
        %p212 = pneg %p211
      $region34: #{fwd.4} parent=31 // pred_check_branch
        %214 = sbr.rel (%p212) target = $region36
      $region35: #{fwd.4} parent=31 // pred_region
        %vm215 = vcmask 125952
        %216 = vst.msk [vmem:[#allocation2] sm:$0xf] %vm215, 0
        %217 = vst.msk [vmem:[#allocation2 + $0x4] sm:$0xf] %vm215, 0
        %218 = vst.msk [vmem:[#allocation2 + $0x8] sm:$0xf] %vm215, 0
        %219 = vst.msk [vmem:[#allocation2 + $0xc] sm:$0xf] %vm215, 0
        %220 = vst.msk [vmem:[#allocation2 + $0x10] sm:$0xf] %vm215, 0
        %221 = vst.msk [vmem:[#allocation2 + $0x14] sm:$0xf] %vm215, 0
        %222 = vst.msk [vmem:[#allocation2 + $0x18] sm:$0xf] %vm215, 0
        %223 = vst.msk [vmem:[#allocation2 + $0x1c] sm:$0xf] %vm215, 0
        %224 = vst.msk [vmem:[#allocation2 + $0x20] sm:$0xf] %vm215, 0
        %225 = vst.msk [vmem:[#allocation2 + $0x24] sm:$0xf] %vm215, 0
        %vm226 = vcmask 122880
        %227 = vst.msk [vmem:[#allocation2 + $0x28] sm:$0x1] %vm226, 0
        %228 = vst.msk [vmem:[#allocation3] sm:$0xf] %vm215, 0
        %vm229 = vcmask 122880
        %vm230 = vsmask.f32 256
        %vm231 = vmand %vm229, %vm230
        %v232 = vld [vmem:[#allocation3 + $0x4] sm:$0x1]
        %v233 = vsel %vm231, 0, %v232
        %234 = vst [vmem:[#allocation3 + $0x4] sm:$0x1] %v233
      $region36: #{fwd.4} parent=31 // pred_fallthru
        _
      %v235 = vld [vmem:[#allocation3] sm:$0xf]
      %v236 = vld [vmem:[#allocation3 + $0x4] sm:$0x1]
      %vm237 = vcmask 125952
      %238 = vst.msk [vmem:[#allocation2] sm:$0xf] %vm237, %v235
      %vm239 = vcmask 122880
      %vm240 = vsmask.f32 256
      %vm241 = vmand %vm239, %vm240
      %v242 = vld [vmem:[#allocation2 + $0x4] sm:$0x1]
      %v243 = vsel %vm241, %v236, %v242
      %244 = vst [vmem:[#allocation2 + $0x4] sm:$0x1] %v243
      %v245 = vld [vmem:[%s198] sm:$0xf]
      %v246 = vld [vmem:[%s198 + $0x4] sm:$0xf]
      %v247 = vld [vmem:[%s198 + $0x8] sm:$0xf]
      %v248 = vld [vmem:[%s198 + $0xc] sm:$0xf]
      %v249 = vld [vmem:[%s198 + $0x10] sm:$0xf]
      %v250 = vld [vmem:[%s198 + $0x14] sm:$0xf]
      %v251 = vld [vmem:[%s198 + $0x18] sm:$0xf]
      %v252 = vld [vmem:[%s198 + $0x1c] sm:$0xf]
      %v253 = vld [vmem:[%s198 + $0x20] sm:$0xf]
      %vm254 = vsmask.f32 4368
      %vm255 = vmor %vm240, %vm254
      %v257 = vshrl.u32 %v245, 16
      %v259 = vrot.slane %v257, 7
      %v260 = vshll.u32 %v245, 16
      %v262 = vor.u32 %v259, %v260
      %v263 = vrot.slane %v259, 4
      %v265 = vshrl.u32 %v246, 16
      %v267 = vrot.slane %v265, 7
      %v268 = vshll.u32 %v246, 16
      %v270 = vor.u32 %v267, %v268
      %v271 = vsel %vm255, %v263, %v270
      %v272 = vrot.slane %v267, 4
      %v274 = vshrl.u32 %v247, 16
      %v276 = vrot.slane %v274, 7
      %v277 = vshll.u32 %v247, 16
      %v279 = vor.u32 %v276, %v277
      %v280 = vsel %vm255, %v272, %v279
      %v281 = vrot.slane %v276, 4
      %v283 = vshrl.u32 %v248, 16
      %v285 = vrot.slane %v283, 7
      %v286 = vshll.u32 %v248, 16
      %v288 = vor.u32 %v285, %v286
      %v289 = vsel %vm255, %v281, %v288
      %v290 = vrot.slane %v285, 4
      %v292 = vshrl.u32 %v249, 16
      %v294 = vrot.slane %v292, 7
      %v295 = vshll.u32 %v249, 16
      %v297 = vor.u32 %v294, %v295
      %v298 = vsel %vm255, %v290, %v297
      %v299 = vrot.slane %v294, 4
      %v301 = vshrl.u32 %v250, 16
      %v303 = vrot.slane %v301, 7
      %v304 = vshll.u32 %v250, 16
      %v306 = vor.u32 %v303, %v304
      %v307 = vsel %vm255, %v299, %v306
      %v308 = vrot.slane %v303, 4
      %v310 = vshrl.u32 %v251, 16
      %v312 = vrot.slane %v310, 7
      %v313 = vshll.u32 %v251, 16
      %v315 = vor.u32 %v312, %v313
      %v316 = vsel %vm255, %v308, %v315
      %v317 = vrot.slane %v312, 4
      %v319 = vshrl.u32 %v252, 16
      %v321 = vrot.slane %v319, 7
      %v322 = vshll.u32 %v252, 16
      %v324 = vor.u32 %v321, %v322
      %v325 = vsel %vm255, %v317, %v324
      %v326 = vrot.slane %v321, 4
      %v328 = vshrl.u32 %v253, 16
      %v330 = vrot.slane %v328, 7
      %v331 = vshll.u32 %v253, 16
      %v333 = vor.u32 %v330, %v331
      %v334 = vsel %vm255, %v326, %v333
      %v335 = vrot.slane %v330, 4
      %vm346 = vcmask 125952
      %vm347 = vsmask.f32 7938
      %vm348 = vmand %vm346, %vm347
      %v349 = vld [vmem:[#allocation2 + $0x4] sm:$0xf]
      %v350 = vsel %vm348, %v262, %v349
      %351 = vst [vmem:[#allocation2 + $0x4] sm:$0xf] %v350
      %352 = vst.msk [vmem:[#allocation2 + $0x8] sm:$0xf] %vm237, %v271
      %353 = vst.msk [vmem:[#allocation2 + $0xc] sm:$0xf] %vm237, %v280
      %354 = vst.msk [vmem:[#allocation2 + $0x10] sm:$0xf] %vm237, %v289
      %355 = vst.msk [vmem:[#allocation2 + $0x14] sm:$0xf] %vm237, %v298
      %356 = vst.msk [vmem:[#allocation2 + $0x18] sm:$0xf] %vm237, %v307
      %357 = vst.msk [vmem:[#allocation2 + $0x1c] sm:$0xf] %vm237, %v316
      %358 = vst.msk [vmem:[#allocation2 + $0x20] sm:$0xf] %vm237, %v325
      %359 = vst.msk [vmem:[#allocation2 + $0x24] sm:$0xf] %vm237, %v334
      %v360 = vld [vmem:[#allocation2 + $0x28] sm:$0x1]
      %v361 = vsel %vm241, %v335, %v360
      %362 = vst [vmem:[#allocation2 + $0x28] sm:$0x1] %v361
      %v363 = vld [vmem:[#allocation2 + $0x24] sm:$0xf]
      %v364 = vld [vmem:[#allocation2 + $0x28] sm:$0x1]
      %365 = vst.msk [vmem:[#allocation3] sm:$0xf] %vm237, %v363
      %v366 = vld [vmem:[#allocation3 + $0x4] sm:$0x1]
      %v367 = vsel %vm241, %v364, %v366
      %368 = vst [vmem:[#allocation3 + $0x4] sm:$0x1] %v367
      %v369 = vld [vmem:[#allocation2] sm:$0xf]
      %v370 = vld [vmem:[#allocation2 + $0x4] sm:$0xf]
      %v371 = vld [vmem:[#allocation2 + $0x8] sm:$0xf]
      %v372 = vld [vmem:[#allocation2 + $0xc] sm:$0xf]
      %v373 = vld [vmem:[#allocation2 + $0x10] sm:$0xf]
      %v374 = vld [vmem:[#allocation2 + $0x14] sm:$0xf]
      %v375 = vld [vmem:[#allocation2 + $0x18] sm:$0xf]
      %v376 = vld [vmem:[#allocation2 + $0x1c] sm:$0xf]
      %v377 = vld [vmem:[#allocation2 + $0x20] sm:$0xf]
      %v378 = vld [vmem:[%s1] sm:$0xf]
      %v379 = vld [vmem:[%s1 + $0x4] sm:$0xf]
      %v380 = vld [vmem:[#allocation2 + $0x24] sm:$0x1]
      %s381 = scalar_lea.vmem %s1, 8
      %v382 = vld [vmem:[%s381] sm:$0xf]
      %v383 = vld [vmem:[%s381 + $0x4] sm:$0xf]
      %v394 = vunpack.c.l.b16 %v369
      %v395 = vunpack.c.l.b16 %v370
      %v396 = vunpack.c.l.b16 %v371
      %v397 = vunpack.c.l.b16 %v372
      %v398 = vunpack.c.l.b16 %v373
      %v399 = vunpack.c.l.b16 %v374
      %v400 = vunpack.c.l.b16 %v375
      %v401 = vunpack.c.l.b16 %v376
      %v402 = vunpack.c.l.b16 %v377
      %v403 = vunpack.c.l.b16 %v380
      %v404 = vpack.c.b16 %v395, %v394
      %v405 = vpack.c.b16 %v397, %v396
      %v406 = vpack.c.b16 %v399, %v398
      %v407 = vpack.c.b16 %v401, %v400
      %v408 = vpack.c.b16 %v403, %v402
      %vm409 = vsmask.f32 7424
      %v411 = vshrl.u32 %v404, 16
      %v413 = vshll.u32 %v404, 16
      %v415 = vrot.slane %v413, 1
      %v416 = vor.u32 %v411, %v415
      %v418 = vshll.u32 %v405, 16
      %v420 = vrot.slane %v418, 1
      %v421 = vsel %vm409, %v416, %v420
      %v422 = vshrl.u32 %v405, 16
      %v424 = vor.u32 %v422, %v420
      %v426 = vshll.u32 %v406, 16
      %v428 = vrot.slane %v426, 1
      %v429 = vsel %vm409, %v424, %v428
      %v430 = vshrl.u32 %v406, 16
      %v432 = vor.u32 %v430, %v428
      %v434 = vshll.u32 %v407, 16
      %v436 = vrot.slane %v434, 1
      %v437 = vsel %vm409, %v432, %v436
      %v438 = vshrl.u32 %v407, 16
      %v440 = vor.u32 %v438, %v436
      %v442 = vshll.u32 %v408, 16
      %v444 = vrot.slane %v442, 1
      %v445 = vsel %vm409, %v440, %v444
      %v446 = vshrl.u32 %v408, 16
      %v448 = vor.u32 %v446, %v444
      %v451 = vunpack.c.l.b16 %v382
      %v452 = vunpack.c.l.b16 %v383
      %v453 = vpack.c.b16 %v452, %v451
      %vm455 = vcmask 130048
      %v457 = vsel %vm455, %v421, 0
      %v460 = vsel %vm455, %v429, 0
      %v463 = vsel %vm455, %v437, 0
      %v466 = vsel %vm455, %v445, 0
      %v469 = vsel %vm455, %v448, 0
      %471 = vmatprep.subr.bf16.mxu0 0
      %472 = vmatpush1.bf16.msra.mxu0 %v453
      %473 = vmatprep.subr.bf16.mxu0 0
      %474 = vmatpush1.bf16.msra.mxu0 0
      %475 = vmatprep.subr.bf16.mxu0 0
      %476 = vmatpush1.bf16.msra.mxu0 0
      %477 = vmatprep.subr.bf16.mxu0 0
      %478 = vmatpush1.bf16.msra.mxu0 0
      %479 = vmatprep.subr.bf16.mxu0 0
      %480 = vmatpush1.bf16.msra.mxu0 0
      %481 = vmatprep.subr.bf16.mxu0 0
      %482 = vmatpush1.bf16.msra.mxu0 0
      %483 = vmatprep.subr.bf16.mxu0 0
      %484 = vmatpush1.bf16.msra.mxu0 0
      %485 = vmatprep.subr.bf16.mxu0 0
      %486 = vmatpush1.bf16.msra.mxu0 0
      %487 = vmatprep.subr.bf16.mxu0 0
      %488 = vmatpush1.bf16.msra.mxu0 0
      %489 = vmatprep.subr.bf16.mxu0 0
      %490 = vmatpush1.bf16.msra.mxu0 0
      %491 = vmatprep.subr.bf16.mxu0 0
      %492 = vmatpush1.bf16.msra.mxu0 0
      %493 = vmatprep.subr.bf16.mxu0 0
      %494 = vmatpush1.bf16.msra.mxu0 0
      %495 = vmatprep.subr.bf16.mxu0 0
      %496 = vmatpush1.bf16.msra.mxu0 0
      %497 = vmatprep.subr.bf16.mxu0 0
      %498 = vmatpush1.bf16.msra.mxu0 0
      %499 = vmatprep.subr.bf16.mxu0 0
      %500 = vmatpush1.bf16.msra.mxu0 0
      %501 = vmatprep.subr.bf16.mxu0 0
      %502 = vmatpush1.bf16.msra.mxu0 0
      %503 = vmatprep.mubr.bf16.mxu0 0
      %504 = vmatmul.mubr.bf16.gmra.mrb[0].mxu0 %v457
      %v505 = vpop.f32.mrb[0].mxu0
      %v506 = vadd.f32 0.0, %v505
      %v507 = vpop.f32.mrb[0].mxu0
      %v508 = vpop.f32.mrb[0].mxu0
      %v509 = vadd.f32 0.0, %v508
      %v510 = vpop.f32.mrb[0].mxu0
      %511 = vmatprep.mubr.bf16.mxu0 0
      %512 = vmatmul.mubr.bf16.gmra.mrb[0].mxu0 %v460
      %v513 = vpop.f32.mrb[0].mxu0
      %v514 = vadd.f32 0.0, %v513
      %v515 = vpop.f32.mrb[0].mxu0
      %v516 = vpop.f32.mrb[0].mxu0
      %v517 = vadd.f32 0.0, %v516
      %v518 = vpop.f32.mrb[0].mxu0
      %519 = vmatprep.mubr.bf16.mxu0 0
      %520 = vmatmul.mubr.bf16.gmra.mrb[0].mxu0 %v463
      %v521 = vpop.f32.mrb[0].mxu0
      %v522 = vadd.f32 0.0, %v521
      %v523 = vpop.f32.mrb[0].mxu0
      %v524 = vpop.f32.mrb[0].mxu0
      %v525 = vadd.f32 0.0, %v524
      %v526 = vpop.f32.mrb[0].mxu0
      %527 = vmatprep.mubr.bf16.mxu0 0
      %528 = vmatmul.mubr.bf16.gmra.mrb[0].mxu0 %v466
      %v529 = vpop.f32.mrb[0].mxu0
      %v530 = vadd.f32 0.0, %v529
      %v531 = vpop.f32.mrb[0].mxu0
      %v532 = vpop.f32.mrb[0].mxu0
      %v533 = vadd.f32 0.0, %v532
      %v534 = vpop.f32.mrb[0].mxu0
      %535 = vmatprep.mubr.bf16.mxu0 0
      %536 = vmatmul.mubr.bf16.gmra.mrb[0].mxu0 %v469
      %v537 = vpop.f32.mrb[0].mxu0
      %v538 = vadd.f32 0.0, %v537
      %v539 = vpop.f32.mrb[0].mxu0
      %v540 = vpop.f32.mrb[0].mxu0
      %v541 = vpop.f32.mrb[0].mxu0
      %542 = vdwg.mxu0
      %v543 = vpack.c.b16 %v402, %v402
      %v546 = vunpack.c.l.b16 %v378
      %v547 = vunpack.c.l.b16 %v379
      %v548 = vpack.c.b16 %v547, %v546
      %v550 = vsel %vm455, %v404, 0
      %v552 = vsel %vm455, %v405, 0
      %v554 = vsel %vm455, %v406, 0
      %v556 = vsel %vm455, %v407, 0
      %v559 = vsel %vm455, %v543, 0
      %561 = vmatprep.subr.bf16.mxu0 0
      %562 = vmatpush1.bf16.msra.mxu0 %v548
      %563 = vmatprep.subr.bf16.mxu0 0
      %564 = vmatpush1.bf16.msra.mxu0 0
      %565 = vmatprep.subr.bf16.mxu0 0
      %566 = vmatpush1.bf16.msra.mxu0 0
      %567 = vmatprep.subr.bf16.mxu0 0
      %568 = vmatpush1.bf16.msra.mxu0 0
      %569 = vmatprep.subr.bf16.mxu0 0
      %570 = vmatpush1.bf16.msra.mxu0 0
      %571 = vmatprep.subr.bf16.mxu0 0
      %572 = vmatpush1.bf16.msra.mxu0 0
      %573 = vmatprep.subr.bf16.mxu0 0
      %574 = vmatpush1.bf16.msra.mxu0 0
      %575 = vmatprep.subr.bf16.mxu0 0
      %576 = vmatpush1.bf16.msra.mxu0 0
      %577 = vmatprep.subr.bf16.mxu0 0
      %578 = vmatpush1.bf16.msra.mxu0 0
      %579 = vmatprep.subr.bf16.mxu0 0
      %580 = vmatpush1.bf16.msra.mxu0 0
      %581 = vmatprep.subr.bf16.mxu0 0
      %582 = vmatpush1.bf16.msra.mxu0 0
      %583 = vmatprep.subr.bf16.mxu0 0
      %584 = vmatpush1.bf16.msra.mxu0 0
      %585 = vmatprep.subr.bf16.mxu0 0
      %586 = vmatpush1.bf16.msra.mxu0 0
      %587 = vmatprep.subr.bf16.mxu0 0
      %588 = vmatpush1.bf16.msra.mxu0 0
      %589 = vmatprep.subr.bf16.mxu0 0
      %590 = vmatpush1.bf16.msra.mxu0 0
      %591 = vmatprep.subr.bf16.mxu0 0
      %592 = vmatpush1.bf16.msra.mxu0 0
      %593 = vmatprep.mubr.bf16.mxu0 0
      %594 = vmatmul.mubr.bf16.gmra.mrb[0].mxu0 %v550
      %v595 = vpop.f32.mrb[0].mxu0
      %v596 = vadd.f32 %v506, %v595
      %v597 = vpop.f32.mrb[0].mxu0
      %v598 = vpop.f32.mrb[0].mxu0
      %v599 = vadd.f32 %v509, %v598
      %v600 = vpop.f32.mrb[0].mxu0
      %601 = vmatprep.mubr.bf16.mxu0 0
      %602 = vmatmul.mubr.bf16.gmra.mrb[0].mxu0 %v552
      %v603 = vpop.f32.mrb[0].mxu0
      %v604 = vadd.f32 %v514, %v603
      %v605 = vpop.f32.mrb[0].mxu0
      %v606 = vpop.f32.mrb[0].mxu0
      %v607 = vadd.f32 %v517, %v606
      %v608 = vpop.f32.mrb[0].mxu0
      %609 = vmatprep.mubr.bf16.mxu0 0
      %610 = vmatmul.mubr.bf16.gmra.mrb[0].mxu0 %v554
      %v611 = vpop.f32.mrb[0].mxu0
      %v612 = vadd.f32 %v522, %v611
      %v613 = vpop.f32.mrb[0].mxu0
      %v614 = vpop.f32.mrb[0].mxu0
      %v615 = vadd.f32 %v525, %v614
      %v616 = vpop.f32.mrb[0].mxu0
      %617 = vmatprep.mubr.bf16.mxu0 0
      %618 = vmatmul.mubr.bf16.gmra.mrb[0].mxu0 %v556
      %v619 = vpop.f32.mrb[0].mxu0
      %v620 = vadd.f32 %v530, %v619
      %v621 = vpop.f32.mrb[0].mxu0
      %v622 = vpop.f32.mrb[0].mxu0
      %v623 = vadd.f32 %v533, %v622
      %v624 = vpop.f32.mrb[0].mxu0
      %625 = vmatprep.mubr.bf16.mxu0 0
      %626 = vmatmul.mubr.bf16.gmra.mrb[0].mxu0 %v559
      %v627 = vpop.f32.mrb[0].mxu0
      %v628 = vadd.f32 %v538, %v627
      %v629 = vpop.f32.mrb[0].mxu0
      %v630 = vpop.f32.mrb[0].mxu0
      %v631 = vpop.f32.mrb[0].mxu0
      %632 = vdwg.mxu0
      %v633 = vld [vmem:[#allocation2 + $0x4] sm:$0xf]
      %v634 = vld [vmem:[#allocation2 + $0x8] sm:$0xf]
      %v635 = vld [vmem:[#allocation2 + $0xc] sm:$0xf]
      %v636 = vld [vmem:[#allocation2 + $0x10] sm:$0xf]
      %v637 = vld [vmem:[#allocation2 + $0x14] sm:$0xf]
      %v638 = vld [vmem:[#allocation2 + $0x18] sm:$0xf]
      %v639 = vld [vmem:[#allocation2 + $0x1c] sm:$0xf]
      %v640 = vld [vmem:[#allocation2 + $0x20] sm:$0xf]
      %v641 = vld [vmem:[#allocation2 + $0x24] sm:$0xf]
      %v642 = vld [vmem:[#allocation2 + $0x28] sm:$0x1]
      %s643 = scalar_lea.vmem %s1, 16
      %v644 = vld [vmem:[%s643] sm:$0xf]
      %v645 = vld [vmem:[%s643 + $0x4] sm:$0xf]
      %v656 = vunpack.c.l.b16 %v633
      %v657 = vunpack.c.l.b16 %v634
      %v658 = vunpack.c.l.b16 %v635
      %v659 = vunpack.c.l.b16 %v636
      %v660 = vunpack.c.l.b16 %v637
      %v661 = vunpack.c.l.b16 %v638
      %v662 = vunpack.c.l.b16 %v639
      %v663 = vunpack.c.l.b16 %v640
      %v664 = vunpack.c.l.b16 %v641
      %v665 = vunpack.c.l.b16 %v642
      %v666 = vpack.c.b16 %v657, %v656
      %v667 = vpack.c.b16 %v659, %v658
      %v668 = vpack.c.b16 %v661, %v660
      %v669 = vpack.c.b16 %v663, %v662
      %v670 = vpack.c.b16 %v665, %v664
      %v672 = vshrl.u32 %v666, 16
      %v674 = vshll.u32 %v666, 16
      %v676 = vrot.slane %v674, 1
      %v677 = vor.u32 %v672, %v676
      %v679 = vshll.u32 %v667, 16
      %v681 = vrot.slane %v679, 1
      %v682 = vsel %vm409, %v677, %v681
      %v683 = vshrl.u32 %v667, 16
      %v685 = vor.u32 %v683, %v681
      %v687 = vshll.u32 %v668, 16
      %v689 = vrot.slane %v687, 1
      %v690 = vsel %vm409, %v685, %v689
      %v691 = vshrl.u32 %v668, 16
      %v693 = vor.u32 %v691, %v689
      %v695 = vshll.u32 %v669, 16
      %v697 = vrot.slane %v695, 1
      %v698 = vsel %vm409, %v693, %v697
      %v699 = vshrl.u32 %v669, 16
      %v701 = vor.u32 %v699, %v697
      %v703 = vshll.u32 %v670, 16
      %v705 = vrot.slane %v703, 1
      %v706 = vsel %vm409, %v701, %v705
      %v707 = vshrl.u32 %v670, 16
      %v709 = vor.u32 %v707, %v705
      %v712 = vunpack.c.l.b16 %v644
      %v713 = vunpack.c.l.b16 %v645
      %v714 = vpack.c.b16 %v713, %v712
      %v717 = vsel %vm455, %v682, 0
      %v720 = vsel %vm455, %v690, 0
      %v723 = vsel %vm455, %v698, 0
      %v726 = vsel %vm455, %v706, 0
      %v729 = vsel %vm455, %v709, 0
      %731 = vmatprep.subr.bf16.mxu0 0
      %732 = vmatpush1.bf16.msra.mxu0 %v714
      %733 = vmatprep.subr.bf16.mxu0 0
      %734 = vmatpush1.bf16.msra.mxu0 0
      %735 = vmatprep.subr.bf16.mxu0 0
      %736 = vmatpush1.bf16.msra.mxu0 0
      %737 = vmatprep.subr.bf16.mxu0 0
      %738 = vmatpush1.bf16.msra.mxu0 0
      %739 = vmatprep.subr.bf16.mxu0 0
      %740 = vmatpush1.bf16.msra.mxu0 0
      %741 = vmatprep.subr.bf16.mxu0 0
      %742 = vmatpush1.bf16.msra.mxu0 0
      %743 = vmatprep.subr.bf16.mxu0 0
      %744 = vmatpush1.bf16.msra.mxu0 0
      %745 = vmatprep.subr.bf16.mxu0 0
      %746 = vmatpush1.bf16.msra.mxu0 0
      %747 = vmatprep.subr.bf16.mxu0 0
      %748 = vmatpush1.bf16.msra.mxu0 0
      %749 = vmatprep.subr.bf16.mxu0 0
      %750 = vmatpush1.bf16.msra.mxu0 0
      %751 = vmatprep.subr.bf16.mxu0 0
      %752 = vmatpush1.bf16.msra.mxu0 0
      %753 = vmatprep.subr.bf16.mxu0 0
      %754 = vmatpush1.bf16.msra.mxu0 0
      %755 = vmatprep.subr.bf16.mxu0 0
      %756 = vmatpush1.bf16.msra.mxu0 0
      %757 = vmatprep.subr.bf16.mxu0 0
      %758 = vmatpush1.bf16.msra.mxu0 0
      %759 = vmatprep.subr.bf16.mxu0 0
      %760 = vmatpush1.bf16.msra.mxu0 0
      %761 = vmatprep.subr.bf16.mxu0 0
      %762 = vmatpush1.bf16.msra.mxu0 0
      %763 = vmatprep.mubr.bf16.mxu0 0
      %764 = vmatmul.mubr.bf16.gmra.mrb[0].mxu0 %v717
      %v765 = vpop.f32.mrb[0].mxu0
      %v766 = vadd.f32 0.0, %v765
      %v767 = vpop.f32.mrb[0].mxu0
      %v768 = vpop.f32.mrb[0].mxu0
      %v769 = vadd.f32 0.0, %v768
      %v770 = vpop.f32.mrb[0].mxu0
      %771 = vmatprep.mubr.bf16.mxu0 0
      %772 = vmatmul.mubr.bf16.gmra.mrb[0].mxu0 %v720
      %v773 = vpop.f32.mrb[0].mxu0
      %v774 = vadd.f32 0.0, %v773
      %v775 = vpop.f32.mrb[0].mxu0
      %v776 = vpop.f32.mrb[0].mxu0
      %v777 = vadd.f32 0.0, %v776
      %v778 = vpop.f32.mrb[0].mxu0
      %779 = vmatprep.mubr.bf16.mxu0 0
      %780 = vmatmul.mubr.bf16.gmra.mrb[0].mxu0 %v723
      %v781 = vpop.f32.mrb[0].mxu0
      %v782 = vadd.f32 0.0, %v781
      %v783 = vpop.f32.mrb[0].mxu0
      %v784 = vpop.f32.mrb[0].mxu0
      %v785 = vadd.f32 0.0, %v784
      %v786 = vpop.f32.mrb[0].mxu0
      %787 = vmatprep.mubr.bf16.mxu0 0
      %788 = vmatmul.mubr.bf16.gmra.mrb[0].mxu0 %v726
      %v789 = vpop.f32.mrb[0].mxu0
      %v790 = vadd.f32 0.0, %v789
      %v791 = vpop.f32.mrb[0].mxu0
      %v792 = vpop.f32.mrb[0].mxu0
      %v793 = vadd.f32 0.0, %v792
      %v794 = vpop.f32.mrb[0].mxu0
      %795 = vmatprep.mubr.bf16.mxu0 0
      %796 = vmatmul.mubr.bf16.gmra.mrb[0].mxu0 %v729
      %v797 = vpop.f32.mrb[0].mxu0
      %v798 = vadd.f32 0.0, %v797
      %v799 = vpop.f32.mrb[0].mxu0
      %v800 = vpop.f32.mrb[0].mxu0
      %v801 = vpop.f32.mrb[0].mxu0
      %802 = vdwg.mxu0
      %v803 = vadd.f32 %v596, %v766
      %v804 = vadd.f32 %v599, %v769
      %v805 = vadd.f32 %v604, %v774
      %v806 = vadd.f32 %v607, %v777
      %v807 = vadd.f32 %v612, %v782
      %v808 = vadd.f32 %v615, %v785
      %v809 = vadd.f32 %v620, %v790
      %v810 = vadd.f32 %v623, %v793
      %v811 = vadd.f32 %v628, %v798
      %v812 = vld [vmem:[#allocation2 + $0x4] sm:$0xe]
      %s813 = scalar_lea.vmem %s1, 24
      %v814 = vld [vmem:[%s813] sm:$0xf]
      %v815 = vld [vmem:[%s813 + $0x4] sm:$0xf]
      %v817 = vunpack.c.l.b16 %v812
      %v818 = vpack.c.b16 %v657, %v817
      %vm819 = vcmask 1046528
      %v820 = vrot.slane %v818, 1
      %v821 = vrot.slane %v667, 1
      %v822 = vsel %vm819, %v820, %v821
      %v823 = vrot.slane %v668, 1
      %v824 = vsel %vm819, %v821, %v823
      %v825 = vrot.slane %v669, 1
      %v826 = vsel %vm819, %v823, %v825
      %v827 = vrot.slane %v670, 1
      %v828 = vsel %vm819, %v825, %v827
      %v831 = vunpack.c.l.b16 %v814
      %v832 = vunpack.c.l.b16 %v815
      %v833 = vpack.c.b16 %v832, %v831
      %v836 = vsel %vm455, %v822, 0
      %v839 = vsel %vm455, %v824, 0
      %v842 = vsel %vm455, %v826, 0
      %v845 = vsel %vm455, %v828, 0
      %v848 = vsel %vm455, %v827, 0
      %850 = vmatprep.subr.bf16.mxu0 0
      %851 = vmatpush1.bf16.msra.mxu0 %v833
      %852 = vmatprep.subr.bf16.mxu0 0
      %853 = vmatpush1.bf16.msra.mxu0 0
      %854 = vmatprep.subr.bf16.mxu0 0
      %855 = vmatpush1.bf16.msra.mxu0 0
      %856 = vmatprep.subr.bf16.mxu0 0
      %857 = vmatpush1.bf16.msra.mxu0 0
      %858 = vmatprep.subr.bf16.mxu0 0
      %859 = vmatpush1.bf16.msra.mxu0 0
      %860 = vmatprep.subr.bf16.mxu0 0
      %861 = vmatpush1.bf16.msra.mxu0 0
      %862 = vmatprep.subr.bf16.mxu0 0
      %863 = vmatpush1.bf16.msra.mxu0 0
      %864 = vmatprep.subr.bf16.mxu0 0
      %865 = vmatpush1.bf16.msra.mxu0 0
      %866 = vmatprep.subr.bf16.mxu0 0
      %867 = vmatpush1.bf16.msra.mxu0 0
      %868 = vmatprep.subr.bf16.mxu0 0
      %869 = vmatpush1.bf16.msra.mxu0 0
      %870 = vmatprep.subr.bf16.mxu0 0
      %871 = vmatpush1.bf16.msra.mxu0 0
      %872 = vmatprep.subr.bf16.mxu0 0
      %873 = vmatpush1.bf16.msra.mxu0 0
      %874 = vmatprep.subr.bf16.mxu0 0
      %875 = vmatpush1.bf16.msra.mxu0 0
      %876 = vmatprep.subr.bf16.mxu0 0
      %877 = vmatpush1.bf16.msra.mxu0 0
      %878 = vmatprep.subr.bf16.mxu0 0
      %879 = vmatpush1.bf16.msra.mxu0 0
      %880 = vmatprep.subr.bf16.mxu0 0
      %881 = vmatpush1.bf16.msra.mxu0 0
      %882 = vmatprep.mubr.bf16.mxu0 0
      %883 = vmatmul.mubr.bf16.gmra.mrb[0].mxu0 %v836
      %v884 = vpop.f32.mrb[0].mxu0
      %v885 = vadd.f32 0.0, %v884
      %v886 = vpop.f32.mrb[0].mxu0
      %v887 = vpop.f32.mrb[0].mxu0
      %v888 = vadd.f32 0.0, %v887
      %v889 = vpop.f32.mrb[0].mxu0
      %890 = vmatprep.mubr.bf16.mxu0 0
      %891 = vmatmul.mubr.bf16.gmra.mrb[0].mxu0 %v839
      %v892 = vpop.f32.mrb[0].mxu0
      %v893 = vadd.f32 0.0, %v892
      %v894 = vpop.f32.mrb[0].mxu0
      %v895 = vpop.f32.mrb[0].mxu0
      %v896 = vadd.f32 0.0, %v895
      %v897 = vpop.f32.mrb[0].mxu0
      %898 = vmatprep.mubr.bf16.mxu0 0
      %899 = vmatmul.mubr.bf16.gmra.mrb[0].mxu0 %v842
      %v900 = vpop.f32.mrb[0].mxu0
      %v901 = vadd.f32 0.0, %v900
      %v902 = vpop.f32.mrb[0].mxu0
      %v903 = vpop.f32.mrb[0].mxu0
      %v904 = vadd.f32 0.0, %v903
      %v905 = vpop.f32.mrb[0].mxu0
      %906 = vmatprep.mubr.bf16.mxu0 0
      %907 = vmatmul.mubr.bf16.gmra.mrb[0].mxu0 %v845
      %v908 = vpop.f32.mrb[0].mxu0
      %v909 = vadd.f32 0.0, %v908
      %v910 = vpop.f32.mrb[0].mxu0
      %v911 = vpop.f32.mrb[0].mxu0
      %v912 = vadd.f32 0.0, %v911
      %v913 = vpop.f32.mrb[0].mxu0
      %914 = vmatprep.mubr.bf16.mxu0 0
      %915 = vmatmul.mubr.bf16.gmra.mrb[0].mxu0 %v848
      %v916 = vpop.f32.mrb[0].mxu0
      %v917 = vadd.f32 0.0, %v916
      %v918 = vpop.f32.mrb[0].mxu0
      %v919 = vpop.f32.mrb[0].mxu0
      %v920 = vpop.f32.mrb[0].mxu0
      %921 = vdwg.mxu0
      %v922 = vadd.f32 %v803, %v885
      %v923 = vadd.f32 %v804, %v888
      %v924 = vadd.f32 %v805, %v893
      %v925 = vadd.f32 %v806, %v896
      %v926 = vadd.f32 %v807, %v901
      %v927 = vadd.f32 %v808, %v904
      %v928 = vadd.f32 %v809, %v909
      %v929 = vadd.f32 %v810, %v912
      %v930 = vadd.f32 %v811, %v917
      %v931 = vld [vmem:[%s2] sm:$0x1]
      %v933 = vlaneseq
      %v934 = vshrl.u32 %v933, 7
      %v935 = vsub.s32 0, %v934
      %v936 = vrot.slane %v931, %v935
      %v938 = vadd.f32 %v922, %v936
      %v939 = vadd.f32 %v923, %v936
      %v940 = vadd.f32 %v924, %v936
      %v941 = vadd.f32 %v925, %v936
      %v942 = vadd.f32 %v926, %v936
      %v943 = vadd.f32 %v927, %v936
      %v944 = vadd.f32 %v928, %v936
      %v945 = vadd.f32 %v929, %v936
      %v946 = vadd.f32 %v930, %v936
      %v947 = vmax.f32 %v938, 0.0
      %v948 = vmax.f32 %v939, 0.0
      %v949 = vmax.f32 %v940, 0.0
      %v950 = vmax.f32 %v941, 0.0
      %v951 = vmax.f32 %v942, 0.0
      %v952 = vmax.f32 %v943, 0.0
      %v953 = vmax.f32 %v944, 0.0
      %v954 = vmax.f32 %v945, 0.0
      %v955 = vmax.f32 %v946, 0.0
      %v956 = vpack.c.bf16 %v948, %v947
      %v957 = vpack.c.bf16 %v950, %v949
      %v958 = vpack.c.bf16 %v952, %v951
      %v959 = vpack.c.bf16 %v954, %v953
      %v960 = vpack.c.bf16 %v955, %v955
      %v966 = vunpack.c.l.b16 %v956
      %v967 = vunpack.c.h.b16 %v956
      %v968 = vunpack.c.l.b16 %v957
      %v969 = vunpack.c.h.b16 %v957
      %v970 = vunpack.c.l.b16 %v958
      %v971 = vunpack.c.h.b16 %v958
      %v972 = vunpack.c.l.b16 %v959
      %v973 = vunpack.c.h.b16 %v959
      %v974 = vunpack.c.l.b16 %v960
      %v975 = vpack.c.b16 %v966, %v966
      %v976 = vpack.c.b16 %v967, %v967
      %v977 = vpack.c.b16 %v968, %v968
      %v978 = vpack.c.b16 %v969, %v969
      %v979 = vpack.c.b16 %v970, %v970
      %v980 = vpack.c.b16 %v971, %v971
      %v981 = vpack.c.b16 %v972, %v972
      %v982 = vpack.c.b16 %v973, %v973
      %v983 = vpack.c.b16 %v974, %v974
      %993 = vst [vmem:[%s208] sm:$0xf] %v975
      %994 = vst [vmem:[%s208 + $0x4] sm:$0xf] %v976
      %995 = vst [vmem:[%s208 + $0x8] sm:$0xf] %v977
      %996 = vst [vmem:[%s208 + $0xc] sm:$0xf] %v978
      %997 = vst [vmem:[%s208 + $0x10] sm:$0xf] %v979
      %998 = vst [vmem:[%s208 + $0x14] sm:$0xf] %v980
      %999 = vst [vmem:[%s208 + $0x18] sm:$0xf] %v981
      %1000 = vst [vmem:[%s208 + $0x1c] sm:$0xf] %v982
      %1001 = vst [vmem:[%s208 + $0x20] sm:$0xf] %v983
      %s1002 = smul.u32 9, %s19
      %p1003 = scmp.lt.s32.totalorder %s18, 1
      %s1004 = scalar_select %p1003, %s18, 1
      %p1005 = scmp.lt.s32.totalorder %s1002, 17
      %s1006 = scalar_select %p1005, %s1002, 17
      %s1007 = smul.addr %s1004, 18
      %s1008 = sadd.s32 %s1006, %s1007
      %s1009 = smul.addr %s1008, 4
      %s1010 = scalar_lea.vmem %s3, %s1009
      // Predicated region
      $region37: #{fwd.4} parent=31 // pred_check
        %p1011 = pneg %p116
      $region38: #{fwd.4} parent=31 // pred_check_branch
        %1013 = sbr.rel (%p1011) target = $region40
      $region39: #{fwd.4} parent=31 // pred_region
        %s1014 = smul.u32 9, %s19
      $region40: #{fwd.4} parent=31 // pred_fallthru
        _
    $region32: #{fwd.4} parent=5 // pred_fallthru
      _
    %p1015 = scmp.le.s32.totalorder 2, %s9
    // Predicated region
    $region41: #{fwd.4} parent=5 // pred_check
      %p1016 = pneg %p1015
    $region42: #{fwd.4} parent=5 // pred_check_branch
      %1018 = sbr.rel (%p1016) target = $region44
    $region43: #{fwd.4} parent=5 // pred_region
      %s1019 = ssub.s32 %s9, 2
      // Predicated region
      $region45: #{fwd.4} parent=43 // pred_check
        %p1020 = pneg %p122
      $region46: #{fwd.4} parent=43 // pred_check_branch
        %1022 = sbr.rel (%p1020) target = $region48
      $region47: #{fwd.4} parent=43 // pred_region
        %s1023 = smul.u32 9, %s21
        %p1024 = scmp.lt.s32.totalorder %s20, 1
        %s1025 = scalar_select %p1024, %s20, 1
        %p1026 = scmp.lt.s32.totalorder %s1023, 17
        %s1027 = scalar_select %p1026, %s1023, 17
        %s1028 = smul.addr %s1025, 18
        %s1029 = sadd.s32 %s1027, %s1028
        %s1030 = smul.addr %s1029, 4
        %s1031 = scalar_lea.vmem %s3, %s1030
      $region48: #{fwd.4} parent=43 // pred_fallthru
        _
    $region44: #{fwd.4} parent=5 // pred_fallthru
      _
  $region6: #{fwd.4} parent=0 // loop_footer
    %s13 = sadd.s32 1, %s9
  $region7: #{fwd.4} parent=0 // loop_footer_branch
    %8 = sbr.rel target = $region3
  $region8: #{fwd.4} parent=0 // loop_exit
    _

// kernel: fwd.5
$region0: #{fwd.5}
  #allocation0 [shape = 'u32[]', space=smem, size = 0x4, offset = 0x4, fixed_abs, tag = 'smem constant byte address 0x4 - core index']
  #allocation1 [shape = 'u32[144,128]{1,0:T(1,128)}', space=vmem, size = 0x12000, scoped, tag = 'internal scratch']
  #allocation2 [shape = 'bf16[102,8]{1,0:T(8,128)(2,1)}', space=vmem, size = 0x6800, scoped, tag = 'scratch operand']
  #allocation3 [shape = 'bf16[20,8]{1,0:T(8,128)(2,1)}', space=vmem, size = 0x1800, scoped, tag = 'scratch operand']
  %s0 = inlined_call_operand.vmem [shape: bf16[2,160,8], index: 0, kind: input, shape index: {}]
  %s1 = inlined_call_operand.vmem [shape: bf16[9,8,128], index: 1, kind: input, shape index: {}]
  %s2 = inlined_call_operand.vmem [shape: f32[1,128], index: 2, kind: input, shape index: {}]
  %s3 = inlined_call_operand.vmem [shape: bf16[2,160,128], index: 3, kind: output, shape index: {}]
  %s4 = sld [smem:[#allocation0]]
  $region49: #{fwd.5} parent=0
    _
  %s6 = ssub.s32 1, %s4
  %s7 = scalar_select 0, %s6, %s4
  loop: start=0, step=1, limit=6
  $region2: #{fwd.5} parent=0 // loop_pre_header
    _
  $region3: #{fwd.5} parent=0 // loop_header
    %s9 = sphi 0, %s13
    %p10 = scmp.ge.s32.totalorder %s9, 6
    %s16 = sphi 0, %s28
    %s17 = sphi 0, %s24
    %s18 = sphi 0, %s16
    %s19 = sphi 0, %s17
    %s20 = sphi 0, %s18
    %s21 = sphi 0, %s19
    %s33 = sphi 0, %s35
    %s36 = sphi 0, %s33
    %s37 = sphi 0, %s36
    %s53 = sphi 0, %s37
    %s57 = sphi 0, %s57
    %s59 = sphi 0, %s57
    %s60 = sphi 0, %s59
    %s74 = sphi 0, %s60
    %s78 = sphi 0, %s78
    %s80 = sphi 0, %s78
    %s81 = sphi 0, %s80
    %s95 = sphi 0, %s81
    %s103 = sphi 0, %s105
    %s106 = sphi 0, %s103
    %s107 = sphi 0, %s106
    %s123 = sphi 0, %s107
  $region4: #{fwd.5} parent=0 // loop_header_branch
    %12 = sbr.rel (%p10) target = $region8
  $region5: #{fwd.5} parent=0 // loop_body
    %s14 = ssub.s32 %s9, 1
    %s15 = ssub.s32 %s9, 2
    %s22 = sadd.s32 1, %s17
    %p23 = scmp.ge.s32.totalorder %s22, 2
    %s24 = scalar_select %p23, 0, %s22
    %s25 = sadd.s32 1, %s16
    %s26 = scalar_select %p23, %s25, %s16
    %p27 = scmp.ge.s32.totalorder %s26, 2
    %s28 = scalar_select %p27, 0, %s26
    %s29 = ssub.s32 %s16, %s28
    %s30 = ssub.s32 %s17, %s24
    %s31 = sor.u32 %s29, %s30
    %p32 = scmp.eq.s32.totalorder %s31, 0
    %s34 = sadd.s32 %s33, 1
    %s35 = scalar_select %p32, %s33, %s34
    %p38 = pneg %p32
    %p39 = scmp.eq.s32.totalorder %s9, 3
    %p40 = por %p38, %p39
    %p41 = scmp.ne.s32.totalorder %s33, %s36
    %p42 = scmp.eq.s32.totalorder %s9, 0
    %p43 = por %p41, %p42
    %p44 = scmp.ne.s32.totalorder %s33, %s36
    %p45 = scmp.eq.s32.totalorder %s14, 3
    %p46 = por %p44, %p45
    %p47 = scmp.ne.s32.totalorder %s36, %s37
    %p48 = scmp.eq.s32.totalorder %s14, 0
    %p49 = por %p47, %p48
    %p50 = scmp.ne.s32.totalorder %s36, %s37
    %p51 = scmp.eq.s32.totalorder %s15, 3
    %p52 = por %p50, %p51
    %p54 = scmp.ne.s32.totalorder %s37, %s53
    %p55 = scmp.eq.s32.totalorder %s15, 0
    %p56 = por %p54, %p55
    %s58 = sadd.s32 %s57, 1
    %p61 = scmp.eq.s32.totalorder %s9, 3
    %p62 = scmp.ne.s32.totalorder %s57, %s59
    %p63 = scmp.eq.s32.totalorder %s9, 0
    %p64 = por %p62, %p63
    %p65 = scmp.ne.s32.totalorder %s57, %s59
    %p66 = scmp.eq.s32.totalorder %s14, 3
    %p67 = por %p65, %p66
    %p68 = scmp.ne.s32.totalorder %s59, %s60
    %p69 = scmp.eq.s32.totalorder %s14, 0
    %p70 = por %p68, %p69
    %p71 = scmp.ne.s32.totalorder %s59, %s60
    %p72 = scmp.eq.s32.totalorder %s15, 3
    %p73 = por %p71, %p72
    %p75 = scmp.ne.s32.totalorder %s60, %s74
    %p76 = scmp.eq.s32.totalorder %s15, 0
    %p77 = por %p75, %p76
    %s79 = sadd.s32 %s78, 1
    %p82 = scmp.eq.s32.totalorder %s9, 3
    %p83 = scmp.ne.s32.totalorder %s78, %s80
    %p84 = scmp.eq.s32.totalorder %s9, 0
    %p85 = por %p83, %p84
    %p86 = scmp.ne.s32.totalorder %s78, %s80
    %p87 = scmp.eq.s32.totalorder %s14, 3
    %p88 = por %p86, %p87
    %p89 = scmp.ne.s32.totalorder %s80, %s81
    %p90 = scmp.eq.s32.totalorder %s14, 0
    %p91 = por %p89, %p90
    %p92 = scmp.ne.s32.totalorder %s80, %s81
    %p93 = scmp.eq.s32.totalorder %s15, 3
    %p94 = por %p92, %p93
    %p96 = scmp.ne.s32.totalorder %s81, %s95
    %p97 = scmp.eq.s32.totalorder %s15, 0
    %p98 = por %p96, %p97
    %s99 = ssub.s32 %s16, %s28
    %s100 = ssub.s32 %s17, %s24
    %s101 = sor.u32 %s99, %s100
    %p102 = scmp.eq.s32.totalorder %s101, 0
    %s104 = sadd.s32 %s103, 1
    %s105 = scalar_select %p102, %s103, %s104
    %p108 = pneg %p102
    %p109 = scmp.eq.s32.totalorder %s9, 3
    %p110 = por %p108, %p109
    %p111 = scmp.ne.s32.totalorder %s103, %s106
    %p112 = scmp.eq.s32.totalorder %s9, 0
    %p113 = por %p111, %p112
    %p114 = scmp.ne.s32.totalorder %s103, %s106
    %p115 = scmp.eq.s32.totalorder %s14, 3
    %p116 = por %p114, %p115
    %p117 = scmp.ne.s32.totalorder %s106, %s107
    %p118 = scmp.eq.s32.totalorder %s14, 0
    %p119 = por %p117, %p118
    %p120 = scmp.ne.s32.totalorder %s106, %s107
    %p121 = scmp.eq.s32.totalorder %s15, 3
    %p122 = por %p120, %p121
    %p124 = scmp.ne.s32.totalorder %s107, %s123
    %p125 = scmp.eq.s32.totalorder %s15, 0
    %p126 = por %p124, %p125
    %p127 = scmp.le.s32.totalorder 1, %s9
    %p128 = scmp.lt.s32.totalorder %s9, 5
    %p129 = pnand %p127, %p128
    %p130 = pneg %p129
    // Predicated region
    $region9: #{fwd.5} parent=5 // pred_check
      _
    $region10: #{fwd.5} parent=5 // pred_check_branch
      %132 = sbr.rel (%p129) target = $region12
    $region11: #{fwd.5} parent=5 // pred_region
      %s133 = ssub.s32 %s9, 1
      // Predicated region
      $region13: #{fwd.5} parent=11 // pred_check
        %p134 = pneg %p70
      $region14: #{fwd.5} parent=11 // pred_check_branch
        %136 = sbr.rel (%p134) target = $region16
      $region15: #{fwd.5} parent=11 // pred_region
        _
      $region16: #{fwd.5} parent=11 // pred_fallthru
        _
      // Predicated region
      $region17: #{fwd.5} parent=11 // pred_check
        %p137 = pneg %p91
      $region18: #{fwd.5} parent=11 // pred_check_branch
        %139 = sbr.rel (%p137) target = $region20
      $region19: #{fwd.5} parent=11 // pred_region
        _
      $region20: #{fwd.5} parent=11 // pred_fallthru
        _
    $region12: #{fwd.5} parent=5 // pred_fallthru
      _
    %p140 = scmp.lt.s32.totalorder %s9, 4
    // Predicated region
    $region21: #{fwd.5} parent=5 // pred_check
      %p141 = pneg %p140
    $region22: #{fwd.5} parent=5 // pred_check_branch
      %143 = sbr.rel (%p141) target = $region24
    $region23: #{fwd.5} parent=5 // pred_region
      // Predicated region
      $region25: #{fwd.5} parent=23 // pred_check
        %p144 = pneg %p43
      $region26: #{fwd.5} parent=23 // pred_check_branch
        %146 = sbr.rel (%p144) target = $region28
      $region27: #{fwd.5} parent=23 // pred_region
        %s147 = smul.u32 10, %s17
        %p148 = scmp.lt.s32.totalorder %s16, 1
        %s149 = scalar_select %p148, %s16, 1
        %p150 = scmp.lt.s32.totalorder %s147, 19
        %s151 = scalar_select %p150, %s147, 19
        %s152 = smul.addr %s149, 20
        %s153 = sadd.s32 %s151, %s152
        %s154 = smul.addr %s153, 4
        %s155 = scalar_lea.vmem %s0, %s154
        %s156 = smul.u32 10, %s17
      $region28: #{fwd.5} parent=23 // pred_fallthru
        _
    $region24: #{fwd.5} parent=5 // pred_fallthru
      _
    %p157 = scmp.le.s32.totalorder 1, %s9
    %p158 = scmp.lt.s32.totalorder %s9, 5
    %p159 = pnand %p157, %p158
    %p160 = pneg %p159
    // Predicated region
    $region29: #{fwd.5} parent=5 // pred_check
      _
    $region30: #{fwd.5} parent=5 // pred_check_branch
      %162 = sbr.rel (%p159) target = $region32
    $region31: #{fwd.5} parent=5 // pred_region
      %s163 = ssub.s32 %s9, 1
      %s164 = smul.u32 10, %s19
      %p165 = scmp.lt.s32.totalorder %s18, 1
      %s166 = scalar_select %p165, %s18, 1
      %p167 = scmp.lt.s32.totalorder %s164, 19
      %s168 = scalar_select %p167, %s164, 19
      %s169 = smul.addr %s166, 20
      %s170 = sadd.s32 %s168, %s169
      %s171 = smul.addr %s170, 4
      %s172 = scalar_lea.vmem %s0, %s171
      %p173 = pneg %p49
      %p174 = pneg %p46
      %p175 = pneg %p70
      %p176 = pneg %p67
      %p177 = pneg %p91
      %p178 = pneg %p88
      %p179 = pneg %p119
      %p180 = pneg %p116
      %s181 = smul.u32 10, %s19
      %p182 = scmp.lt.s32.totalorder %s18, 1
      %s183 = scalar_select %p182, %s18, 1
      %p184 = scmp.lt.s32.totalorder %s181, 19
      %s185 = scalar_select %p184, %s181, 19
      %s186 = smul.addr %s183, 20
      %s187 = sadd.s32 %s185, %s186
      %s188 = smul.addr %s187, 4
      %s189 = scalar_lea.vmem %s3, %s188
      %s190 = smul.u32 10, %s19
      %p191 = scmp.lt.s32.totalorder %s18, 1
      %s192 = scalar_select %p191, %s18, 1
      %p193 = scmp.lt.s32.totalorder %s190, 19
      %s194 = scalar_select %p193, %s190, 19
      %s195 = smul.addr %s192, 20
      %s196 = sadd.s32 %s194, %s195
      %s197 = smul.addr %s196, 4
      %s198 = scalar_lea.vmem %s0, %s197
      %s199 = smul.u32 10, %s19
      %s200 = smul.u32 10, %s19
      %p201 = scmp.lt.s32.totalorder %s18, 1
      %s202 = scalar_select %p201, %s18, 1
      %p203 = scmp.lt.s32.totalorder %s200, 19
      %s204 = scalar_select %p203, %s200, 19
      %s205 = smul.addr %s202, 20
      %s206 = sadd.s32 %s204, %s205
      %s207 = smul.addr %s206, 4
      %s208 = scalar_lea.vmem %s3, %s207
      %s209 = smul.u32 10, %s19
      %p211 = scmp.eq.s32.totalorder %s19, 0
      // Predicated region
      $region33: #{fwd.5} parent=31 // pred_check
        %p212 = pneg %p211
      $region34: #{fwd.5} parent=31 // pred_check_branch
        %214 = sbr.rel (%p212) target = $region36
      $region35: #{fwd.5} parent=31 // pred_region
        %vm215 = vcmask 60416
        %216 = vst.msk [vmem:[#allocation2] sm:$0xf] %vm215, 0
        %217 = vst.msk [vmem:[#allocation2 + $0x4] sm:$0xf] %vm215, 0
        %218 = vst.msk [vmem:[#allocation2 + $0x8] sm:$0xf] %vm215, 0
        %219 = vst.msk [vmem:[#allocation2 + $0xc] sm:$0xf] %vm215, 0
        %220 = vst.msk [vmem:[#allocation2 + $0x10] sm:$0xf] %vm215, 0
        %221 = vst.msk [vmem:[#allocation2 + $0x14] sm:$0xf] %vm215, 0
        %222 = vst.msk [vmem:[#allocation2 + $0x18] sm:$0xf] %vm215, 0
        %223 = vst.msk [vmem:[#allocation2 + $0x1c] sm:$0xf] %vm215, 0
        %224 = vst.msk [vmem:[#allocation2 + $0x20] sm:$0xf] %vm215, 0
        %225 = vst.msk [vmem:[#allocation2 + $0x24] sm:$0xf] %vm215, 0
        %226 = vst.msk [vmem:[#allocation2 + $0x28] sm:$0xf] %vm215, 0
        %227 = vst.msk [vmem:[#allocation2 + $0x2c] sm:$0xf] %vm215, 0
        %vm228 = vcmask 59392
        %229 = vst.msk [vmem:[#allocation2 + $0x30] sm:$0x7] %vm228, 0
        %230 = vst.msk [vmem:[#allocation3] sm:$0xf] %vm215, 0
        %231 = vst.msk [vmem:[#allocation3 + $0x4] sm:$0xf] %vm215, 0
        %vm232 = vcmask 58368
        %233 = vst.msk [vmem:[#allocation3 + $0x8] sm:$0x3] %vm232, 0
      $region36: #{fwd.5} parent=31 // pred_fallthru
        _
      %v234 = vld [vmem:[#allocation3] sm:$0xf]
      %v235 = vld [vmem:[#allocation3 + $0x4] sm:$0xf]
      %v236 = vld [vmem:[#allocation3 + $0x8] sm:$0x3]
      %vm237 = vcmask 60416
      %238 = vst.msk [vmem:[#allocation2] sm:$0xf] %vm237, %v234
      %239 = vst.msk [vmem:[#allocation2 + $0x4] sm:$0xf] %vm237, %v235
      %vm240 = vcmask 58368
      %241 = vst.msk [vmem:[#allocation2 + $0x8] sm:$0x3] %vm240, %v236
      %v242 = vld [vmem:[%s198] sm:$0xf]
      %v243 = vld [vmem:[%s198 + $0x4] sm:$0xf]
      %v244 = vld [vmem:[%s198 + $0x8] sm:$0xf]
      %v245 = vld [vmem:[%s198 + $0xc] sm:$0xf]
      %v246 = vld [vmem:[%s198 + $0x10] sm:$0xf]
      %v247 = vld [vmem:[%s198 + $0x14] sm:$0xf]
      %v248 = vld [vmem:[%s198 + $0x18] sm:$0xf]
      %v249 = vld [vmem:[%s198 + $0x1c] sm:$0xf]
      %v250 = vld [vmem:[%s198 + $0x20] sm:$0xf]
      %v251 = vld [vmem:[%s198 + $0x24] sm:$0xf]
      %vm262 = vcmask 1041408
      %vm263 = vcmask 1045508
      %vm264 = vmor %vm262, %vm263
      %v265 = vrot.slane %v242, 6
      %v266 = vrot.slane %v265, 4
      %v267 = vrot.slane %v243, 6
      %v268 = vsel %vm264, %v266, %v267
      %v269 = vrot.slane %v267, 4
      %v270 = vrot.slane %v244, 6
      %v271 = vsel %vm264, %v269, %v270
      %v272 = vrot.slane %v270, 4
      %v273 = vrot.slane %v245, 6
      %v274 = vsel %vm264, %v272, %v273
      %v275 = vrot.slane %v273, 4
      %v276 = vrot.slane %v246, 6
      %v277 = vsel %vm264, %v275, %v276
      %v278 = vrot.slane %v276, 4
      %v279 = vrot.slane %v247, 6
      %v280 = vsel %vm264, %v278, %v279
      %v281 = vrot.slane %v279, 4
      %v282 = vrot.slane %v248, 6
      %v283 = vsel %vm264, %v281, %v282
      %v284 = vrot.slane %v282, 4
      %v285 = vrot.slane %v249, 6
      %v286 = vsel %vm264, %v284, %v285
      %v287 = vrot.slane %v285, 4
      %v288 = vrot.slane %v250, 6
      %v289 = vsel %vm264, %v287, %v288
      %v290 = vrot.slane %v288, 4
      %v291 = vrot.slane %v251, 6
      %v292 = vsel %vm264, %v290, %v291
      %v293 = vrot.slane %v291, 4
      %vm305 = vcmask 60418
      %306 = vst.msk [vmem:[#allocation2 + $0x8] sm:$0xc] %vm305, %v265
      %307 = vst.msk [vmem:[#allocation2 + $0xc] sm:$0xf] %vm237, %v268
      %308 = vst.msk [vmem:[#allocation2 + $0x10] sm:$0xf] %vm237, %v271
      %309 = vst.msk [vmem:[#allocation2 + $0x14] sm:$0xf] %vm237, %v274
      %310 = vst.msk [vmem:[#allocation2 + $0x18] sm:$0xf] %vm237, %v277
      %311 = vst.msk [vmem:[#allocation2 + $0x1c] sm:$0xf] %vm237, %v280
      %312 = vst.msk [vmem:[#allocation2 + $0x20] sm:$0xf] %vm237, %v283
      %313 = vst.msk [vmem:[#allocation2 + $0x24] sm:$0xf] %vm237, %v286
      %314 = vst.msk [vmem:[#allocation2 + $0x28] sm:$0xf] %vm237, %v289
      %315 = vst.msk [vmem:[#allocation2 + $0x2c] sm:$0xf] %vm237, %v292
      %316 = vst.msk [vmem:[#allocation2 + $0x30] sm:$0x3] %vm240, %v293
      %v317 = vld [vmem:[#allocation2 + $0x28] sm:$0xf]
      %v318 = vld [vmem:[#allocation2 + $0x2c] sm:$0xf]
      %v319 = vld [vmem:[#allocation2 + $0x30] sm:$0x3]
      %320 = vst.msk [vmem:[#allocation3] sm:$0xf] %vm237, %v317
      %321 = vst.msk [vmem:[#allocation3 + $0x4] sm:$0xf] %vm237, %v318
      %322 = vst.msk [vmem:[#allocation3 + $0x8] sm:$0x3] %vm240, %v319
      %v323 = vld [vmem:[#allocation2] sm:$0xf]
      %v324 = vld [vmem:[#allocation2 + $0x4] sm:$0xf]
      %v325 = vld [vmem:[#allocation2 + $0x8] sm:$0xf]
      %v326 = vld [vmem:[#allocation2 + $0xc] sm:$0xf]
      %v327 = vld [vmem:[#allocation2 + $0x10] sm:$0xf]
      %v328 = vld [vmem:[#allocation2 + $0x14] sm:$0xf]
      %v329 = vld [vmem:[#allocation2 + $0x18] sm:$0xf]
      %v330 = vld [vmem:[#allocation2 + $0x1c] sm:$0xf]
      %v331 = vld [vmem:[#allocation2 + $0x20] sm:$0xf]
      %v332 = vld [vmem:[#allocation2 + $0x24] sm:$0xf]
      %v333 = vld [vmem:[%s1] sm:$0xf]
      %v334 = vld [vmem:[#allocation2 + $0x28] sm:$0x1]
      %s335 = scalar_lea.vmem %s1, 4
      %v336 = vld [vmem:[%s335] sm:$0xf]
      %v348 = vunpack.c.l.b16 %v323
      %v349 = vunpack.c.l.b16 %v324
      %v350 = vunpack.c.l.b16 %v325
      %v351 = vunpack.c.l.b16 %v326
      %v352 = vunpack.c.l.b16 %v327
      %v353 = vunpack.c.l.b16 %v328
      %v354 = vunpack.c.l.b16 %v329
      %v355 = vunpack.c.l.b16 %v330
      %v356 = vunpack.c.l.b16 %v331
      %v357 = vunpack.c.l.b16 %v332
      %v358 = vunpack.c.l.b16 %v334
      %v359 = vpack.c.b16 %v349, %v348
      %v360 = vpack.c.b16 %v351, %v350
      %v361 = vpack.c.b16 %v353, %v352
      %v362 = vpack.c.b16 %v355, %v354
      %v363 = vpack.c.b16 %v357, %v356
      %v364 = vpack.c.b16 %v358, %v358
      %vm365 = vsmask.f32 7424
      %v367 = vshrl.u32 %v359, 16
      %v369 = vshll.u32 %v359, 16
      %v371 = vrot.slane %v369, 1
      %v372 = vor.u32 %v367, %v371
      %v374 = vshll.u32 %v360, 16
      %v376 = vrot.slane %v374, 1
      %v377 = vsel %vm365, %v372, %v376
      %v378 = vshrl.u32 %v360, 16
      %v380 = vor.u32 %v378, %v376
      %v382 = vshll.u32 %v361, 16
      %v384 = vrot.slane %v382, 1
      %v385 = vsel %vm365, %v380, %v384
      %v386 = vshrl.u32 %v361, 16
      %v388 = vor.u32 %v386, %v384
      %v390 = vshll.u32 %v362, 16
      %v392 = vrot.slane %v390, 1
      %v393 = vsel %vm365, %v388, %v392
      %v394 = vshrl.u32 %v362, 16
      %v396 = vor.u32 %v394, %v392
      %v398 = vshll.u32 %v363, 16
      %v400 = vrot.slane %v398, 1
      %v401 = vsel %vm365, %v396, %v400
      %v402 = vshrl.u32 %v363, 16
      %v404 = vor.u32 %v402, %v400
      %v406 = vshll.u32 %v364, 16
      %v408 = vrot.slane %v406, 1
      %v409 = vsel %vm365, %v404, %v408
      %vm410 = vcmask 64512
      %v412 = vsel %vm410, %v377, 0
      %v415 = vsel %vm410, %v385, 0
      %v418 = vsel %vm410, %v393, 0
      %v421 = vsel %vm410, %v401, 0
      %v424 = vsel %vm410, %v409, 0
      %vm426 = vcmask 1043456
      %v428 = vsel %vm426, %v336, 0
      %430 = vmatprep.subr.bf16.mxu0 0
      %431 = vmatpush1.bf16.msra.mxu0 %v428
      %432 = vmatprep.subr.bf16.mxu0 0
      %433 = vmatpush1.bf16.msra.mxu0 0
      %434 = vmatprep.subr.bf16.mxu0 0
      %435 = vmatpush1.bf16.msra.mxu0 0
      %436 = vmatprep.subr.bf16.mxu0 0
      %437 = vmatpush1.bf16.msra.mxu0 0
      %438 = vmatprep.subr.bf16.mxu0 0
      %439 = vmatpush1.bf16.msra.mxu0 0
      %440 = vmatprep.subr.bf16.mxu0 0
      %441 = vmatpush1.bf16.msra.mxu0 0
      %442 = vmatprep.subr.bf16.mxu0 0
      %443 = vmatpush1.bf16.msra.mxu0 0
      %444 = vmatprep.subr.bf16.mxu0 0
      %445 = vmatpush1.bf16.msra.mxu0 0
      %446 = vmatprep.subr.bf16.mxu0 0
      %447 = vmatpush1.bf16.msra.mxu0 0
      %448 = vmatprep.subr.bf16.mxu0 0
      %449 = vmatpush1.bf16.msra.mxu0 0
      %450 = vmatprep.subr.bf16.mxu0 0
      %451 = vmatpush1.bf16.msra.mxu0 0
      %452 = vmatprep.subr.bf16.mxu0 0
      %453 = vmatpush1.bf16.msra.mxu0 0
      %454 = vmatprep.subr.bf16.mxu0 0
      %455 = vmatpush1.bf16.msra.mxu0 0
      %456 = vmatprep.subr.bf16.mxu0 0
      %457 = vmatpush1.bf16.msra.mxu0 0
      %458 = vmatprep.subr.bf16.mxu0 0
      %459 = vmatpush1.bf16.msra.mxu0 0
      %460 = vmatprep.subr.bf16.mxu0 0
      %461 = vmatpush1.bf16.msra.mxu0 0
      %462 = vmatprep.mubr.bf16.mxu0 0
      %463 = vmatmul.mubr.bf16.gmra.mrb[0].mxu0 %v412
      %v464 = vpop.f32.mrb[0].mxu0
      %v465 = vadd.f32 0.0, %v464
      %v466 = vpop.f32.mrb[0].mxu0
      %v467 = vpop.f32.mrb[0].mxu0
      %v468 = vadd.f32 0.0, %v467
      %v469 = vpop.f32.mrb[0].mxu0
      %470 = vmatprep.mubr.bf16.mxu0 0
      %471 = vmatmul.mubr.bf16.gmra.mrb[0].mxu0 %v415
      %v472 = vpop.f32.mrb[0].mxu0
      %v473 = vadd.f32 0.0, %v472
      %v474 = vpop.f32.mrb[0].mxu0
      %v475 = vpop.f32.mrb[0].mxu0
      %v476 = vadd.f32 0.0, %v475
      %v477 = vpop.f32.mrb[0].mxu0
      %478 = vmatprep.mubr.bf16.mxu0 0
      %479 = vmatmul.mubr.bf16.gmra.mrb[0].mxu0 %v418
      %v480 = vpop.f32.mrb[0].mxu0
      %v481 = vadd.f32 0.0, %v480
      %v482 = vpop.f32.mrb[0].mxu0
      %v483 = vpop.f32.mrb[0].mxu0
      %v484 = vadd.f32 0.0, %v483
      %v485 = vpop.f32.mrb[0].mxu0
      %486 = vmatprep.mubr.bf16.mxu0 0
      %487 = vmatmul.mubr.bf16.gmra.mrb[0].mxu0 %v421
      %v488 = vpop.f32.mrb[0].mxu0
      %v489 = vadd.f32 0.0, %v488
      %v490 = vpop.f32.mrb[0].mxu0
      %v491 = vpop.f32.mrb[0].mxu0
      %v492 = vadd.f32 0.0, %v491
      %v493 = vpop.f32.mrb[0].mxu0
      %494 = vmatprep.mubr.bf16.mxu0 0
      %495 = vmatmul.mubr.bf16.gmra.mrb[0].mxu0 %v424
      %v496 = vpop.f32.mrb[0].mxu0
      %v497 = vadd.f32 0.0, %v496
      %v498 = vpop.f32.mrb[0].mxu0
      %v499 = vpop.f32.mrb[0].mxu0
      %v500 = vadd.f32 0.0, %v499
      %v501 = vpop.f32.mrb[0].mxu0
      %502 = vdwg.mxu0
      %v503 = vsel %vm410, %v359, 0
      %v505 = vsel %vm410, %v360, 0
      %v507 = vsel %vm410, %v361, 0
      %v509 = vsel %vm410, %v362, 0
      %v511 = vsel %vm410, %v363, 0
      %v514 = vsel %vm426, %v333, 0
      %516 = vmatprep.subr.bf16.mxu0 0
      %517 = vmatpush1.bf16.msra.mxu0 %v514
      %518 = vmatprep.subr.bf16.mxu0 0
      %519 = vmatpush1.bf16.msra.mxu0 0
      %520 = vmatprep.subr.bf16.mxu0 0
      %521 = vmatpush1.bf16.msra.mxu0 0
      %522 = vmatprep.subr.bf16.mxu0 0
      %523 = vmatpush1.bf16.msra.mxu0 0
      %524 = vmatprep.subr.bf16.mxu0 0
      %525 = vmatpush1.bf16.msra.mxu0 0
      %526 = vmatprep.subr.bf16.mxu0 0
      %527 = vmatpush1.bf16.msra.mxu0 0
      %528 = vmatprep.subr.bf16.mxu0 0
      %529 = vmatpush1.bf16.msra.mxu0 0
      %530 = vmatprep.subr.bf16.mxu0 0
      %531 = vmatpush1.bf16.msra.mxu0 0
      %532 = vmatprep.subr.bf16.mxu0 0
      %533 = vmatpush1.bf16.msra.mxu0 0
      %534 = vmatprep.subr.bf16.mxu0 0
      %535 = vmatpush1.bf16.msra.mxu0 0
      %536 = vmatprep.subr.bf16.mxu0 0
      %537 = vmatpush1.bf16.msra.mxu0 0
      %538 = vmatprep.subr.bf16.mxu0 0
      %539 = vmatpush1.bf16.msra.mxu0 0
      %540 = vmatprep.subr.bf16.mxu0 0
      %541 = vmatpush1.bf16.msra.mxu0 0
      %542 = vmatprep.subr.bf16.mxu0 0
      %543 = vmatpush1.bf16.msra.mxu0 0
      %544 = vmatprep.subr.bf16.mxu0 0
      %545 = vmatpush1.bf16.msra.mxu0 0
      %546 = vmatprep.subr.bf16.mxu0 0
      %547 = vmatpush1.bf16.msra.mxu0 0
      %548 = vmatprep.mubr.bf16.mxu0 0
      %549 = vmatmul.mubr.bf16.gmra.mrb[0].mxu0 %v503
      %v550 = vpop.f32.mrb[0].mxu0
      %v551 = vadd.f32 %v465, %v550
      %v552 = vpop.f32.mrb[0].mxu0
      %v553 = vpop.f32.mrb[0].mxu0
      %v554 = vadd.f32 %v468, %v553
      %v555 = vpop.f32.mrb[0].mxu0
      %556 = vmatprep.mubr.bf16.mxu0 0
      %557 = vmatmul.mubr.bf16.gmra.mrb[0].mxu0 %v505
      %v558 = vpop.f32.mrb[0].mxu0
      %v559 = vadd.f32 %v473, %v558
      %v560 = vpop.f32.mrb[0].mxu0
      %v561 = vpop.f32.mrb[0].mxu0
      %v562 = vadd.f32 %v476, %v561
      %v563 = vpop.f32.mrb[0].mxu0
      %564 = vmatprep.mubr.bf16.mxu0 0
      %565 = vmatmul.mubr.bf16.gmra.mrb[0].mxu0 %v507
      %v566 = vpop.f32.mrb[0].mxu0
      %v567 = vadd.f32 %v481, %v566
      %v568 = vpop.f32.mrb[0].mxu0
      %v569 = vpop.f32.mrb[0].mxu0
      %v570 = vadd.f32 %v484, %v569
      %v571 = vpop.f32.mrb[0].mxu0
      %572 = vmatprep.mubr.bf16.mxu0 0
      %573 = vmatmul.mubr.bf16.gmra.mrb[0].mxu0 %v509
      %v574 = vpop.f32.mrb[0].mxu0
      %v575 = vadd.f32 %v489, %v574
      %v576 = vpop.f32.mrb[0].mxu0
      %v577 = vpop.f32.mrb[0].mxu0
      %v578 = vadd.f32 %v492, %v577
      %v579 = vpop.f32.mrb[0].mxu0
      %580 = vmatprep.mubr.bf16.mxu0 0
      %581 = vmatmul.mubr.bf16.gmra.mrb[0].mxu0 %v511
      %v582 = vpop.f32.mrb[0].mxu0
      %v583 = vadd.f32 %v497, %v582
      %v584 = vpop.f32.mrb[0].mxu0
      %v585 = vpop.f32.mrb[0].mxu0
      %v586 = vadd.f32 %v500, %v585
      %v587 = vpop.f32.mrb[0].mxu0
      %588 = vdwg.mxu0
      %v589 = vld [vmem:[#allocation2] sm:$0xe]
      %s590 = scalar_lea.vmem %s1, 8
      %v591 = vld [vmem:[%s590] sm:$0xf]
      %v593 = vunpack.c.l.b16 %v589
      %v594 = vpack.c.b16 %v349, %v593
      %vm595 = vcmask 1046528
      %v596 = vrot.slane %v594, 1
      %v597 = vrot.slane %v360, 1
      %v598 = vsel %vm595, %v596, %v597
      %v599 = vrot.slane %v361, 1
      %v600 = vsel %vm595, %v597, %v599
      %v601 = vrot.slane %v362, 1
      %v602 = vsel %vm595, %v599, %v601
      %v603 = vrot.slane %v363, 1
      %v604 = vsel %vm595, %v601, %v603
      %v605 = vrot.slane %v364, 1
      %v606 = vsel %vm595, %v603, %v605
      %v608 = vsel %vm410, %v598, 0
      %v611 = vsel %vm410, %v600, 0
      %v614 = vsel %vm410, %v602, 0
      %v617 = vsel %vm410, %v604, 0
      %v620 = vsel %vm410, %v606, 0
      %v623 = vsel %vm426, %v591, 0
      %625 = vmatprep.subr.bf16.mxu0 0
      %626 = vmatpush1.bf16.msra.mxu0 %v623
      %627 = vmatprep.subr.bf16.mxu0 0
      %628 = vmatpush1.bf16.msra.mxu0 0
      %629 = vmatprep.subr.bf16.mxu0 0
      %630 = vmatpush1.bf16.msra.mxu0 0
      %631 = vmatprep.subr.bf16.mxu0 0
      %632 = vmatpush1.bf16.msra.mxu0 0
      %633 = vmatprep.subr.bf16.mxu0 0
      %634 = vmatpush1.bf16.msra.mxu0 0
      %635 = vmatprep.subr.bf16.mxu0 0
      %636 = vmatpush1.bf16.msra.mxu0 0
      %637 = vmatprep.subr.bf16.mxu0 0
      %638 = vmatpush1.bf16.msra.mxu0 0
      %639 = vmatprep.subr.bf16.mxu0 0
      %640 = vmatpush1.bf16.msra.mxu0 0
      %641 = vmatprep.subr.bf16.mxu0 0
      %642 = vmatpush1.bf16.msra.mxu0 0
      %643 = vmatprep.subr.bf16.mxu0 0
      %644 = vmatpush1.bf16.msra.mxu0 0
      %645 = vmatprep.subr.bf16.mxu0 0
      %646 = vmatpush1.bf16.msra.mxu0 0
      %647 = vmatprep.subr.bf16.mxu0 0
      %648 = vmatpush1.bf16.msra.mxu0 0
      %649 = vmatprep.subr.bf16.mxu0 0
      %650 = vmatpush1.bf16.msra.mxu0 0
      %651 = vmatprep.subr.bf16.mxu0 0
      %652 = vmatpush1.bf16.msra.mxu0 0
      %653 = vmatprep.subr.bf16.mxu0 0
      %654 = vmatpush1.bf16.msra.mxu0 0
      %655 = vmatprep.subr.bf16.mxu0 0
      %656 = vmatpush1.bf16.msra.mxu0 0
      %657 = vmatprep.mubr.bf16.mxu0 0
      %658 = vmatmul.mubr.bf16.gmra.mrb[0].mxu0 %v608
      %v659 = vpop.f32.mrb[0].mxu0
      %v660 = vadd.f32 0.0, %v659
      %v661 = vpop.f32.mrb[0].mxu0
      %v662 = vpop.f32.mrb[0].mxu0
      %v663 = vadd.f32 0.0, %v662
      %v664 = vpop.f32.mrb[0].mxu0
      %665 = vmatprep.mubr.bf16.mxu0 0
      %666 = vmatmul.mubr.bf16.gmra.mrb[0].mxu0 %v611
      %v667 = vpop.f32.mrb[0].mxu0
      %v668 = vadd.f32 0.0, %v667
      %v669 = vpop.f32.mrb[0].mxu0
      %v670 = vpop.f32.mrb[0].mxu0
      %v671 = vadd.f32 0.0, %v670
      %v672 = vpop.f32.mrb[0].mxu0
      %673 = vmatprep.mubr.bf16.mxu0 0
      %674 = vmatmul.mubr.bf16.gmra.mrb[0].mxu0 %v614
      %v675 = vpop.f32.mrb[0].mxu0
      %v676 = vadd.f32 0.0, %v675
      %v677 = vpop.f32.mrb[0].mxu0
      %v678 = vpop.f32.mrb[0].mxu0
      %v679 = vadd.f32 0.0, %v678
      %v680 = vpop.f32.mrb[0].mxu0
      %681 = vmatprep.mubr.bf16.mxu0 0
      %682 = vmatmul.mubr.bf16.gmra.mrb[0].mxu0 %v617
      %v683 = vpop.f32.mrb[0].mxu0
      %v684 = vadd.f32 0.0, %v683
      %v685 = vpop.f32.mrb[0].mxu0
      %v686 = vpop.f32.mrb[0].mxu0
      %v687 = vadd.f32 0.0, %v686
      %v688 = vpop.f32.mrb[0].mxu0
      %689 = vmatprep.mubr.bf16.mxu0 0
      %690 = vmatmul.mubr.bf16.gmra.mrb[0].mxu0 %v620
      %v691 = vpop.f32.mrb[0].mxu0
      %v692 = vadd.f32 0.0, %v691
      %v693 = vpop.f32.mrb[0].mxu0
      %v694 = vpop.f32.mrb[0].mxu0
      %v695 = vadd.f32 0.0, %v694
      %v696 = vpop.f32.mrb[0].mxu0
      %697 = vdwg.mxu0
      %v698 = vadd.f32 %v551, %v660
      %v699 = vadd.f32 %v554, %v663
      %v700 = vadd.f32 %v559, %v668
      %v701 = vadd.f32 %v562, %v671
      %v702 = vadd.f32 %v567, %v676
      %v703 = vadd.f32 %v570, %v679
      %v704 = vadd.f32 %v575, %v684
      %v705 = vadd.f32 %v578, %v687
      %v706 = vadd.f32 %v583, %v692
      %v707 = vadd.f32 %v586, %v695
      %v708 = vld [vmem:[#allocation2 + $0x4] sm:$0xe]
      %v709 = vld [vmem:[#allocation2 + $0x8] sm:$0xf]
      %v710 = vld [vmem:[#allocation2 + $0xc] sm:$0xf]
      %v711 = vld [vmem:[#allocation2 + $0x10] sm:$0xf]
      %v712 = vld [vmem:[#allocation2 + $0x14] sm:$0xf]
      %v713 = vld [vmem:[#allocation2 + $0x18] sm:$0xf]
      %v714 = vld [vmem:[#allocation2 + $0x1c] sm:$0xf]
      %v715 = vld [vmem:[#allocation2 + $0x20] sm:$0xf]
      %v716 = vld [vmem:[#allocation2 + $0x24] sm:$0xf]
      %v717 = vld [vmem:[#allocation2 + $0x28] sm:$0xf]
      %v718 = vld [vmem:[#allocation2 + $0x2c] sm:$0x1]
      %s719 = scalar_lea.vmem %s1, 12
      %v720 = vld [vmem:[%s719] sm:$0xf]
      %v732 = vunpack.c.l.b16 %v708
      %v733 = vunpack.c.l.b16 %v709
      %v734 = vunpack.c.l.b16 %v710
      %v735 = vunpack.c.l.b16 %v711
      %v736 = vunpack.c.l.b16 %v712
      %v737 = vunpack.c.l.b16 %v713
      %v738 = vunpack.c.l.b16 %v714
      %v739 = vunpack.c.l.b16 %v715
      %v740 = vunpack.c.l.b16 %v716
      %v741 = vunpack.c.l.b16 %v717
      %v742 = vunpack.c.l.b16 %v718
      %v743 = vpack.c.b16 %v733, %v732
      %v744 = vpack.c.b16 %v735, %v734
      %v745 = vpack.c.b16 %v737, %v736
      %v746 = vpack.c.b16 %v739, %v738
      %v747 = vpack.c.b16 %v741, %v740
      %v748 = vpack.c.b16 %v742, %v742
      %v749 = vrot.slane %v743, 1
      %v750 = vrot.slane %v744, 1
      %v751 = vsel %vm595, %v749, %v750
      %v752 = vrot.slane %v745, 1
      %v753 = vsel %vm595, %v750, %v752
      %v754 = vrot.slane %v746, 1
      %v755 = vsel %vm595, %v752, %v754
      %v756 = vrot.slane %v747, 1
      %v757 = vsel %vm595, %v754, %v756
      %v758 = vrot.slane %v748, 1
      %v759 = vsel %vm595, %v756, %v758
      %v761 = vsel %vm410, %v751, 0
      %v764 = vsel %vm410, %v753, 0
      %v767 = vsel %vm410, %v755, 0
      %v770 = vsel %vm410, %v757, 0
      %v773 = vsel %vm410, %v759, 0
      %v776 = vsel %vm426, %v720, 0
      %778 = vmatprep.subr.bf16.mxu0 0
      %779 = vmatpush1.bf16.msra.mxu0 %v776
      %780 = vmatprep.subr.bf16.mxu0 0
      %781 = vmatpush1.bf16.msra.mxu0 0
      %782 = vmatprep.subr.bf16.mxu0 0
      %783 = vmatpush1.bf16.msra.mxu0 0
      %784 = vmatprep.subr.bf16.mxu0 0
      %785 = vmatpush1.bf16.msra.mxu0 0
      %786 = vmatprep.subr.bf16.mxu0 0
      %787 = vmatpush1.bf16.msra.mxu0 0
      %788 = vmatprep.subr.bf16.mxu0 0
      %789 = vmatpush1.bf16.msra.mxu0 0
      %790 = vmatprep.subr.bf16.mxu0 0
      %791 = vmatpush1.bf16.msra.mxu0 0
      %792 = vmatprep.subr.bf16.mxu0 0
      %793 = vmatpush1.bf16.msra.mxu0 0
      %794 = vmatprep.subr.bf16.mxu0 0
      %795 = vmatpush1.bf16.msra.mxu0 0
      %796 = vmatprep.subr.bf16.mxu0 0
      %797 = vmatpush1.bf16.msra.mxu0 0
      %798 = vmatprep.subr.bf16.mxu0 0
      %799 = vmatpush1.bf16.msra.mxu0 0
      %800 = vmatprep.subr.bf16.mxu0 0
      %801 = vmatpush1.bf16.msra.mxu0 0
      %802 = vmatprep.subr.bf16.mxu0 0
      %803 = vmatpush1.bf16.msra.mxu0 0
      %804 = vmatprep.subr.bf16.mxu0 0
      %805 = vmatpush1.bf16.msra.mxu0 0
      %806 = vmatprep.subr.bf16.mxu0 0
      %807 = vmatpush1.bf16.msra.mxu0 0
      %808 = vmatprep.subr.bf16.mxu0 0
      %809 = vmatpush1.bf16.msra.mxu0 0
      %810 = vmatprep.mubr.bf16.mxu0 0
      %811 = vmatmul.mubr.bf16.gmra.mrb[0].mxu0 %v761
      %v812 = vpop.f32.mrb[0].mxu0
      %v813 = vadd.f32 0.0, %v812
      %v814 = vpop.f32.mrb[0].mxu0
      %v815 = vpop.f32.mrb[0].mxu0
      %v816 = vadd.f32 0.0, %v815
      %v817 = vpop.f32.mrb[0].mxu0
      %818 = vmatprep.mubr.bf16.mxu0 0
      %819 = vmatmul.mubr.bf16.gmra.mrb[0].mxu0 %v764
      %v820 = vpop.f32.mrb[0].mxu0
      %v821 = vadd.f32 0.0, %v820
      %v822 = vpop.f32.mrb[0].mxu0
      %v823 = vpop.f32.mrb[0].mxu0
      %v824 = vadd.f32 0.0, %v823
      %v825 = vpop.f32.mrb[0].mxu0
      %826 = vmatprep.mubr.bf16.mxu0 0
      %827 = vmatmul.mubr.bf16.gmra.mrb[0].mxu0 %v767
      %v828 = vpop.f32.mrb[0].mxu0
      %v829 = vadd.f32 0.0, %v828
      %v830 = vpop.f32.mrb[0].mxu0
      %v831 = vpop.f32.mrb[0].mxu0
      %v832 = vadd.f32 0.0, %v831
      %v833 = vpop.f32.mrb[0].mxu0
      %834 = vmatprep.mubr.bf16.mxu0 0
      %835 = vmatmul.mubr.bf16.gmra.mrb[0].mxu0 %v770
      %v836 = vpop.f32.mrb[0].mxu0
      %v837 = vadd.f32 0.0, %v836
      %v838 = vpop.f32.mrb[0].mxu0
      %v839 = vpop.f32.mrb[0].mxu0
      %v840 = vadd.f32 0.0, %v839
      %v841 = vpop.f32.mrb[0].mxu0
      %842 = vmatprep.mubr.bf16.mxu0 0
      %843 = vmatmul.mubr.bf16.gmra.mrb[0].mxu0 %v773
      %v844 = vpop.f32.mrb[0].mxu0
      %v845 = vadd.f32 0.0, %v844
      %v846 = vpop.f32.mrb[0].mxu0
      %v847 = vpop.f32.mrb[0].mxu0
      %v848 = vadd.f32 0.0, %v847
      %v849 = vpop.f32.mrb[0].mxu0
      %850 = vdwg.mxu0
      %v851 = vadd.f32 %v698, %v813
      %v852 = vadd.f32 %v699, %v816
      %v853 = vadd.f32 %v700, %v821
      %v854 = vadd.f32 %v701, %v824
      %v855 = vadd.f32 %v702, %v829
      %v856 = vadd.f32 %v703, %v832
      %v857 = vadd.f32 %v704, %v837
      %v858 = vadd.f32 %v705, %v840
      %v859 = vadd.f32 %v706, %v845
      %v860 = vadd.f32 %v707, %v848
      %v861 = vld [vmem:[#allocation2 + $0x2c] sm:$0x3]
      %s862 = scalar_lea.vmem %s1, 16
      %v863 = vld [vmem:[%s862] sm:$0xf]
      %v865 = vunpack.c.l.b16 %v861
      %v866 = vpack.c.b16 %v865, %v865
      %vm867 = vsmask.f32 6400
      %v869 = vshrl.u32 %v743, 16
      %v871 = vrot.slane %v869, 1
      %v872 = vshll.u32 %v743, 16
      %v874 = vrot.slane %v872, 2
      %v875 = vor.u32 %v871, %v874
      %v877 = vshrl.u32 %v744, 16
      %v879 = vrot.slane %v877, 1
      %v880 = vshll.u32 %v744, 16
      %v882 = vrot.slane %v880, 2
      %v883 = vor.u32 %v879, %v882
      %v884 = vsel %vm867, %v875, %v883
      %v886 = vshrl.u32 %v745, 16
      %v888 = vrot.slane %v886, 1
      %v889 = vshll.u32 %v745, 16
      %v891 = vrot.slane %v889, 2
      %v892 = vor.u32 %v888, %v891
      %v893 = vsel %vm867, %v883, %v892
      %v895 = vshrl.u32 %v746, 16
      %v897 = vrot.slane %v895, 1
      %v898 = vshll.u32 %v746, 16
      %v900 = vrot.slane %v898, 2
      %v901 = vor.u32 %v897, %v900
      %v902 = vsel %vm867, %v892, %v901
      %v904 = vshrl.u32 %v747, 16
      %v906 = vrot.slane %v904, 1
      %v907 = vshll.u32 %v747, 16
      %v909 = vrot.slane %v907, 2
      %v910 = vor.u32 %v906, %v909
      %v911 = vsel %vm867, %v901, %v910
      %v913 = vshrl.u32 %v866, 16
      %v915 = vrot.slane %v913, 1
      %v916 = vshll.u32 %v866, 16
      %v918 = vrot.slane %v916, 2
      %v919 = vor.u32 %v915, %v918
      %v920 = vsel %vm867, %v910, %v919
      %v922 = vsel %vm410, %v884, 0
      %v925 = vsel %vm410, %v893, 0
      %v928 = vsel %vm410, %v902, 0
      %v931 = vsel %vm410, %v911, 0
      %v934 = vsel %vm410, %v920, 0
      %v937 = vsel %vm426, %v863, 0
      %939 = vmatprep.subr.bf16.mxu0 0
      %940 = vmatpush1.bf16.msra.mxu0 %v937
      %941 = vmatprep.subr.bf16.mxu0 0
      %942 = vmatpush1.bf16.msra.mxu0 0
      %943 = vmatprep.subr.bf16.mxu0 0
      %944 = vmatpush1.bf16.msra.mxu0 0
      %945 = vmatprep.subr.bf16.mxu0 0
      %946 = vmatpush1.bf16.msra.mxu0 0
      %947 = vmatprep.subr.bf16.mxu0 0
      %948 = vmatpush1.bf16.msra.mxu0 0
      %949 = vmatprep.subr.bf16.mxu0 0
      %950 = vmatpush1.bf16.msra.mxu0 0
      %951 = vmatprep.subr.bf16.mxu0 0
      %952 = vmatpush1.bf16.msra.mxu0 0
      %953 = vmatprep.subr.bf16.mxu0 0
      %954 = vmatpush1.bf16.msra.mxu0 0
      %955 = vmatprep.subr.bf16.mxu0 0
      %956 = vmatpush1.bf16.msra.mxu0 0
      %957 = vmatprep.subr.bf16.mxu0 0
      %958 = vmatpush1.bf16.msra.mxu0 0
      %959 = vmatprep.subr.bf16.mxu0 0
      %960 = vmatpush1.bf16.msra.mxu0 0
      %961 = vmatprep.subr.bf16.mxu0 0
      %962 = vmatpush1.bf16.msra.mxu0 0
      %963 = vmatprep.subr.bf16.mxu0 0
      %964 = vmatpush1.bf16.msra.mxu0 0
      %965 = vmatprep.subr.bf16.mxu0 0
      %966 = vmatpush1.bf16.msra.mxu0 0
      %967 = vmatprep.subr.bf16.mxu0 0
      %968 = vmatpush1.bf16.msra.mxu0 0
      %969 = vmatprep.subr.bf16.mxu0 0
      %970 = vmatpush1.bf16.msra.mxu0 0
      %971 = vmatprep.mubr.bf16.mxu0 0
      %972 = vmatmul.mubr.bf16.gmra.mrb[0].mxu0 %v922
      %v973 = vpop.f32.mrb[0].mxu0
      %v974 = vadd.f32 0.0, %v973
      %v975 = vpop.f32.mrb[0].mxu0
      %v976 = vpop.f32.mrb[0].mxu0
      %v977 = vadd.f32 0.0, %v976
      %v978 = vpop.f32.mrb[0].mxu0
      %979 = vmatprep.mubr.bf16.mxu0 0
      %980 = vmatmul.mubr.bf16.gmra.mrb[0].mxu0 %v925
      %v981 = vpop.f32.mrb[0].mxu0
      %v982 = vadd.f32 0.0, %v981
      %v983 = vpop.f32.mrb[0].mxu0
      %v984 = vpop.f32.mrb[0].mxu0
      %v985 = vadd.f32 0.0, %v984
      %v986 = vpop.f32.mrb[0].mxu0
      %987 = vmatprep.mubr.bf16.mxu0 0
      %988 = vmatmul.mubr.bf16.gmra.mrb[0].mxu0 %v928
      %v989 = vpop.f32.mrb[0].mxu0
      %v990 = vadd.f32 0.0, %v989
      %v991 = vpop.f32.mrb[0].mxu0
      %v992 = vpop.f32.mrb[0].mxu0
      %v993 = vadd.f32 0.0, %v992
      %v994 = vpop.f32.mrb[0].mxu0
      %995 = vmatprep.mubr.bf16.mxu0 0
      %996 = vmatmul.mubr.bf16.gmra.mrb[0].mxu0 %v931
      %v997 = vpop.f32.mrb[0].mxu0
      %v998 = vadd.f32 0.0, %v997
      %v999 = vpop.f32.mrb[0].mxu0
      %v1000 = vpop.f32.mrb[0].mxu0
      %v1001 = vadd.f32 0.0, %v1000
      %v1002 = vpop.f32.mrb[0].mxu0
      %1003 = vmatprep.mubr.bf16.mxu0 0
      %1004 = vmatmul.mubr.bf16.gmra.mrb[0].mxu0 %v934
      %v1005 = vpop.f32.mrb[0].mxu0
      %v1006 = vadd.f32 0.0, %v1005
      %v1007 = vpop.f32.mrb[0].mxu0
      %v1008 = vpop.f32.mrb[0].mxu0
      %v1009 = vadd.f32 0.0, %v1008
      %v1010 = vpop.f32.mrb[0].mxu0
      %1011 = vdwg.mxu0
      %v1012 = vadd.f32 %v851, %v974
      %v1013 = vadd.f32 %v852, %v977
      %v1014 = vadd.f32 %v853, %v982
      %v1015 = vadd.f32 %v854, %v985
      %v1016 = vadd.f32 %v855, %v990
      %v1017 = vadd.f32 %v856, %v993
      %v1018 = vadd.f32 %v857, %v998
      %v1019 = vadd.f32 %v858, %v1001
      %v1020 = vadd.f32 %v859, %v1006
      %v1021 = vadd.f32 %v860, %v1009
      %v1022 = vld [vmem:[#allocation2 + $0x4] sm:$0xc]
      %s1023 = scalar_lea.vmem %s1, 20
      %v1024 = vld [vmem:[%s1023] sm:$0xf]
      %v1026 = vunpack.c.l.b16 %v1022
      %v1027 = vpack.c.b16 %v733, %v1026
      %vm1028 = vcmask 1045504
      %v1029 = vrot.slane %v1027, 2
      %v1030 = vrot.slane %v744, 2
      %v1031 = vsel %vm1028, %v1029, %v1030
      %v1032 = vrot.slane %v745, 2
      %v1033 = vsel %vm1028, %v1030, %v1032
      %v1034 = vrot.slane %v746, 2
      %v1035 = vsel %vm1028, %v1032, %v1034
      %v1036 = vrot.slane %v747, 2
      %v1037 = vsel %vm1028, %v1034, %v1036
      %v1038 = vrot.slane %v866, 2
      %v1039 = vsel %vm1028, %v1036, %v1038
      %v1041 = vsel %vm410, %v1031, 0
      %v1044 = vsel %vm410, %v1033, 0
      %v1047 = vsel %vm410, %v1035, 0
      %v1050 = vsel %vm410, %v1037, 0
      %v1053 = vsel %vm410, %v1039, 0
      %v1056 = vsel %vm426, %v1024, 0
      %1058 = vmatprep.subr.bf16.mxu0 0
      %1059 = vmatpush1.bf16.msra.mxu0 %v1056
      %1060 = vmatprep.subr.bf16.mxu0 0
      %1061 = vmatpush1.bf16.msra.mxu0 0
      %1062 = vmatprep.subr.bf16.mxu0 0
      %1063 = vmatpush1.bf16.msra.mxu0 0
      %1064 = vmatprep.subr.bf16.mxu0 0
      %1065 = vmatpush1.bf16.msra.mxu0 0
      %1066 = vmatprep.subr.bf16.mxu0 0
      %1067 = vmatpush1.bf16.msra.mxu0 0
      %1068 = vmatprep.subr.bf16.mxu0 0
      %1069 = vmatpush1.bf16.msra.mxu0 0
      %1070 = vmatprep.subr.bf16.mxu0 0
      %1071 = vmatpush1.bf16.msra.mxu0 0
      %1072 = vmatprep.subr.bf16.mxu0 0
      %1073 = vmatpush1.bf16.msra.mxu0 0
      %1074 = vmatprep.subr.bf16.mxu0 0
      %1075 = vmatpush1.bf16.msra.mxu0 0
      %1076 = vmatprep.subr.bf16.mxu0 0
      %1077 = vmatpush1.bf16.msra.mxu0 0
      %1078 = vmatprep.subr.bf16.mxu0 0
      %1079 = vmatpush1.bf16.msra.mxu0 0
      %1080 = vmatprep.subr.bf16.mxu0 0
      %1081 = vmatpush1.bf16.msra.mxu0 0
      %1082 = vmatprep.subr.bf16.mxu0 0
      %1083 = vmatpush1.bf16.msra.mxu0 0
      %1084 = vmatprep.subr.bf16.mxu0 0
      %1085 = vmatpush1.bf16.msra.mxu0 0
      %1086 = vmatprep.subr.bf16.mxu0 0
      %1087 = vmatpush1.bf16.msra.mxu0 0
      %1088 = vmatprep.subr.bf16.mxu0 0
      %1089 = vmatpush1.bf16.msra.mxu0 0
      %1090 = vmatprep.mubr.bf16.mxu0 0
      %1091 = vmatmul.mubr.bf16.gmra.mrb[0].mxu0 %v1041
      %v1092 = vpop.f32.mrb[0].mxu0
      %v1093 = vadd.f32 0.0, %v1092
      %v1094 = vpop.f32.mrb[0].mxu0
      %v1095 = vpop.f32.mrb[0].mxu0
      %v1096 = vadd.f32 0.0, %v1095
      %v1097 = vpop.f32.mrb[0].mxu0
      %1098 = vmatprep.mubr.bf16.mxu0 0
      %1099 = vmatmul.mubr.bf16.gmra.mrb[0].mxu0 %v1044
      %v1100 = vpop.f32.mrb[0].mxu0
      %v1101 = vadd.f32 0.0, %v1100
      %v1102 = vpop.f32.mrb[0].mxu0
      %v1103 = vpop.f32.mrb[0].mxu0
      %v1104 = vadd.f32 0.0, %v1103
      %v1105 = vpop.f32.mrb[0].mxu0
      %1106 = vmatprep.mubr.bf16.mxu0 0
      %1107 = vmatmul.mubr.bf16.gmra.mrb[0].mxu0 %v1047
      %v1108 = vpop.f32.mrb[0].mxu0
      %v1109 = vadd.f32 0.0, %v1108
      %v1110 = vpop.f32.mrb[0].mxu0
      %v1111 = vpop.f32.mrb[0].mxu0
      %v1112 = vadd.f32 0.0, %v1111
      %v1113 = vpop.f32.mrb[0].mxu0
      %1114 = vmatprep.mubr.bf16.mxu0 0
      %1115 = vmatmul.mubr.bf16.gmra.mrb[0].mxu0 %v1050
      %v1116 = vpop.f32.mrb[0].mxu0
      %v1117 = vadd.f32 0.0, %v1116
      %v1118 = vpop.f32.mrb[0].mxu0
      %v1119 = vpop.f32.mrb[0].mxu0
      %v1120 = vadd.f32 0.0, %v1119
      %v1121 = vpop.f32.mrb[0].mxu0
      %1122 = vmatprep.mubr.bf16.mxu0 0
      %1123 = vmatmul.mubr.bf16.gmra.mrb[0].mxu0 %v1053
      %v1124 = vpop.f32.mrb[0].mxu0
      %v1125 = vadd.f32 0.0, %v1124
      %v1126 = vpop.f32.mrb[0].mxu0
      %v1127 = vpop.f32.mrb[0].mxu0
      %v1128 = vadd.f32 0.0, %v1127
      %v1129 = vpop.f32.mrb[0].mxu0
      %1130 = vdwg.mxu0
      %v1131 = vadd.f32 %v1012, %v1093
      %v1132 = vadd.f32 %v1013, %v1096
      %v1133 = vadd.f32 %v1014, %v1101
      %v1134 = vadd.f32 %v1015, %v1104
      %v1135 = vadd.f32 %v1016, %v1109
      %v1136 = vadd.f32 %v1017, %v1112
      %v1137 = vadd.f32 %v1018, %v1117
      %v1138 = vadd.f32 %v1019, %v1120
      %v1139 = vadd.f32 %v1020, %v1125
      %v1140 = vadd.f32 %v1021, %v1128
      %v1141 = vld [vmem:[#allocation2 + $0x8] sm:$0xc]
      %v1142 = vld [vmem:[#allocation2 + $0xc] sm:$0xf]
      %v1143 = vld [vmem:[#allocation2 + $0x10] sm:$0xf]
      %v1144 = vld [vmem:[#allocation2 + $0x14] sm:$0xf]
      %v1145 = vld [vmem:[#allocation2 + $0x18] sm:$0xf]
      %v1146 = vld [vmem:[#allocation2 + $0x1c] sm:$0xf]
      %v1147 = vld [vmem:[#allocation2 + $0x20] sm:$0xf]
      %v1148 = vld [vmem:[#allocation2 + $0x24] sm:$0xf]
      %v1149 = vld [vmem:[#allocation2 + $0x28] sm:$0xf]
      %v1150 = vld [vmem:[#allocation2 + $0x2c] sm:$0xf]
      %v1151 = vld [vmem:[#allocation2 + $0x30] sm:$0x3]
      %s1152 = scalar_lea.vmem %s1, 24
      %v1153 = vld [vmem:[%s1152] sm:$0xf]
      %v1165 = vunpack.c.l.b16 %v1141
      %v1166 = vunpack.c.l.b16 %v1142
      %v1167 = vunpack.c.l.b16 %v1143
      %v1168 = vunpack.c.l.b16 %v1144
      %v1169 = vunpack.c.l.b16 %v1145
      %v1170 = vunpack.c.l.b16 %v1146
      %v1171 = vunpack.c.l.b16 %v1147
      %v1172 = vunpack.c.l.b16 %v1148
      %v1173 = vunpack.c.l.b16 %v1149
      %v1174 = vunpack.c.l.b16 %v1150
      %v1175 = vunpack.c.l.b16 %v1151
      %v1176 = vpack.c.b16 %v1166, %v1165
      %v1177 = vpack.c.b16 %v1168, %v1167
      %v1178 = vpack.c.b16 %v1170, %v1169
      %v1179 = vpack.c.b16 %v1172, %v1171
      %v1180 = vpack.c.b16 %v1174, %v1173
      %v1181 = vpack.c.b16 %v1175, %v1175
      %v1182 = vrot.slane %v1176, 2
      %v1183 = vrot.slane %v1177, 2
      %v1184 = vsel %vm1028, %v1182, %v1183
      %v1185 = vrot.slane %v1178, 2
      %v1186 = vsel %vm1028, %v1183, %v1185
      %v1187 = vrot.slane %v1179, 2
      %v1188 = vsel %vm1028, %v1185, %v1187
      %v1189 = vrot.slane %v1180, 2
      %v1190 = vsel %vm1028, %v1187, %v1189
      %v1191 = vrot.slane %v1181, 2
      %v1192 = vsel %vm1028, %v1189, %v1191
      %v1194 = vsel %vm410, %v1184, 0
      %v1197 = vsel %vm410, %v1186, 0
      %v1200 = vsel %vm410, %v1188, 0
      %v1203 = vsel %vm410, %v1190, 0
      %v1206 = vsel %vm410, %v1192, 0
      %v1209 = vsel %vm426, %v1153, 0
      %1211 = vmatprep.subr.bf16.mxu0 0
      %1212 = vmatpush1.bf16.msra.mxu0 %v1209
      %1213 = vmatprep.subr.bf16.mxu0 0
      %1214 = vmatpush1.bf16.msra.mxu0 0
      %1215 = vmatprep.subr.bf16.mxu0 0
      %1216 = vmatpush1.bf16.msra.mxu0 0
      %1217 = vmatprep.subr.bf16.mxu0 0
      %1218 = vmatpush1.bf16.msra.mxu0 0
      %1219 = vmatprep.subr.bf16.mxu0 0
      %1220 = vmatpush1.bf16.msra.mxu0 0
      %1221 = vmatprep.subr.bf16.mxu0 0
      %1222 = vmatpush1.bf16.msra.mxu0 0
      %1223 = vmatprep.subr.bf16.mxu0 0
      %1224 = vmatpush1.bf16.msra.mxu0 0
      %1225 = vmatprep.subr.bf16.mxu0 0
      %1226 = vmatpush1.bf16.msra.mxu0 0
      %1227 = vmatprep.subr.bf16.mxu0 0
      %1228 = vmatpush1.bf16.msra.mxu0 0
      %1229 = vmatprep.subr.bf16.mxu0 0
      %1230 = vmatpush1.bf16.msra.mxu0 0
      %1231 = vmatprep.subr.bf16.mxu0 0
      %1232 = vmatpush1.bf16.msra.mxu0 0
      %1233 = vmatprep.subr.bf16.mxu0 0
      %1234 = vmatpush1.bf16.msra.mxu0 0
      %1235 = vmatprep.subr.bf16.mxu0 0
      %1236 = vmatpush1.bf16.msra.mxu0 0
      %1237 = vmatprep.subr.bf16.mxu0 0
      %1238 = vmatpush1.bf16.msra.mxu0 0
      %1239 = vmatprep.subr.bf16.mxu0 0
      %1240 = vmatpush1.bf16.msra.mxu0 0
      %1241 = vmatprep.subr.bf16.mxu0 0
      %1242 = vmatpush1.bf16.msra.mxu0 0
      %1243 = vmatprep.mubr.bf16.mxu0 0
      %1244 = vmatmul.mubr.bf16.gmra.mrb[0].mxu0 %v1194
      %v1245 = vpop.f32.mrb[0].mxu0
      %v1246 = vadd.f32 0.0, %v1245
      %v1247 = vpop.f32.mrb[0].mxu0
      %v1248 = vpop.f32.mrb[0].mxu0
      %v1249 = vadd.f32 0.0, %v1248
      %v1250 = vpop.f32.mrb[0].mxu0
      %1251 = vmatprep.mubr.bf16.mxu0 0
      %1252 = vmatmul.mubr.bf16.gmra.mrb[0].mxu0 %v1197
      %v1253 = vpop.f32.mrb[0].mxu0
      %v1254 = vadd.f32 0.0, %v1253
      %v1255 = vpop.f32.mrb[0].mxu0
      %v1256 = vpop.f32.mrb[0].mxu0
      %v1257 = vadd.f32 0.0, %v1256
      %v1258 = vpop.f32.mrb[0].mxu0
      %1259 = vmatprep.mubr.bf16.mxu0 0
      %1260 = vmatmul.mubr.bf16.gmra.mrb[0].mxu0 %v1200
      %v1261 = vpop.f32.mrb[0].mxu0
      %v1262 = vadd.f32 0.0, %v1261
      %v1263 = vpop.f32.mrb[0].mxu0
      %v1264 = vpop.f32.mrb[0].mxu0
      %v1265 = vadd.f32 0.0, %v1264
      %v1266 = vpop.f32.mrb[0].mxu0
      %1267 = vmatprep.mubr.bf16.mxu0 0
      %1268 = vmatmul.mubr.bf16.gmra.mrb[0].mxu0 %v1203
      %v1269 = vpop.f32.mrb[0].mxu0
      %v1270 = vadd.f32 0.0, %v1269
      %v1271 = vpop.f32.mrb[0].mxu0
      %v1272 = vpop.f32.mrb[0].mxu0
      %v1273 = vadd.f32 0.0, %v1272
      %v1274 = vpop.f32.mrb[0].mxu0
      %1275 = vmatprep.mubr.bf16.mxu0 0
      %1276 = vmatmul.mubr.bf16.gmra.mrb[0].mxu0 %v1206
      %v1277 = vpop.f32.mrb[0].mxu0
      %v1278 = vadd.f32 0.0, %v1277
      %v1279 = vpop.f32.mrb[0].mxu0
      %v1280 = vpop.f32.mrb[0].mxu0
      %v1281 = vadd.f32 0.0, %v1280
      %v1282 = vpop.f32.mrb[0].mxu0
      %1283 = vdwg.mxu0
      %v1284 = vadd.f32 %v1131, %v1246
      %v1285 = vadd.f32 %v1132, %v1249
      %v1286 = vadd.f32 %v1133, %v1254
      %v1287 = vadd.f32 %v1134, %v1257
      %v1288 = vadd.f32 %v1135, %v1262
      %v1289 = vadd.f32 %v1136, %v1265
      %v1290 = vadd.f32 %v1137, %v1270
      %v1291 = vadd.f32 %v1138, %v1273
      %v1292 = vadd.f32 %v1139, %v1278
      %v1293 = vadd.f32 %v1140, %v1281
      %v1294 = vld [vmem:[#allocation2 + $0x30] sm:$0x7]
      %s1295 = scalar_lea.vmem %s1, 28
      %v1296 = vld [vmem:[%s1295] sm:$0xf]
      %v1298 = vunpack.c.l.b16 %v1294
      %v1299 = vpack.c.b16 %v1298, %v1298
      %vm1300 = vsmask.f32 5376
      %v1302 = vshrl.u32 %v1176, 16
      %v1304 = vrot.slane %v1302, 2
      %v1305 = vshll.u32 %v1176, 16
      %v1307 = vrot.slane %v1305, 3
      %v1308 = vor.u32 %v1304, %v1307
      %v1310 = vshrl.u32 %v1177, 16
      %v1312 = vrot.slane %v1310, 2
      %v1313 = vshll.u32 %v1177, 16
      %v1315 = vrot.slane %v1313, 3
      %v1316 = vor.u32 %v1312, %v1315
      %v1317 = vsel %vm1300, %v1308, %v1316
      %v1319 = vshrl.u32 %v1178, 16
      %v1321 = vrot.slane %v1319, 2
      %v1322 = vshll.u32 %v1178, 16
      %v1324 = vrot.slane %v1322, 3
      %v1325 = vor.u32 %v1321, %v1324
      %v1326 = vsel %vm1300, %v1316, %v1325
      %v1328 = vshrl.u32 %v1179, 16
      %v1330 = vrot.slane %v1328, 2
      %v1331 = vshll.u32 %v1179, 16
      %v1333 = vrot.slane %v1331, 3
      %v1334 = vor.u32 %v1330, %v1333
      %v1335 = vsel %vm1300, %v1325, %v1334
      %v1337 = vshrl.u32 %v1180, 16
      %v1339 = vrot.slane %v1337, 2
      %v1340 = vshll.u32 %v1180, 16
      %v1342 = vrot.slane %v1340, 3
      %v1343 = vor.u32 %v1339, %v1342
      %v1344 = vsel %vm1300, %v1334, %v1343
      %v1346 = vshrl.u32 %v1299, 16
      %v1348 = vrot.slane %v1346, 2
      %v1349 = vshll.u32 %v1299, 16
      %v1351 = vrot.slane %v1349, 3
      %v1352 = vor.u32 %v1348, %v1351
      %v1353 = vsel %vm1300, %v1343, %v1352
      %v1355 = vsel %vm410, %v1317, 0
      %v1358 = vsel %vm410, %v1326, 0
      %v1361 = vsel %vm410, %v1335, 0
      %v1364 = vsel %vm410, %v1344, 0
      %v1367 = vsel %vm410, %v1353, 0
      %v1370 = vsel %vm426, %v1296, 0
      %1372 = vmatprep.subr.bf16.mxu0 0
      %1373 = vmatpush1.bf16.msra.mxu0 %v1370
      %1374 = vmatprep.subr.bf16.mxu0 0
      %1375 = vmatpush1.bf16.msra.mxu0 0
      %1376 = vmatprep.subr.bf16.mxu0 0
      %1377 = vmatpush1.bf16.msra.mxu0 0
      %1378 = vmatprep.subr.bf16.mxu0 0
      %1379 = vmatpush1.bf16.msra.mxu0 0
      %1380 = vmatprep.subr.bf16.mxu0 0
      %1381 = vmatpush1.bf16.msra.mxu0 0
      %1382 = vmatprep.subr.bf16.mxu0 0
      %1383 = vmatpush1.bf16.msra.mxu0 0
      %1384 = vmatprep.subr.bf16.mxu0 0
      %1385 = vmatpush1.bf16.msra.mxu0 0
      %1386 = vmatprep.subr.bf16.mxu0 0
      %1387 = vmatpush1.bf16.msra.mxu0 0
      %1388 = vmatprep.subr.bf16.mxu0 0
      %1389 = vmatpush1.bf16.msra.mxu0 0
      %1390 = vmatprep.subr.bf16.mxu0 0
      %1391 = vmatpush1.bf16.msra.mxu0 0
      %1392 = vmatprep.subr.bf16.mxu0 0
      %1393 = vmatpush1.bf16.msra.mxu0 0
      %1394 = vmatprep.subr.bf16.mxu0 0
      %1395 = vmatpush1.bf16.msra.mxu0 0
      %1396 = vmatprep.subr.bf16.mxu0 0
      %1397 = vmatpush1.bf16.msra.mxu0 0
      %1398 = vmatprep.subr.bf16.mxu0 0
      %1399 = vmatpush1.bf16.msra.mxu0 0
      %1400 = vmatprep.subr.bf16.mxu0 0
      %1401 = vmatpush1.bf16.msra.mxu0 0
      %1402 = vmatprep.subr.bf16.mxu0 0
      %1403 = vmatpush1.bf16.msra.mxu0 0
      %1404 = vmatprep.mubr.bf16.mxu0 0
      %1405 = vmatmul.mubr.bf16.gmra.mrb[0].mxu0 %v1355
      %v1406 = vpop.f32.mrb[0].mxu0
      %v1407 = vadd.f32 0.0, %v1406
      %v1408 = vpop.f32.mrb[0].mxu0
      %v1409 = vpop.f32.mrb[0].mxu0
      %v1410 = vadd.f32 0.0, %v1409
      %v1411 = vpop.f32.mrb[0].mxu0
      %1412 = vmatprep.mubr.bf16.mxu0 0
      %1413 = vmatmul.mubr.bf16.gmra.mrb[0].mxu0 %v1358
      %v1414 = vpop.f32.mrb[0].mxu0
      %v1415 = vadd.f32 0.0, %v1414
      %v1416 = vpop.f32.mrb[0].mxu0
      %v1417 = vpop.f32.mrb[0].mxu0
      %v1418 = vadd.f32 0.0, %v1417
      %v1419 = vpop.f32.mrb[0].mxu0
      %1420 = vmatprep.mubr.bf16.mxu0 0
      %1421 = vmatmul.mubr.bf16.gmra.mrb[0].mxu0 %v1361
      %v1422 = vpop.f32.mrb[0].mxu0
      %v1423 = vadd.f32 0.0, %v1422
      %v1424 = vpop.f32.mrb[0].mxu0
      %v1425 = vpop.f32.mrb[0].mxu0
      %v1426 = vadd.f32 0.0, %v1425
      %v1427 = vpop.f32.mrb[0].mxu0
      %1428 = vmatprep.mubr.bf16.mxu0 0
      %1429 = vmatmul.mubr.bf16.gmra.mrb[0].mxu0 %v1364
      %v1430 = vpop.f32.mrb[0].mxu0
      %v1431 = vadd.f32 0.0, %v1430
      %v1432 = vpop.f32.mrb[0].mxu0
      %v1433 = vpop.f32.mrb[0].mxu0
      %v1434 = vadd.f32 0.0, %v1433
      %v1435 = vpop.f32.mrb[0].mxu0
      %1436 = vmatprep.mubr.bf16.mxu0 0
      %1437 = vmatmul.mubr.bf16.gmra.mrb[0].mxu0 %v1367
      %v1438 = vpop.f32.mrb[0].mxu0
      %v1439 = vadd.f32 0.0, %v1438
      %v1440 = vpop.f32.mrb[0].mxu0
      %v1441 = vpop.f32.mrb[0].mxu0
      %v1442 = vadd.f32 0.0, %v1441
      %v1443 = vpop.f32.mrb[0].mxu0
      %1444 = vdwg.mxu0
      %v1445 = vadd.f32 %v1284, %v1407
      %v1446 = vadd.f32 %v1285, %v1410
      %v1447 = vadd.f32 %v1286, %v1415
      %v1448 = vadd.f32 %v1287, %v1418
      %v1449 = vadd.f32 %v1288, %v1423
      %v1450 = vadd.f32 %v1289, %v1426
      %v1451 = vadd.f32 %v1290, %v1431
      %v1452 = vadd.f32 %v1291, %v1434
      %v1453 = vadd.f32 %v1292, %v1439
      %v1454 = vadd.f32 %v1293, %v1442
      %v1455 = vld [vmem:[#allocation2 + $0x8] sm:$0x8]
      %s1456 = scalar_lea.vmem %s1, 32
      %v1457 = vld [vmem:[%s1456] sm:$0xf]
      %v1459 = vunpack.c.l.b16 %v1455
      %v1460 = vpack.c.b16 %v1166, %v1459
      %vm1461 = vcmask 1044480
      %v1462 = vrot.slane %v1460, 3
      %v1463 = vrot.slane %v1177, 3
      %v1464 = vsel %vm1461, %v1462, %v1463
      %v1465 = vrot.slane %v1178, 3
      %v1466 = vsel %vm1461, %v1463, %v1465
      %v1467 = vrot.slane %v1179, 3
      %v1468 = vsel %vm1461, %v1465, %v1467
      %v1469 = vrot.slane %v1180, 3
      %v1470 = vsel %vm1461, %v1467, %v1469
      %v1471 = vrot.slane %v1299, 3
      %v1472 = vsel %vm1461, %v1469, %v1471
      %v1474 = vsel %vm410, %v1464, 0
      %v1477 = vsel %vm410, %v1466, 0
      %v1480 = vsel %vm410, %v1468, 0
      %v1483 = vsel %vm410, %v1470, 0
      %v1486 = vsel %vm410, %v1472, 0
      %v1489 = vsel %vm426, %v1457, 0
      %1491 = vmatprep.subr.bf16.mxu0 0
      %1492 = vmatpush1.bf16.msra.mxu0 %v1489
      %1493 = vmatprep.subr.bf16.mxu0 0
      %1494 = vmatpush1.bf16.msra.mxu0 0
      %1495 = vmatprep.subr.bf16.mxu0 0
      %1496 = vmatpush1.bf16.msra.mxu0 0
      %1497 = vmatprep.subr.bf16.mxu0 0
      %1498 = vmatpush1.bf16.msra.mxu0 0
      %1499 = vmatprep.subr.bf16.mxu0 0
      %1500 = vmatpush1.bf16.msra.mxu0 0
      %1501 = vmatprep.subr.bf16.mxu0 0
      %1502 = vmatpush1.bf16.msra.mxu0 0
      %1503 = vmatprep.subr.bf16.mxu0 0
      %1504 = vmatpush1.bf16.msra.mxu0 0
      %1505 = vmatprep.subr.bf16.mxu0 0
      %1506 = vmatpush1.bf16.msra.mxu0 0
      %1507 = vmatprep.subr.bf16.mxu0 0
      %1508 = vmatpush1.bf16.msra.mxu0 0
      %1509 = vmatprep.subr.bf16.mxu0 0
      %1510 = vmatpush1.bf16.msra.mxu0 0
      %1511 = vmatprep.subr.bf16.mxu0 0
      %1512 = vmatpush1.bf16.msra.mxu0 0
      %1513 = vmatprep.subr.bf16.mxu0 0
      %1514 = vmatpush1.bf16.msra.mxu0 0
      %1515 = vmatprep.subr.bf16.mxu0 0
      %1516 = vmatpush1.bf16.msra.mxu0 0
      %1517 = vmatprep.subr.bf16.mxu0 0
      %1518 = vmatpush1.bf16.msra.mxu0 0
      %1519 = vmatprep.subr.bf16.mxu0 0
      %1520 = vmatpush1.bf16.msra.mxu0 0
      %1521 = vmatprep.subr.bf16.mxu0 0
      %1522 = vmatpush1.bf16.msra.mxu0 0
      %1523 = vmatprep.mubr.bf16.mxu0 0
      %1524 = vmatmul.mubr.bf16.gmra.mrb[0].mxu0 %v1474
      %v1525 = vpop.f32.mrb[0].mxu0
      %v1526 = vadd.f32 0.0, %v1525
      %v1527 = vpop.f32.mrb[0].mxu0
      %v1528 = vpop.f32.mrb[0].mxu0
      %v1529 = vadd.f32 0.0, %v1528
      %v1530 = vpop.f32.mrb[0].mxu0
      %1531 = vmatprep.mubr.bf16.mxu0 0
      %1532 = vmatmul.mubr.bf16.gmra.mrb[0].mxu0 %v1477
      %v1533 = vpop.f32.mrb[0].mxu0
      %v1534 = vadd.f32 0.0, %v1533
      %v1535 = vpop.f32.mrb[0].mxu0
      %v1536 = vpop.f32.mrb[0].mxu0
      %v1537 = vadd.f32 0.0, %v1536
      %v1538 = vpop.f32.mrb[0].mxu0
      %1539 = vmatprep.mubr.bf16.mxu0 0
      %1540 = vmatmul.mubr.bf16.gmra.mrb[0].mxu0 %v1480
      %v1541 = vpop.f32.mrb[0].mxu0
      %v1542 = vadd.f32 0.0, %v1541
      %v1543 = vpop.f32.mrb[0].mxu0
      %v1544 = vpop.f32.mrb[0].mxu0
      %v1545 = vadd.f32 0.0, %v1544
      %v1546 = vpop.f32.mrb[0].mxu0
      %1547 = vmatprep.mubr.bf16.mxu0 0
      %1548 = vmatmul.mubr.bf16.gmra.mrb[0].mxu0 %v1483
      %v1549 = vpop.f32.mrb[0].mxu0
      %v1550 = vadd.f32 0.0, %v1549
      %v1551 = vpop.f32.mrb[0].mxu0
      %v1552 = vpop.f32.mrb[0].mxu0
      %v1553 = vadd.f32 0.0, %v1552
      %v1554 = vpop.f32.mrb[0].mxu0
      %1555 = vmatprep.mubr.bf16.mxu0 0
      %1556 = vmatmul.mubr.bf16.gmra.mrb[0].mxu0 %v1486
      %v1557 = vpop.f32.mrb[0].mxu0
      %v1558 = vadd.f32 0.0, %v1557
      %v1559 = vpop.f32.mrb[0].mxu0
      %v1560 = vpop.f32.mrb[0].mxu0
      %v1561 = vadd.f32 0.0, %v1560
      %v1562 = vpop.f32.mrb[0].mxu0
      %1563 = vdwg.mxu0
      %v1564 = vadd.f32 %v1445, %v1526
      %v1565 = vadd.f32 %v1446, %v1529
      %v1566 = vadd.f32 %v1447, %v1534
      %v1567 = vadd.f32 %v1448, %v1537
      %v1568 = vadd.f32 %v1449, %v1542
      %v1569 = vadd.f32 %v1450, %v1545
      %v1570 = vadd.f32 %v1451, %v1550
      %v1571 = vadd.f32 %v1452, %v1553
      %v1572 = vadd.f32 %v1453, %v1558
      %v1573 = vadd.f32 %v1454, %v1561
      %v1574 = vld [vmem:[%s2] sm:$0x1]
      %v1576 = vlaneseq
      %v1577 = vshrl.u32 %v1576, 7
      %v1578 = vsub.s32 0, %v1577
      %v1579 = vrot.slane %v1574, %v1578
      %v1581 = vadd.f32 %v1564, %v1579
      %v1582 = vadd.f32 %v1565, %v1579
      %v1583 = vadd.f32 %v1566, %v1579
      %v1584 = vadd.f32 %v1567, %v1579
      %v1585 = vadd.f32 %v1568, %v1579
      %v1586 = vadd.f32 %v1569, %v1579
      %v1587 = vadd.f32 %v1570, %v1579
      %v1588 = vadd.f32 %v1571, %v1579
      %v1589 = vadd.f32 %v1572, %v1579
      %v1590 = vadd.f32 %v1573, %v1579
      %v1591 = vmax.f32 %v1581, 0.0
      %v1592 = vmax.f32 %v1582, 0.0
      %v1593 = vmax.f32 %v1583, 0.0
      %v1594 = vmax.f32 %v1584, 0.0
      %v1595 = vmax.f32 %v1585, 0.0
      %v1596 = vmax.f32 %v1586, 0.0
      %v1597 = vmax.f32 %v1587, 0.0
      %v1598 = vmax.f32 %v1588, 0.0
      %v1599 = vmax.f32 %v1589, 0.0
      %v1600 = vmax.f32 %v1590, 0.0
      %v1601 = vpack.c.bf16 %v1592, %v1591
      %v1602 = vpack.c.bf16 %v1594, %v1593
      %v1603 = vpack.c.bf16 %v1596, %v1595
      %v1604 = vpack.c.bf16 %v1598, %v1597
      %v1605 = vpack.c.bf16 %v1600, %v1599
      %v1611 = vunpack.c.l.b16 %v1601
      %v1612 = vunpack.c.h.b16 %v1601
      %v1613 = vunpack.c.l.b16 %v1602
      %v1614 = vunpack.c.h.b16 %v1602
      %v1615 = vunpack.c.l.b16 %v1603
      %v1616 = vunpack.c.h.b16 %v1603
      %v1617 = vunpack.c.l.b16 %v1604
      %v1618 = vunpack.c.h.b16 %v1604
      %v1619 = vunpack.c.l.b16 %v1605
      %v1620 = vunpack.c.h.b16 %v1605
      %v1621 = vpack.c.b16 %v1611, %v1611
      %v1622 = vpack.c.b16 %v1612, %v1612
      %v1623 = vpack.c.b16 %v1613, %v1613
      %v1624 = vpack.c.b16 %v1614, %v1614
      %v1625 = vpack.c.b16 %v1615, %v1615
      %v1626 = vpack.c.b16 %v1616, %v1616
      %v1627 = vpack.c.b16 %v1617, %v1617
      %v1628 = vpack.c.b16 %v1618, %v1618
      %v1629 = vpack.c.b16 %v1619, %v1619
      %v1630 = vpack.c.b16 %v1620, %v1620
      %1641 = vst [vmem:[%s208] sm:$0xf] %v1621
      %1642 = vst [vmem:[%s208 + $0x4] sm:$0xf] %v1622
      %1643 = vst [vmem:[%s208 + $0x8] sm:$0xf] %v1623
      %1644 = vst [vmem:[%s208 + $0xc] sm:$0xf] %v1624
      %1645 = vst [vmem:[%s208 + $0x10] sm:$0xf] %v1625
      %1646 = vst [vmem:[%s208 + $0x14] sm:$0xf] %v1626
      %1647 = vst [vmem:[%s208 + $0x18] sm:$0xf] %v1627
      %1648 = vst [vmem:[%s208 + $0x1c] sm:$0xf] %v1628
      %1649 = vst [vmem:[%s208 + $0x20] sm:$0xf] %v1629
      %1650 = vst [vmem:[%s208 + $0x24] sm:$0xf] %v1630
      %s1651 = smul.u32 10, %s19
      %p1652 = scmp.lt.s32.totalorder %s18, 1
      %s1653 = scalar_select %p1652, %s18, 1
      %p1654 = scmp.lt.s32.totalorder %s1651, 19
      %s1655 = scalar_select %p1654, %s1651, 19
      %s1656 = smul.addr %s1653, 20
      %s1657 = sadd.s32 %s1655, %s1656
      %s1658 = smul.addr %s1657, 4
      %s1659 = scalar_lea.vmem %s3, %s1658
      // Predicated region
      $region37: #{fwd.5} parent=31 // pred_check
        %p1660 = pneg %p116
      $region38: #{fwd.5} parent=31 // pred_check_branch
        %1662 = sbr.rel (%p1660) target = $region40
      $region39: #{fwd.5} parent=31 // pred_region
        %s1663 = smul.u32 10, %s19
      $region40: #{fwd.5} parent=31 // pred_fallthru
        _
    $region32: #{fwd.5} parent=5 // pred_fallthru
      _
    %p1664 = scmp.le.s32.totalorder 2, %s9
    // Predicated region
    $region41: #{fwd.5} parent=5 // pred_check
      %p1665 = pneg %p1664
    $region42: #{fwd.5} parent=5 // pred_check_branch
      %1667 = sbr.rel (%p1665) target = $region44
    $region43: #{fwd.5} parent=5 // pred_region
      %s1668 = ssub.s32 %s9, 2
      // Predicated region
      $region45: #{fwd.5} parent=43 // pred_check
        %p1669 = pneg %p122
      $region46: #{fwd.5} parent=43 // pred_check_branch
        %1671 = sbr.rel (%p1669) target = $region48
      $region47: #{fwd.5} parent=43 // pred_region
        %s1672 = smul.u32 10, %s21
        %p1673 = scmp.lt.s32.totalorder %s20, 1
        %s1674 = scalar_select %p1673, %s20, 1
        %p1675 = scmp.lt.s32.totalorder %s1672, 19
        %s1676 = scalar_select %p1675, %s1672, 19
        %s1677 = smul.addr %s1674, 20
        %s1678 = sadd.s32 %s1676, %s1677
        %s1679 = smul.addr %s1678, 4
        %s1680 = scalar_lea.vmem %s3, %s1679
      $region48: #{fwd.5} parent=43 // pred_fallthru
        _
    $region44: #{fwd.5} parent=5 // pred_fallthru
      _
  $region6: #{fwd.5} parent=0 // loop_footer
    %s13 = sadd.s32 1, %s9
  $region7: #{fwd.5} parent=0 // loop_footer_branch
    %8 = sbr.rel target = $region3
  $region8: #{fwd.5} parent=0 // loop_exit
    _

// kernel: fwd.6
$region0: #{fwd.6}
  #allocation0 [shape = 'u32[]', space=smem, size = 0x4, offset = 0x4, fixed_abs, tag = 'smem constant byte address 0x4 - core index']
  #allocation1 [shape = 'u32[144,128]{1,0:T(1,128)}', space=vmem, size = 0x12000, scoped, tag = 'internal scratch']
  #allocation2 [shape = 'bf16[46,32]{1,0:T(8,128)(2,1)}', space=vmem, size = 0x3000, scoped, tag = 'scratch operand']
  #allocation3 [shape = 'bf16[5,32]{1,0:T(8,128)(2,1)}', space=vmem, size = 0x800, scoped, tag = 'scratch operand']
  %s0 = inlined_call_operand.vmem [shape: bf16[2,40,32], index: 0, kind: input, shape index: {}]
  %s1 = inlined_call_operand.vmem [shape: bf16[4,32,128], index: 1, kind: input, shape index: {}]
  %s2 = inlined_call_operand.vmem [shape: f32[1,128], index: 2, kind: input, shape index: {}]
  %s3 = inlined_call_operand.vmem [shape: bf16[2,40,128], index: 3, kind: output, shape index: {}]
  %s4 = sld [smem:[#allocation0]]
  $region49: #{fwd.6} parent=0
    _
  %s6 = ssub.s32 1, %s4
  %s7 = scalar_select 0, %s6, %s4
  loop: start=0, step=1, limit=4
  $region2: #{fwd.6} parent=0 // loop_pre_header
    _
  $region3: #{fwd.6} parent=0 // loop_header
    %s9 = sphi 0, %s13
    %p10 = scmp.ge.s32.totalorder %s9, 4
    %s16 = sphi 0, %s28
    %s17 = sphi 0, %s24
    %s18 = sphi 0, %s16
    %s19 = sphi 0, %s17
    %s20 = sphi 0, %s18
    %s21 = sphi 0, %s19
    %s33 = sphi 0, %s35
    %s36 = sphi 0, %s33
    %s37 = sphi 0, %s36
    %s53 = sphi 0, %s37
    %s57 = sphi 0, %s57
    %s59 = sphi 0, %s57
    %s60 = sphi 0, %s59
    %s74 = sphi 0, %s60
    %s78 = sphi 0, %s78
    %s80 = sphi 0, %s78
    %s81 = sphi 0, %s80
    %s95 = sphi 0, %s81
    %s103 = sphi 0, %s105
    %s106 = sphi 0, %s103
    %s107 = sphi 0, %s106
    %s123 = sphi 0, %s107
  $region4: #{fwd.6} parent=0 // loop_header_branch
    %12 = sbr.rel (%p10) target = $region8
  $region5: #{fwd.6} parent=0 // loop_body
    %s14 = ssub.s32 %s9, 1
    %s15 = ssub.s32 %s9, 2
    %s22 = sadd.s32 1, %s17
    %p23 = scmp.ge.s32.totalorder %s22, 1
    %s24 = scalar_select %p23, 0, %s22
    %s25 = sadd.s32 1, %s16
    %s26 = scalar_select %p23, %s25, %s16
    %p27 = scmp.ge.s32.totalorder %s26, 2
    %s28 = scalar_select %p27, 0, %s26
    %s29 = ssub.s32 %s16, %s28
    %s30 = ssub.s32 %s17, %s24
    %s31 = sor.u32 %s29, %s30
    %p32 = scmp.eq.s32.totalorder %s31, 0
    %s34 = sadd.s32 %s33, 1
    %s35 = scalar_select %p32, %s33, %s34
    %p38 = pneg %p32
    %p39 = scmp.eq.s32.totalorder %s9, 1
    %p40 = por %p38, %p39
    %p41 = scmp.ne.s32.totalorder %s33, %s36
    %p42 = scmp.eq.s32.totalorder %s9, 0
    %p43 = por %p41, %p42
    %p44 = scmp.ne.s32.totalorder %s33, %s36
    %p45 = scmp.eq.s32.totalorder %s14, 1
    %p46 = por %p44, %p45
    %p47 = scmp.ne.s32.totalorder %s36, %s37
    %p48 = scmp.eq.s32.totalorder %s14, 0
    %p49 = por %p47, %p48
    %p50 = scmp.ne.s32.totalorder %s36, %s37
    %p51 = scmp.eq.s32.totalorder %s15, 1
    %p52 = por %p50, %p51
    %p54 = scmp.ne.s32.totalorder %s37, %s53
    %p55 = scmp.eq.s32.totalorder %s15, 0
    %p56 = por %p54, %p55
    %s58 = sadd.s32 %s57, 1
    %p61 = scmp.eq.s32.totalorder %s9, 1
    %p62 = scmp.ne.s32.totalorder %s57, %s59
    %p63 = scmp.eq.s32.totalorder %s9, 0
    %p64 = por %p62, %p63
    %p65 = scmp.ne.s32.totalorder %s57, %s59
    %p66 = scmp.eq.s32.totalorder %s14, 1
    %p67 = por %p65, %p66
    %p68 = scmp.ne.s32.totalorder %s59, %s60
    %p69 = scmp.eq.s32.totalorder %s14, 0
    %p70 = por %p68, %p69
    %p71 = scmp.ne.s32.totalorder %s59, %s60
    %p72 = scmp.eq.s32.totalorder %s15, 1
    %p73 = por %p71, %p72
    %p75 = scmp.ne.s32.totalorder %s60, %s74
    %p76 = scmp.eq.s32.totalorder %s15, 0
    %p77 = por %p75, %p76
    %s79 = sadd.s32 %s78, 1
    %p82 = scmp.eq.s32.totalorder %s9, 1
    %p83 = scmp.ne.s32.totalorder %s78, %s80
    %p84 = scmp.eq.s32.totalorder %s9, 0
    %p85 = por %p83, %p84
    %p86 = scmp.ne.s32.totalorder %s78, %s80
    %p87 = scmp.eq.s32.totalorder %s14, 1
    %p88 = por %p86, %p87
    %p89 = scmp.ne.s32.totalorder %s80, %s81
    %p90 = scmp.eq.s32.totalorder %s14, 0
    %p91 = por %p89, %p90
    %p92 = scmp.ne.s32.totalorder %s80, %s81
    %p93 = scmp.eq.s32.totalorder %s15, 1
    %p94 = por %p92, %p93
    %p96 = scmp.ne.s32.totalorder %s81, %s95
    %p97 = scmp.eq.s32.totalorder %s15, 0
    %p98 = por %p96, %p97
    %s99 = ssub.s32 %s16, %s28
    %s100 = ssub.s32 %s17, %s24
    %s101 = sor.u32 %s99, %s100
    %p102 = scmp.eq.s32.totalorder %s101, 0
    %s104 = sadd.s32 %s103, 1
    %s105 = scalar_select %p102, %s103, %s104
    %p108 = pneg %p102
    %p109 = scmp.eq.s32.totalorder %s9, 1
    %p110 = por %p108, %p109
    %p111 = scmp.ne.s32.totalorder %s103, %s106
    %p112 = scmp.eq.s32.totalorder %s9, 0
    %p113 = por %p111, %p112
    %p114 = scmp.ne.s32.totalorder %s103, %s106
    %p115 = scmp.eq.s32.totalorder %s14, 1
    %p116 = por %p114, %p115
    %p117 = scmp.ne.s32.totalorder %s106, %s107
    %p118 = scmp.eq.s32.totalorder %s14, 0
    %p119 = por %p117, %p118
    %p120 = scmp.ne.s32.totalorder %s106, %s107
    %p121 = scmp.eq.s32.totalorder %s15, 1
    %p122 = por %p120, %p121
    %p124 = scmp.ne.s32.totalorder %s107, %s123
    %p125 = scmp.eq.s32.totalorder %s15, 0
    %p126 = por %p124, %p125
    %p127 = scmp.le.s32.totalorder 1, %s9
    %p128 = scmp.lt.s32.totalorder %s9, 3
    %p129 = pnand %p127, %p128
    %p130 = pneg %p129
    // Predicated region
    $region9: #{fwd.6} parent=5 // pred_check
      _
    $region10: #{fwd.6} parent=5 // pred_check_branch
      %132 = sbr.rel (%p129) target = $region12
    $region11: #{fwd.6} parent=5 // pred_region
      %s133 = ssub.s32 %s9, 1
      // Predicated region
      $region13: #{fwd.6} parent=11 // pred_check
        %p134 = pneg %p70
      $region14: #{fwd.6} parent=11 // pred_check_branch
        %136 = sbr.rel (%p134) target = $region16
      $region15: #{fwd.6} parent=11 // pred_region
        _
      $region16: #{fwd.6} parent=11 // pred_fallthru
        _
      // Predicated region
      $region17: #{fwd.6} parent=11 // pred_check
        %p137 = pneg %p91
      $region18: #{fwd.6} parent=11 // pred_check_branch
        %139 = sbr.rel (%p137) target = $region20
      $region19: #{fwd.6} parent=11 // pred_region
        _
      $region20: #{fwd.6} parent=11 // pred_fallthru
        _
    $region12: #{fwd.6} parent=5 // pred_fallthru
      _
    %p140 = scmp.lt.s32.totalorder %s9, 2
    // Predicated region
    $region21: #{fwd.6} parent=5 // pred_check
      %p141 = pneg %p140
    $region22: #{fwd.6} parent=5 // pred_check_branch
      %143 = sbr.rel (%p141) target = $region24
    $region23: #{fwd.6} parent=5 // pred_region
      // Predicated region
      $region25: #{fwd.6} parent=23 // pred_check
        %p144 = pneg %p43
      $region26: #{fwd.6} parent=23 // pred_check_branch
        %146 = sbr.rel (%p144) target = $region28
      $region27: #{fwd.6} parent=23 // pred_region
        %s147 = smul.u32 5, %s17
        %p148 = scmp.lt.s32.totalorder %s16, 1
        %s149 = scalar_select %p148, %s16, 1
        %p150 = scmp.lt.s32.totalorder %s147, 4
        %s151 = scalar_select %p150, %s147, 4
        %s152 = smul.addr %s149, 5
        %s153 = sadd.s32 %s151, %s152
        %s154 = smul.addr %s153, 4
        %s155 = scalar_lea.vmem %s0, %s154
        %s156 = smul.u32 5, %s17
      $region28: #{fwd.6} parent=23 // pred_fallthru
        _
    $region24: #{fwd.6} parent=5 // pred_fallthru
      _
    %p157 = scmp.le.s32.totalorder 1, %s9
    %p158 = scmp.lt.s32.totalorder %s9, 3
    %p159 = pnand %p157, %p158
    %p160 = pneg %p159
    // Predicated region
    $region29: #{fwd.6} parent=5 // pred_check
      _
    $region30: #{fwd.6} parent=5 // pred_check_branch
      %162 = sbr.rel (%p159) target = $region32
    $region31: #{fwd.6} parent=5 // pred_region
      %s163 = ssub.s32 %s9, 1
      %s164 = smul.u32 5, %s19
      %p165 = scmp.lt.s32.totalorder %s18, 1
      %s166 = scalar_select %p165, %s18, 1
      %p167 = scmp.lt.s32.totalorder %s164, 4
      %s168 = scalar_select %p167, %s164, 4
      %s169 = smul.addr %s166, 5
      %s170 = sadd.s32 %s168, %s169
      %s171 = smul.addr %s170, 4
      %s172 = scalar_lea.vmem %s0, %s171
      %p173 = pneg %p49
      %p174 = pneg %p46
      %p175 = pneg %p70
      %p176 = pneg %p67
      %p177 = pneg %p91
      %p178 = pneg %p88
      %p179 = pneg %p119
      %p180 = pneg %p116
      %s181 = smul.u32 5, %s19
      %p182 = scmp.lt.s32.totalorder %s18, 1
      %s183 = scalar_select %p182, %s18, 1
      %p184 = scmp.lt.s32.totalorder %s181, 4
      %s185 = scalar_select %p184, %s181, 4
      %s186 = smul.addr %s183, 5
      %s187 = sadd.s32 %s185, %s186
      %s188 = smul.addr %s187, 4
      %s189 = scalar_lea.vmem %s3, %s188
      %s190 = smul.u32 5, %s19
      %p191 = scmp.lt.s32.totalorder %s18, 1
      %s192 = scalar_select %p191, %s18, 1
      %p193 = scmp.lt.s32.totalorder %s190, 4
      %s194 = scalar_select %p193, %s190, 4
      %s195 = smul.addr %s192, 5
      %s196 = sadd.s32 %s194, %s195
      %s197 = smul.addr %s196, 4
      %s198 = scalar_lea.vmem %s0, %s197
      %s199 = smul.u32 5, %s19
      %s200 = smul.u32 5, %s19
      %p201 = scmp.lt.s32.totalorder %s18, 1
      %s202 = scalar_select %p201, %s18, 1
      %p203 = scmp.lt.s32.totalorder %s200, 4
      %s204 = scalar_select %p203, %s200, 4
      %s205 = smul.addr %s202, 5
      %s206 = sadd.s32 %s204, %s205
      %s207 = smul.addr %s206, 4
      %s208 = scalar_lea.vmem %s3, %s207
      %s209 = smul.u32 5, %s19
      %p211 = scmp.eq.s32.totalorder %s19, 0
      // Predicated region
      $region33: #{fwd.6} parent=31 // pred_check
        %p212 = pneg %p211
      $region34: #{fwd.6} parent=31 // pred_check_branch
        %214 = sbr.rel (%p212) target = $region36
      $region35: #{fwd.6} parent=31 // pred_region
        %vm215 = vcmask 257024
        %216 = vst.msk [vmem:[#allocation2] sm:$0xf] %vm215, 0
        %217 = vst.msk [vmem:[#allocation2 + $0x4] sm:$0xf] %vm215, 0
        %218 = vst.msk [vmem:[#allocation2 + $0x8] sm:$0xf] %vm215, 0
        %219 = vst.msk [vmem:[#allocation2 + $0xc] sm:$0xf] %vm215, 0
        %220 = vst.msk [vmem:[#allocation2 + $0x10] sm:$0xf] %vm215, 0
        %vm221 = vcmask 256000
        %222 = vst.msk [vmem:[#allocation2 + $0x14] sm:$0x7] %vm221, 0
        %vm223 = vcmask 256000
        %vm224 = vsmask.f32 2304
        %vm225 = vmand %vm223, %vm224
        %v226 = vld [vmem:[#allocation3] sm:$0x7]
        %v227 = vsel %vm225, 0, %v226
        %228 = vst [vmem:[#allocation3] sm:$0x7] %v227
      $region36: #{fwd.6} parent=31 // pred_fallthru
        _
      %v229 = vld [vmem:[#allocation3] sm:$0x7]
      %vm230 = vcmask 256000
      %vm231 = vsmask.f32 2304
      %vm232 = vmand %vm230, %vm231
      %v233 = vld [vmem:[#allocation2] sm:$0x7]
      %v234 = vsel %vm232, %v229, %v233
      %235 = vst [vmem:[#allocation2] sm:$0x7] %v234
      %v236 = vld [vmem:[%s198] sm:$0xf]
      %v237 = vld [vmem:[%s198 + $0x4] sm:$0xf]
      %v238 = vld [vmem:[%s198 + $0x8] sm:$0xf]
      %v239 = vld [vmem:[%s198 + $0xc] sm:$0xf]
      %v240 = vld [vmem:[%s198 + $0x10] sm:$0xf]
      %vm241 = vsmask.f32 6416
      %vm242 = vmor %vm231, %vm241
      %v244 = vshrl.u32 %v236, 16
      %v246 = vrot.slane %v244, 5
      %v247 = vshll.u32 %v236, 16
      %v249 = vrot.slane %v247, 6
      %v250 = vor.u32 %v246, %v249
      %v251 = vrot.slane %v250, 4
      %v253 = vshrl.u32 %v237, 16
      %v255 = vrot.slane %v253, 5
      %v256 = vshll.u32 %v237, 16
      %v258 = vrot.slane %v256, 6
      %v259 = vor.u32 %v255, %v258
      %v260 = vsel %vm242, %v251, %v259
      %v261 = vrot.slane %v259, 4
      %v263 = vshrl.u32 %v238, 16
      %v265 = vrot.slane %v263, 5
      %v266 = vshll.u32 %v238, 16
      %v268 = vrot.slane %v266, 6
      %v269 = vor.u32 %v265, %v268
      %v270 = vsel %vm242, %v261, %v269
      %v271 = vrot.slane %v269, 4
      %v273 = vshrl.u32 %v239, 16
      %v275 = vrot.slane %v273, 5
      %v276 = vshll.u32 %v239, 16
      %v278 = vrot.slane %v276, 6
      %v279 = vor.u32 %v275, %v278
      %v280 = vsel %vm242, %v271, %v279
      %v281 = vrot.slane %v279, 4
      %v283 = vshrl.u32 %v240, 16
      %v285 = vrot.slane %v283, 5
      %v286 = vshll.u32 %v240, 16
      %v288 = vrot.slane %v286, 6
      %v289 = vor.u32 %v285, %v288
      %v290 = vsel %vm242, %v281, %v289
      %v291 = vrot.slane %v289, 4
      %vm298 = vcmask 257026
      %vm299 = vsmask.f32 7946
      %vm300 = vmand %vm298, %vm299
      %v301 = vld [vmem:[#allocation2] sm:$0xc]
      %v302 = vsel %vm300, %v250, %v301
      %303 = vst [vmem:[#allocation2] sm:$0xc] %v302
      %vm304 = vcmask 257024
      %305 = vst.msk [vmem:[#allocation2 + $0x4] sm:$0xf] %vm304, %v260
      %306 = vst.msk [vmem:[#allocation2 + $0x8] sm:$0xf] %vm304, %v270
      %307 = vst.msk [vmem:[#allocation2 + $0xc] sm:$0xf] %vm304, %v280
      %308 = vst.msk [vmem:[#allocation2 + $0x10] sm:$0xf] %vm304, %v290
      %v309 = vld [vmem:[#allocation2 + $0x14] sm:$0x7]
      %v310 = vsel %vm232, %v291, %v309
      %311 = vst [vmem:[#allocation2 + $0x14] sm:$0x7] %v310
      %v312 = vld [vmem:[#allocation2 + $0x14] sm:$0x7]
      %v313 = vld [vmem:[#allocation3] sm:$0x7]
      %v314 = vsel %vm232, %v312, %v313
      %315 = vst [vmem:[#allocation3] sm:$0x7] %v314
      %v316 = vld [vmem:[#allocation2] sm:$0xf]
      %v317 = vld [vmem:[#allocation2 + $0x4] sm:$0xf]
      %v318 = vld [vmem:[#allocation2 + $0x8] sm:$0xf]
      %v319 = vld [vmem:[#allocation2 + $0xc] sm:$0xf]
      %v320 = vld [vmem:[#allocation2 + $0x10] sm:$0xf]
      %v321 = vld [vmem:[%s1] sm:$0xf]
      %v322 = vld [vmem:[%s1 + $0x4] sm:$0xf]
      %v323 = vld [vmem:[%s1 + $0x8] sm:$0xf]
      %v324 = vld [vmem:[%s1 + $0xc] sm:$0xf]
      %v325 = vld [vmem:[#allocation2 + $0x14] sm:$0x1]
      %s326 = scalar_lea.vmem %s1, 16
      %v327 = vld [vmem:[%s326] sm:$0xf]
      %v328 = vld [vmem:[%s326 + $0x4] sm:$0xf]
      %v329 = vld [vmem:[%s326 + $0x8] sm:$0xf]
      %v330 = vld [vmem:[%s326 + $0xc] sm:$0xf]
      %v337 = vunpack.c.l.b16 %v316
      %v338 = vunpack.c.l.b16 %v317
      %v339 = vunpack.c.l.b16 %v318
      %v340 = vunpack.c.l.b16 %v319
      %v341 = vunpack.c.l.b16 %v320
      %v342 = vunpack.c.l.b16 %v325
      %v343 = vpack.c.b16 %v338, %v337
      %v344 = vpack.c.b16 %v340, %v339
      %v345 = vpack.c.b16 %v342, %v341
      %vm346 = vsmask.f32 7424
      %v348 = vshrl.u32 %v343, 16
      %v350 = vshll.u32 %v343, 16
      %v352 = vrot.slane %v350, 1
      %v353 = vor.u32 %v348, %v352
      %v355 = vshll.u32 %v344, 16
      %v357 = vrot.slane %v355, 1
      %v358 = vsel %vm346, %v353, %v357
      %v359 = vshrl.u32 %v344, 16
      %v361 = vor.u32 %v359, %v357
      %v363 = vshll.u32 %v345, 16
      %v365 = vrot.slane %v363, 1
      %v366 = vsel %vm346, %v361, %v365
      %v367 = vshrl.u32 %v345, 16
      %v369 = vor.u32 %v367, %v365
      %v374 = vunpack.c.l.b16 %v327
      %v375 = vunpack.c.l.b16 %v328
      %v376 = vunpack.c.l.b16 %v329
      %v377 = vunpack.c.l.b16 %v330
      %v378 = vpack.c.b16 %v375, %v374
      %v379 = vpack.c.b16 %v377, %v376
      %vm382 = vcmask 261120
      %v384 = vsel %vm382, %v358, 0
      %v387 = vsel %vm382, %v366, 0
      %v390 = vsel %vm382, %v369, 0
      %392 = vmatprep.subr.bf16.mxu0 0
      %393 = vmatpush1.bf16.msra.mxu0 %v378
      %394 = vmatprep.subr.bf16.mxu0 0
      %395 = vmatpush1.bf16.msra.mxu0 %v379
      %396 = vmatprep.subr.bf16.mxu0 0
      %397 = vmatpush1.bf16.msra.mxu0 0
      %398 = vmatprep.subr.bf16.mxu0 0
      %399 = vmatpush1.bf16.msra.mxu0 0
      %400 = vmatprep.subr.bf16.mxu0 0
      %401 = vmatpush1.bf16.msra.mxu0 0
      %402 = vmatprep.subr.bf16.mxu0 0
      %403 = vmatpush1.bf16.msra.mxu0 0
      %404 = vmatprep.subr.bf16.mxu0 0
      %405 = vmatpush1.bf16.msra.mxu0 0
      %406 = vmatprep.subr.bf16.mxu0 0
      %407 = vmatpush1.bf16.msra.mxu0 0
      %408 = vmatprep.subr.bf16.mxu0 0
      %409 = vmatpush1.bf16.msra.mxu0 0
      %410 = vmatprep.subr.bf16.mxu0 0
      %411 = vmatpush1.bf16.msra.mxu0 0
      %412 = vmatprep.subr.bf16.mxu0 0
      %413 = vmatpush1.bf16.msra.mxu0 0
      %414 = vmatprep.subr.bf16.mxu0 0
      %415 = vmatpush1.bf16.msra.mxu0 0
      %416 = vmatprep.subr.bf16.mxu0 0
      %417 = vmatpush1.bf16.msra.mxu0 0
      %418 = vmatprep.subr.bf16.mxu0 0
      %419 = vmatpush1.bf16.msra.mxu0 0
      %420 = vmatprep.subr.bf16.mxu0 0
      %421 = vmatpush1.bf16.msra.mxu0 0
      %422 = vmatprep.subr.bf16.mxu0 0
      %423 = vmatpush1.bf16.msra.mxu0 0
      %424 = vmatprep.mubr.bf16.mxu0 0
      %425 = vmatmul.mubr.bf16.gmra.mrb[0].mxu0 %v384
      %v426 = vpop.f32.mrb[0].mxu0
      %v427 = vadd.f32 0.0, %v426
      %v428 = vpop.f32.mrb[0].mxu0
      %v429 = vpop.f32.mrb[0].mxu0
      %v430 = vadd.f32 0.0, %v429
      %v431 = vpop.f32.mrb[0].mxu0
      %432 = vmatprep.mubr.bf16.mxu0 0
      %433 = vmatmul.mubr.bf16.gmra.mrb[0].mxu0 %v387
      %v434 = vpop.f32.mrb[0].mxu0
      %v435 = vadd.f32 0.0, %v434
      %v436 = vpop.f32.mrb[0].mxu0
      %v437 = vpop.f32.mrb[0].mxu0
      %v438 = vadd.f32 0.0, %v437
      %v439 = vpop.f32.mrb[0].mxu0
      %440 = vmatprep.mubr.bf16.mxu0 0
      %441 = vmatmul.mubr.bf16.gmra.mrb[0].mxu0 %v390
      %v442 = vpop.f32.mrb[0].mxu0
      %v443 = vadd.f32 0.0, %v442
      %v444 = vpop.f32.mrb[0].mxu0
      %v445 = vpop.f32.mrb[0].mxu0
      %v446 = vpop.f32.mrb[0].mxu0
      %447 = vdwg.mxu0
      %v448 = vpack.c.b16 %v341, %v341
      %v453 = vunpack.c.l.b16 %v321
      %v454 = vunpack.c.l.b16 %v322
      %v455 = vunpack.c.l.b16 %v323
      %v456 = vunpack.c.l.b16 %v324
      %v457 = vpack.c.b16 %v454, %v453
      %v458 = vpack.c.b16 %v456, %v455
      %v461 = vsel %vm382, %v343, 0
      %v463 = vsel %vm382, %v344, 0
      %v466 = vsel %vm382, %v448, 0
      %468 = vmatprep.subr.bf16.mxu0 0
      %469 = vmatpush1.bf16.msra.mxu0 %v457
      %470 = vmatprep.subr.bf16.mxu0 0
      %471 = vmatpush1.bf16.msra.mxu0 %v458
      %472 = vmatprep.subr.bf16.mxu0 0
      %473 = vmatpush1.bf16.msra.mxu0 0
      %474 = vmatprep.subr.bf16.mxu0 0
      %475 = vmatpush1.bf16.msra.mxu0 0
      %476 = vmatprep.subr.bf16.mxu0 0
      %477 = vmatpush1.bf16.msra.mxu0 0
      %478 = vmatprep.subr.bf16.mxu0 0
      %479 = vmatpush1.bf16.msra.mxu0 0
      %480 = vmatprep.subr.bf16.mxu0 0
      %481 = vmatpush1.bf16.msra.mxu0 0
      %482 = vmatprep.subr.bf16.mxu0 0
      %483 = vmatpush1.bf16.msra.mxu0 0
      %484 = vmatprep.subr.bf16.mxu0 0
      %485 = vmatpush1.bf16.msra.mxu0 0
      %486 = vmatprep.subr.bf16.mxu0 0
      %487 = vmatpush1.bf16.msra.mxu0 0
      %488 = vmatprep.subr.bf16.mxu0 0
      %489 = vmatpush1.bf16.msra.mxu0 0
      %490 = vmatprep.subr.bf16.mxu0 0
      %491 = vmatpush1.bf16.msra.mxu0 0
      %492 = vmatprep.subr.bf16.mxu0 0
      %493 = vmatpush1.bf16.msra.mxu0 0
      %494 = vmatprep.subr.bf16.mxu0 0
      %495 = vmatpush1.bf16.msra.mxu0 0
      %496 = vmatprep.subr.bf16.mxu0 0
      %497 = vmatpush1.bf16.msra.mxu0 0
      %498 = vmatprep.subr.bf16.mxu0 0
      %499 = vmatpush1.bf16.msra.mxu0 0
      %500 = vmatprep.mubr.bf16.mxu0 0
      %501 = vmatmul.mubr.bf16.gmra.mrb[0].mxu0 %v461
      %v502 = vpop.f32.mrb[0].mxu0
      %v503 = vadd.f32 %v427, %v502
      %v504 = vpop.f32.mrb[0].mxu0
      %v505 = vpop.f32.mrb[0].mxu0
      %v506 = vadd.f32 %v430, %v505
      %v507 = vpop.f32.mrb[0].mxu0
      %508 = vmatprep.mubr.bf16.mxu0 0
      %509 = vmatmul.mubr.bf16.gmra.mrb[0].mxu0 %v463
      %v510 = vpop.f32.mrb[0].mxu0
      %v511 = vadd.f32 %v435, %v510
      %v512 = vpop.f32.mrb[0].mxu0
      %v513 = vpop.f32.mrb[0].mxu0
      %v514 = vadd.f32 %v438, %v513
      %v515 = vpop.f32.mrb[0].mxu0
      %516 = vmatprep.mubr.bf16.mxu0 0
      %517 = vmatmul.mubr.bf16.gmra.mrb[0].mxu0 %v466
      %v518 = vpop.f32.mrb[0].mxu0
      %v519 = vadd.f32 %v443, %v518
      %v520 = vpop.f32.mrb[0].mxu0
      %v521 = vpop.f32.mrb[0].mxu0
      %v522 = vpop.f32.mrb[0].mxu0
      %523 = vdwg.mxu0
      %v524 = vld [vmem:[#allocation2] sm:$0xc]
      %v525 = vld [vmem:[#allocation2 + $0x14] sm:$0x7]
      %s526 = scalar_lea.vmem %s1, 32
      %v527 = vld [vmem:[%s526] sm:$0xf]
      %v528 = vld [vmem:[%s526 + $0x4] sm:$0xf]
      %v529 = vld [vmem:[%s526 + $0x8] sm:$0xf]
      %v530 = vld [vmem:[%s526 + $0xc] sm:$0xf]
      %v533 = vunpack.c.l.b16 %v524
      %v534 = vunpack.c.l.b16 %v525
      %v535 = vpack.c.b16 %v338, %v533
      %v536 = vpack.c.b16 %v534, %v341
      %vm537 = vsmask.f32 5376
      %v539 = vshrl.u32 %v535, 16
      %v541 = vrot.slane %v539, 2
      %v542 = vshll.u32 %v535, 16
      %v544 = vrot.slane %v542, 3
      %v545 = vor.u32 %v541, %v544
      %v546 = vrot.slane %v359, 2
      %v547 = vrot.slane %v355, 3
      %v548 = vor.u32 %v546, %v547
      %v549 = vsel %vm537, %v545, %v548
      %v551 = vshrl.u32 %v536, 16
      %v553 = vrot.slane %v551, 2
      %v554 = vshll.u32 %v536, 16
      %v556 = vrot.slane %v554, 3
      %v557 = vor.u32 %v553, %v556
      %v558 = vsel %vm537, %v548, %v557
      %v563 = vunpack.c.l.b16 %v527
      %v564 = vunpack.c.l.b16 %v528
      %v565 = vunpack.c.l.b16 %v529
      %v566 = vunpack.c.l.b16 %v530
      %v567 = vpack.c.b16 %v564, %v563
      %v568 = vpack.c.b16 %v566, %v565
      %v572 = vsel %vm382, %v549, 0
      %v575 = vsel %vm382, %v558, 0
      %v578 = vsel %vm382, %v557, 0
      %580 = vmatprep.subr.bf16.mxu0 0
      %581 = vmatpush1.bf16.msra.mxu0 %v567
      %582 = vmatprep.subr.bf16.mxu0 0
      %583 = vmatpush1.bf16.msra.mxu0 %v568
      %584 = vmatprep.subr.bf16.mxu0 0
      %585 = vmatpush1.bf16.msra.mxu0 0
      %586 = vmatprep.subr.bf16.mxu0 0
      %587 = vmatpush1.bf16.msra.mxu0 0
      %588 = vmatprep.subr.bf16.mxu0 0
      %589 = vmatpush1.bf16.msra.mxu0 0
      %590 = vmatprep.subr.bf16.mxu0 0
      %591 = vmatpush1.bf16.msra.mxu0 0
      %592 = vmatprep.subr.bf16.mxu0 0
      %593 = vmatpush1.bf16.msra.mxu0 0
      %594 = vmatprep.subr.bf16.mxu0 0
      %595 = vmatpush1.bf16.msra.mxu0 0
      %596 = vmatprep.subr.bf16.mxu0 0
      %597 = vmatpush1.bf16.msra.mxu0 0
      %598 = vmatprep.subr.bf16.mxu0 0
      %599 = vmatpush1.bf16.msra.mxu0 0
      %600 = vmatprep.subr.bf16.mxu0 0
      %601 = vmatpush1.bf16.msra.mxu0 0
      %602 = vmatprep.subr.bf16.mxu0 0
      %603 = vmatpush1.bf16.msra.mxu0 0
      %604 = vmatprep.subr.bf16.mxu0 0
      %605 = vmatpush1.bf16.msra.mxu0 0
      %606 = vmatprep.subr.bf16.mxu0 0
      %607 = vmatpush1.bf16.msra.mxu0 0
      %608 = vmatprep.subr.bf16.mxu0 0
      %609 = vmatpush1.bf16.msra.mxu0 0
      %610 = vmatprep.subr.bf16.mxu0 0
      %611 = vmatpush1.bf16.msra.mxu0 0
      %612 = vmatprep.mubr.bf16.mxu0 0
      %613 = vmatmul.mubr.bf16.gmra.mrb[0].mxu0 %v572
      %v614 = vpop.f32.mrb[0].mxu0
      %v615 = vadd.f32 0.0, %v614
      %v616 = vpop.f32.mrb[0].mxu0
      %v617 = vpop.f32.mrb[0].mxu0
      %v618 = vadd.f32 0.0, %v617
      %v619 = vpop.f32.mrb[0].mxu0
      %620 = vmatprep.mubr.bf16.mxu0 0
      %621 = vmatmul.mubr.bf16.gmra.mrb[0].mxu0 %v575
      %v622 = vpop.f32.mrb[0].mxu0
      %v623 = vadd.f32 0.0, %v622
      %v624 = vpop.f32.mrb[0].mxu0
      %v625 = vpop.f32.mrb[0].mxu0
      %v626 = vadd.f32 0.0, %v625
      %v627 = vpop.f32.mrb[0].mxu0
      %628 = vmatprep.mubr.bf16.mxu0 0
      %629 = vmatmul.mubr.bf16.gmra.mrb[0].mxu0 %v578
      %v630 = vpop.f32.mrb[0].mxu0
      %v631 = vadd.f32 0.0, %v630
      %v632 = vpop.f32.mrb[0].mxu0
      %v633 = vpop.f32.mrb[0].mxu0
      %v634 = vpop.f32.mrb[0].mxu0
      %635 = vdwg.mxu0
      %v636 = vadd.f32 %v503, %v615
      %v637 = vadd.f32 %v506, %v618
      %v638 = vadd.f32 %v511, %v623
      %v639 = vadd.f32 %v514, %v626
      %v640 = vadd.f32 %v519, %v631
      %v641 = vld [vmem:[#allocation2] sm:$0x8]
      %s642 = scalar_lea.vmem %s1, 48
      %v643 = vld [vmem:[%s642] sm:$0xf]
      %v644 = vld [vmem:[%s642 + $0x4] sm:$0xf]
      %v645 = vld [vmem:[%s642 + $0x8] sm:$0xf]
      %v646 = vld [vmem:[%s642 + $0xc] sm:$0xf]
      %v648 = vunpack.c.l.b16 %v641
      %v649 = vpack.c.b16 %v338, %v648
      %vm650 = vcmask 1044480
      %v651 = vrot.slane %v649, 3
      %v652 = vrot.slane %v344, 3
      %v653 = vsel %vm650, %v651, %v652
      %v654 = vrot.slane %v536, 3
      %v655 = vsel %vm650, %v652, %v654
      %v660 = vunpack.c.l.b16 %v643
      %v661 = vunpack.c.l.b16 %v644
      %v662 = vunpack.c.l.b16 %v645
      %v663 = vunpack.c.l.b16 %v646
      %v664 = vpack.c.b16 %v661, %v660
      %v665 = vpack.c.b16 %v663, %v662
      %v669 = vsel %vm382, %v653, 0
      %v672 = vsel %vm382, %v655, 0
      %v675 = vsel %vm382, %v654, 0
      %677 = vmatprep.subr.bf16.mxu0 0
      %678 = vmatpush1.bf16.msra.mxu0 %v664
      %679 = vmatprep.subr.bf16.mxu0 0
      %680 = vmatpush1.bf16.msra.mxu0 %v665
      %681 = vmatprep.subr.bf16.mxu0 0
      %682 = vmatpush1.bf16.msra.mxu0 0
      %683 = vmatprep.subr.bf16.mxu0 0
      %684 = vmatpush1.bf16.msra.mxu0 0
      %685 = vmatprep.subr.bf16.mxu0 0
      %686 = vmatpush1.bf16.msra.mxu0 0
      %687 = vmatprep.subr.bf16.mxu0 0
      %688 = vmatpush1.bf16.msra.mxu0 0
      %689 = vmatprep.subr.bf16.mxu0 0
      %690 = vmatpush1.bf16.msra.mxu0 0
      %691 = vmatprep.subr.bf16.mxu0 0
      %692 = vmatpush1.bf16.msra.mxu0 0
      %693 = vmatprep.subr.bf16.mxu0 0
      %694 = vmatpush1.bf16.msra.mxu0 0
      %695 = vmatprep.subr.bf16.mxu0 0
      %696 = vmatpush1.bf16.msra.mxu0 0
      %697 = vmatprep.subr.bf16.mxu0 0
      %698 = vmatpush1.bf16.msra.mxu0 0
      %699 = vmatprep.subr.bf16.mxu0 0
      %700 = vmatpush1.bf16.msra.mxu0 0
      %701 = vmatprep.subr.bf16.mxu0 0
      %702 = vmatpush1.bf16.msra.mxu0 0
      %703 = vmatprep.subr.bf16.mxu0 0
      %704 = vmatpush1.bf16.msra.mxu0 0
      %705 = vmatprep.subr.bf16.mxu0 0
      %706 = vmatpush1.bf16.msra.mxu0 0
      %707 = vmatprep.subr.bf16.mxu0 0
      %708 = vmatpush1.bf16.msra.mxu0 0
      %709 = vmatprep.mubr.bf16.mxu0 0
      %710 = vmatmul.mubr.bf16.gmra.mrb[0].mxu0 %v669
      %v711 = vpop.f32.mrb[0].mxu0
      %v712 = vadd.f32 0.0, %v711
      %v713 = vpop.f32.mrb[0].mxu0
      %v714 = vpop.f32.mrb[0].mxu0
      %v715 = vadd.f32 0.0, %v714
      %v716 = vpop.f32.mrb[0].mxu0
      %717 = vmatprep.mubr.bf16.mxu0 0
      %718 = vmatmul.mubr.bf16.gmra.mrb[0].mxu0 %v672
      %v719 = vpop.f32.mrb[0].mxu0
      %v720 = vadd.f32 0.0, %v719
      %v721 = vpop.f32.mrb[0].mxu0
      %v722 = vpop.f32.mrb[0].mxu0
      %v723 = vadd.f32 0.0, %v722
      %v724 = vpop.f32.mrb[0].mxu0
      %725 = vmatprep.mubr.bf16.mxu0 0
      %726 = vmatmul.mubr.bf16.gmra.mrb[0].mxu0 %v675
      %v727 = vpop.f32.mrb[0].mxu0
      %v728 = vadd.f32 0.0, %v727
      %v729 = vpop.f32.mrb[0].mxu0
      %v730 = vpop.f32.mrb[0].mxu0
      %v731 = vpop.f32.mrb[0].mxu0
      %732 = vdwg.mxu0
      %v733 = vadd.f32 %v636, %v712
      %v734 = vadd.f32 %v637, %v715
      %v735 = vadd.f32 %v638, %v720
      %v736 = vadd.f32 %v639, %v723
      %v737 = vadd.f32 %v640, %v728
      %v738 = vld [vmem:[%s2] sm:$0x1]
      %v740 = vlaneseq
      %v741 = vshrl.u32 %v740, 7
      %v742 = vsub.s32 0, %v741
      %v743 = vrot.slane %v738, %v742
      %v745 = vadd.f32 %v733, %v743
      %v746 = vadd.f32 %v734, %v743
      %v747 = vadd.f32 %v735, %v743
      %v748 = vadd.f32 %v736, %v743
      %v749 = vadd.f32 %v737, %v743
      %v750 = vmax.f32 %v745, 0.0
      %v751 = vmax.f32 %v746, 0.0
      %v752 = vmax.f32 %v747, 0.0
      %v753 = vmax.f32 %v748, 0.0
      %v754 = vmax.f32 %v749, 0.0
      %v755 = vpack.c.bf16 %v751, %v750
      %v756 = vpack.c.bf16 %v753, %v752
      %v757 = vpack.c.bf16 %v754, %v754
      %v761 = vunpack.c.l.b16 %v755
      %v762 = vunpack.c.h.b16 %v755
      %v763 = vunpack.c.l.b16 %v756
      %v764 = vunpack.c.h.b16 %v756
      %v765 = vunpack.c.l.b16 %v757
      %v766 = vpack.c.b16 %v761, %v761
      %v767 = vpack.c.b16 %v762, %v762
      %v768 = vpack.c.b16 %v763, %v763
      %v769 = vpack.c.b16 %v764, %v764
      %v770 = vpack.c.b16 %v765, %v765
      %776 = vst [vmem:[%s208] sm:$0xf] %v766
      %777 = vst [vmem:[%s208 + $0x4] sm:$0xf] %v767
      %778 = vst [vmem:[%s208 + $0x8] sm:$0xf] %v768
      %779 = vst [vmem:[%s208 + $0xc] sm:$0xf] %v769
      %780 = vst [vmem:[%s208 + $0x10] sm:$0xf] %v770
      %s781 = smul.u32 5, %s19
      %p782 = scmp.lt.s32.totalorder %s18, 1
      %s783 = scalar_select %p782, %s18, 1
      %p784 = scmp.lt.s32.totalorder %s781, 4
      %s785 = scalar_select %p784, %s781, 4
      %s786 = smul.addr %s783, 5
      %s787 = sadd.s32 %s785, %s786
      %s788 = smul.addr %s787, 4
      %s789 = scalar_lea.vmem %s3, %s788
      // Predicated region
      $region37: #{fwd.6} parent=31 // pred_check
        %p790 = pneg %p116
      $region38: #{fwd.6} parent=31 // pred_check_branch
        %792 = sbr.rel (%p790) target = $region40
      $region39: #{fwd.6} parent=31 // pred_region
        %s793 = smul.u32 5, %s19
      $region40: #{fwd.6} parent=31 // pred_fallthru
        _
    $region32: #{fwd.6} parent=5 // pred_fallthru
      _
    %p794 = scmp.le.s32.totalorder 2, %s9
    // Predicated region
    $region41: #{fwd.6} parent=5 // pred_check
      %p795 = pneg %p794
    $region42: #{fwd.6} parent=5 // pred_check_branch
      %797 = sbr.rel (%p795) target = $region44
    $region43: #{fwd.6} parent=5 // pred_region
      %s798 = ssub.s32 %s9, 2
      // Predicated region
      $region45: #{fwd.6} parent=43 // pred_check
        %p799 = pneg %p122
      $region46: #{fwd.6} parent=43 // pred_check_branch
        %801 = sbr.rel (%p799) target = $region48
      $region47: #{fwd.6} parent=43 // pred_region
        %s802 = smul.u32 5, %s21
        %p803 = scmp.lt.s32.totalorder %s20, 1
        %s804 = scalar_select %p803, %s20, 1
        %p805 = scmp.lt.s32.totalorder %s802, 4
        %s806 = scalar_select %p805, %s802, 4
        %s807 = smul.addr %s804, 5
        %s808 = sadd.s32 %s806, %s807
        %s809 = smul.addr %s808, 4
        %s810 = scalar_lea.vmem %s3, %s809
      $region48: #{fwd.6} parent=43 // pred_fallthru
        _
    $region44: #{fwd.6} parent=5 // pred_fallthru
      _
  $region6: #{fwd.6} parent=0 // loop_footer
    %s13 = sadd.s32 1, %s9
  $region7: #{fwd.6} parent=0 // loop_footer_branch
    %8 = sbr.rel target = $region3
  $region8: #{fwd.6} parent=0 // loop_exit
    _

// kernel: fwd.7
$region0: #{fwd.7}
  #allocation0 [shape = 'u32[]', space=smem, size = 0x4, offset = 0x4, fixed_abs, tag = 'smem constant byte address 0x4 - core index']
  #allocation1 [shape = 'u32[144,128]{1,0:T(1,128)}', space=vmem, size = 0x12000, scoped, tag = 'internal scratch']
  #allocation2 [shape = 'bf16[62,16]{1,0:T(8,128)(2,1)}', space=vmem, size = 0x4000, scoped, tag = 'scratch operand']
  #allocation3 [shape = 'bf16[12,16]{1,0:T(8,128)(2,1)}', space=vmem, size = 0x1000, scoped, tag = 'scratch operand']
  %s0 = inlined_call_operand.vmem [shape: bf16[2,48,16], index: 0, kind: input, shape index: {}]
  %s1 = inlined_call_operand.vmem [shape: bf16[9,16,128], index: 1, kind: input, shape index: {}]
  %s2 = inlined_call_operand.vmem [shape: f32[1,128], index: 2, kind: input, shape index: {}]
  %s3 = inlined_call_operand.vmem [shape: bf16[2,48,128], index: 3, kind: output, shape index: {}]
  %s4 = sld [smem:[#allocation0]]
  $region49: #{fwd.7} parent=0
    _
  %s6 = ssub.s32 1, %s4
  %s7 = scalar_select 0, %s6, %s4
  loop: start=0, step=1, limit=4
  $region2: #{fwd.7} parent=0 // loop_pre_header
    _
  $region3: #{fwd.7} parent=0 // loop_header
    %s9 = sphi 0, %s13
    %p10 = scmp.ge.s32.totalorder %s9, 4
    %s16 = sphi 0, %s28
    %s17 = sphi 0, %s24
    %s18 = sphi 0, %s16
    %s19 = sphi 0, %s17
    %s20 = sphi 0, %s18
    %s21 = sphi 0, %s19
    %s33 = sphi 0, %s35
    %s36 = sphi 0, %s33
    %s37 = sphi 0, %s36
    %s53 = sphi 0, %s37
    %s57 = sphi 0, %s57
    %s59 = sphi 0, %s57
    %s60 = sphi 0, %s59
    %s74 = sphi 0, %s60
    %s78 = sphi 0, %s78
    %s80 = sphi 0, %s78
    %s81 = sphi 0, %s80
    %s95 = sphi 0, %s81
    %s103 = sphi 0, %s105
    %s106 = sphi 0, %s103
    %s107 = sphi 0, %s106
    %s123 = sphi 0, %s107
  $region4: #{fwd.7} parent=0 // loop_header_branch
    %12 = sbr.rel (%p10) target = $region8
  $region5: #{fwd.7} parent=0 // loop_body
    %s14 = ssub.s32 %s9, 1
    %s15 = ssub.s32 %s9, 2
    %s22 = sadd.s32 1, %s17
    %p23 = scmp.ge.s32.totalorder %s22, 1
    %s24 = scalar_select %p23, 0, %s22
    %s25 = sadd.s32 1, %s16
    %s26 = scalar_select %p23, %s25, %s16
    %p27 = scmp.ge.s32.totalorder %s26, 2
    %s28 = scalar_select %p27, 0, %s26
    %s29 = ssub.s32 %s16, %s28
    %s30 = ssub.s32 %s17, %s24
    %s31 = sor.u32 %s29, %s30
    %p32 = scmp.eq.s32.totalorder %s31, 0
    %s34 = sadd.s32 %s33, 1
    %s35 = scalar_select %p32, %s33, %s34
    %p38 = pneg %p32
    %p39 = scmp.eq.s32.totalorder %s9, 1
    %p40 = por %p38, %p39
    %p41 = scmp.ne.s32.totalorder %s33, %s36
    %p42 = scmp.eq.s32.totalorder %s9, 0
    %p43 = por %p41, %p42
    %p44 = scmp.ne.s32.totalorder %s33, %s36
    %p45 = scmp.eq.s32.totalorder %s14, 1
    %p46 = por %p44, %p45
    %p47 = scmp.ne.s32.totalorder %s36, %s37
    %p48 = scmp.eq.s32.totalorder %s14, 0
    %p49 = por %p47, %p48
    %p50 = scmp.ne.s32.totalorder %s36, %s37
    %p51 = scmp.eq.s32.totalorder %s15, 1
    %p52 = por %p50, %p51
    %p54 = scmp.ne.s32.totalorder %s37, %s53
    %p55 = scmp.eq.s32.totalorder %s15, 0
    %p56 = por %p54, %p55
    %s58 = sadd.s32 %s57, 1
    %p61 = scmp.eq.s32.totalorder %s9, 1
    %p62 = scmp.ne.s32.totalorder %s57, %s59
    %p63 = scmp.eq.s32.totalorder %s9, 0
    %p64 = por %p62, %p63
    %p65 = scmp.ne.s32.totalorder %s57, %s59
    %p66 = scmp.eq.s32.totalorder %s14, 1
    %p67 = por %p65, %p66
    %p68 = scmp.ne.s32.totalorder %s59, %s60
    %p69 = scmp.eq.s32.totalorder %s14, 0
    %p70 = por %p68, %p69
    %p71 = scmp.ne.s32.totalorder %s59, %s60
    %p72 = scmp.eq.s32.totalorder %s15, 1
    %p73 = por %p71, %p72
    %p75 = scmp.ne.s32.totalorder %s60, %s74
    %p76 = scmp.eq.s32.totalorder %s15, 0
    %p77 = por %p75, %p76
    %s79 = sadd.s32 %s78, 1
    %p82 = scmp.eq.s32.totalorder %s9, 1
    %p83 = scmp.ne.s32.totalorder %s78, %s80
    %p84 = scmp.eq.s32.totalorder %s9, 0
    %p85 = por %p83, %p84
    %p86 = scmp.ne.s32.totalorder %s78, %s80
    %p87 = scmp.eq.s32.totalorder %s14, 1
    %p88 = por %p86, %p87
    %p89 = scmp.ne.s32.totalorder %s80, %s81
    %p90 = scmp.eq.s32.totalorder %s14, 0
    %p91 = por %p89, %p90
    %p92 = scmp.ne.s32.totalorder %s80, %s81
    %p93 = scmp.eq.s32.totalorder %s15, 1
    %p94 = por %p92, %p93
    %p96 = scmp.ne.s32.totalorder %s81, %s95
    %p97 = scmp.eq.s32.totalorder %s15, 0
    %p98 = por %p96, %p97
    %s99 = ssub.s32 %s16, %s28
    %s100 = ssub.s32 %s17, %s24
    %s101 = sor.u32 %s99, %s100
    %p102 = scmp.eq.s32.totalorder %s101, 0
    %s104 = sadd.s32 %s103, 1
    %s105 = scalar_select %p102, %s103, %s104
    %p108 = pneg %p102
    %p109 = scmp.eq.s32.totalorder %s9, 1
    %p110 = por %p108, %p109
    %p111 = scmp.ne.s32.totalorder %s103, %s106
    %p112 = scmp.eq.s32.totalorder %s9, 0
    %p113 = por %p111, %p112
    %p114 = scmp.ne.s32.totalorder %s103, %s106
    %p115 = scmp.eq.s32.totalorder %s14, 1
    %p116 = por %p114, %p115
    %p117 = scmp.ne.s32.totalorder %s106, %s107
    %p118 = scmp.eq.s32.totalorder %s14, 0
    %p119 = por %p117, %p118
    %p120 = scmp.ne.s32.totalorder %s106, %s107
    %p121 = scmp.eq.s32.totalorder %s15, 1
    %p122 = por %p120, %p121
    %p124 = scmp.ne.s32.totalorder %s107, %s123
    %p125 = scmp.eq.s32.totalorder %s15, 0
    %p126 = por %p124, %p125
    %p127 = scmp.le.s32.totalorder 1, %s9
    %p128 = scmp.lt.s32.totalorder %s9, 3
    %p129 = pnand %p127, %p128
    %p130 = pneg %p129
    // Predicated region
    $region9: #{fwd.7} parent=5 // pred_check
      _
    $region10: #{fwd.7} parent=5 // pred_check_branch
      %132 = sbr.rel (%p129) target = $region12
    $region11: #{fwd.7} parent=5 // pred_region
      %s133 = ssub.s32 %s9, 1
      // Predicated region
      $region13: #{fwd.7} parent=11 // pred_check
        %p134 = pneg %p70
      $region14: #{fwd.7} parent=11 // pred_check_branch
        %136 = sbr.rel (%p134) target = $region16
      $region15: #{fwd.7} parent=11 // pred_region
        _
      $region16: #{fwd.7} parent=11 // pred_fallthru
        _
      // Predicated region
      $region17: #{fwd.7} parent=11 // pred_check
        %p137 = pneg %p91
      $region18: #{fwd.7} parent=11 // pred_check_branch
        %139 = sbr.rel (%p137) target = $region20
      $region19: #{fwd.7} parent=11 // pred_region
        _
      $region20: #{fwd.7} parent=11 // pred_fallthru
        _
    $region12: #{fwd.7} parent=5 // pred_fallthru
      _
    %p140 = scmp.lt.s32.totalorder %s9, 2
    // Predicated region
    $region21: #{fwd.7} parent=5 // pred_check
      %p141 = pneg %p140
    $region22: #{fwd.7} parent=5 // pred_check_branch
      %143 = sbr.rel (%p141) target = $region24
    $region23: #{fwd.7} parent=5 // pred_region
      // Predicated region
      $region25: #{fwd.7} parent=23 // pred_check
        %p144 = pneg %p43
      $region26: #{fwd.7} parent=23 // pred_check_branch
        %146 = sbr.rel (%p144) target = $region28
      $region27: #{fwd.7} parent=23 // pred_region
        %s147 = smul.u32 6, %s17
        %p148 = scmp.lt.s32.totalorder %s16, 1
        %s149 = scalar_select %p148, %s16, 1
        %p150 = scmp.lt.s32.totalorder %s147, 5
        %s151 = scalar_select %p150, %s147, 5
        %s152 = smul.addr %s149, 6
        %s153 = sadd.s32 %s151, %s152
        %s154 = smul.addr %s153, 4
        %s155 = scalar_lea.vmem %s0, %s154
        %s156 = smul.u32 6, %s17
      $region28: #{fwd.7} parent=23 // pred_fallthru
        _
    $region24: #{fwd.7} parent=5 // pred_fallthru
      _
    %p157 = scmp.le.s32.totalorder 1, %s9
    %p158 = scmp.lt.s32.totalorder %s9, 3
    %p159 = pnand %p157, %p158
    %p160 = pneg %p159
    // Predicated region
    $region29: #{fwd.7} parent=5 // pred_check
      _
    $region30: #{fwd.7} parent=5 // pred_check_branch
      %162 = sbr.rel (%p159) target = $region32
    $region31: #{fwd.7} parent=5 // pred_region
      %s163 = ssub.s32 %s9, 1
      %s164 = smul.u32 6, %s19
      %p165 = scmp.lt.s32.totalorder %s18, 1
      %s166 = scalar_select %p165, %s18, 1
      %p167 = scmp.lt.s32.totalorder %s164, 5
      %s168 = scalar_select %p167, %s164, 5
      %s169 = smul.addr %s166, 6
      %s170 = sadd.s32 %s168, %s169
      %s171 = smul.addr %s170, 4
      %s172 = scalar_lea.vmem %s0, %s171
      %p173 = pneg %p49
      %p174 = pneg %p46
      %p175 = pneg %p70
      %p176 = pneg %p67
      %p177 = pneg %p91
      %p178 = pneg %p88
      %p179 = pneg %p119
      %p180 = pneg %p116
      %s181 = smul.u32 6, %s19
      %p182 = scmp.lt.s32.totalorder %s18, 1
      %s183 = scalar_select %p182, %s18, 1
      %p184 = scmp.lt.s32.totalorder %s181, 5
      %s185 = scalar_select %p184, %s181, 5
      %s186 = smul.addr %s183, 6
      %s187 = sadd.s32 %s185, %s186
      %s188 = smul.addr %s187, 4
      %s189 = scalar_lea.vmem %s3, %s188
      %s190 = smul.u32 6, %s19
      %p191 = scmp.lt.s32.totalorder %s18, 1
      %s192 = scalar_select %p191, %s18, 1
      %p193 = scmp.lt.s32.totalorder %s190, 5
      %s194 = scalar_select %p193, %s190, 5
      %s195 = smul.addr %s192, 6
      %s196 = sadd.s32 %s194, %s195
      %s197 = smul.addr %s196, 4
      %s198 = scalar_lea.vmem %s0, %s197
      %s199 = smul.u32 6, %s19
      %s200 = smul.u32 6, %s19
      %p201 = scmp.lt.s32.totalorder %s18, 1
      %s202 = scalar_select %p201, %s18, 1
      %p203 = scmp.lt.s32.totalorder %s200, 5
      %s204 = scalar_select %p203, %s200, 5
      %s205 = smul.addr %s202, 6
      %s206 = sadd.s32 %s204, %s205
      %s207 = smul.addr %s206, 4
      %s208 = scalar_lea.vmem %s3, %s207
      %s209 = smul.u32 6, %s19
      %p211 = scmp.eq.s32.totalorder %s19, 0
      // Predicated region
      $region33: #{fwd.7} parent=31 // pred_check
        %p212 = pneg %p211
      $region34: #{fwd.7} parent=31 // pred_check_branch
        %214 = sbr.rel (%p212) target = $region36
      $region35: #{fwd.7} parent=31 // pred_region
        %vm215 = vcmask 125952
        %216 = vst.msk [vmem:[#allocation2] sm:$0xf] %vm215, 0
        %217 = vst.msk [vmem:[#allocation2 + $0x4] sm:$0xf] %vm215, 0
        %218 = vst.msk [vmem:[#allocation2 + $0x8] sm:$0xf] %vm215, 0
        %219 = vst.msk [vmem:[#allocation2 + $0xc] sm:$0xf] %vm215, 0
        %220 = vst.msk [vmem:[#allocation2 + $0x10] sm:$0xf] %vm215, 0
        %221 = vst.msk [vmem:[#allocation2 + $0x14] sm:$0xf] %vm215, 0
        %222 = vst.msk [vmem:[#allocation2 + $0x18] sm:$0xf] %vm215, 0
        %vm223 = vcmask 124928
        %224 = vst.msk [vmem:[#allocation2 + $0x1c] sm:$0x7] %vm223, 0
        %225 = vst.msk [vmem:[#allocation3] sm:$0xf] %vm215, 0
        %vm226 = vcmask 123904
        %227 = vst.msk [vmem:[#allocation3 + $0x4] sm:$0x3] %vm226, 0
      $region36: #{fwd.7} parent=31 // pred_fallthru
        _
      %v228 = vld [vmem:[#allocation3] sm:$0xf]
      %v229 = vld [vmem:[#allocation3 + $0x4] sm:$0x3]
      %vm230 = vcmask 125952
      %231 = vst.msk [vmem:[#allocation2] sm:$0xf] %vm230, %v228
      %vm232 = vcmask 123904
      %233 = vst.msk [vmem:[#allocation2 + $0x4] sm:$0x3] %vm232, %v229
      %v234 = vld [vmem:[%s198] sm:$0xf]
      %v235 = vld [vmem:[%s198 + $0x4] sm:$0xf]
      %v236 = vld [vmem:[%s198 + $0x8] sm:$0xf]
      %v237 = vld [vmem:[%s198 + $0xc] sm:$0xf]
      %v238 = vld [vmem:[%s198 + $0x10] sm:$0xf]
      %v239 = vld [vmem:[%s198 + $0x14] sm:$0xf]
      %vm246 = vcmask 1041408
      %vm247 = vcmask 1045508
      %vm248 = vmor %vm246, %vm247
      %v249 = vrot.slane %v234, 6
      %v250 = vrot.slane %v249, 4
      %v251 = vrot.slane %v235, 6
      %v252 = vsel %vm248, %v250, %v251
      %v253 = vrot.slane %v251, 4
      %v254 = vrot.slane %v236, 6
      %v255 = vsel %vm248, %v253, %v254
      %v256 = vrot.slane %v254, 4
      %v257 = vrot.slane %v237, 6
      %v258 = vsel %vm248, %v256, %v257
      %v259 = vrot.slane %v257, 4
      %v260 = vrot.slane %v238, 6
      %v261 = vsel %vm248, %v259, %v260
      %v262 = vrot.slane %v260, 4
      %v263 = vrot.slane %v239, 6
      %v264 = vsel %vm248, %v262, %v263
      %v265 = vrot.slane %v263, 4
      %vm273 = vcmask 125954
      %274 = vst.msk [vmem:[#allocation2 + $0x4] sm:$0xc] %vm273, %v249
      %275 = vst.msk [vmem:[#allocation2 + $0x8] sm:$0xf] %vm230, %v252
      %276 = vst.msk [vmem:[#allocation2 + $0xc] sm:$0xf] %vm230, %v255
      %277 = vst.msk [vmem:[#allocation2 + $0x10] sm:$0xf] %vm230, %v258
      %278 = vst.msk [vmem:[#allocation2 + $0x14] sm:$0xf] %vm230, %v261
      %279 = vst.msk [vmem:[#allocation2 + $0x18] sm:$0xf] %vm230, %v264
      %280 = vst.msk [vmem:[#allocation2 + $0x1c] sm:$0x3] %vm232, %v265
      %v281 = vld [vmem:[#allocation2 + $0x18] sm:$0xf]
      %v282 = vld [vmem:[#allocation2 + $0x1c] sm:$0x3]
      %283 = vst.msk [vmem:[#allocation3] sm:$0xf] %vm230, %v281
      %284 = vst.msk [vmem:[#allocation3 + $0x4] sm:$0x3] %vm232, %v282
      %v285 = vld [vmem:[#allocation2] sm:$0xf]
      %v286 = vld [vmem:[#allocation2 + $0x4] sm:$0xf]
      %v287 = vld [vmem:[#allocation2 + $0x8] sm:$0xf]
      %v288 = vld [vmem:[#allocation2 + $0xc] sm:$0xf]
      %v289 = vld [vmem:[#allocation2 + $0x10] sm:$0xf]
      %v290 = vld [vmem:[#allocation2 + $0x14] sm:$0xf]
      %v291 = vld [vmem:[%s1] sm:$0xf]
      %v292 = vld [vmem:[%s1 + $0x4] sm:$0xf]
      %v293 = vld [vmem:[#allocation2 + $0x18] sm:$0x1]
      %s294 = scalar_lea.vmem %s1, 8
      %v295 = vld [vmem:[%s294] sm:$0xf]
      %v296 = vld [vmem:[%s294 + $0x4] sm:$0xf]
      %v304 = vunpack.c.l.b16 %v285
      %v305 = vunpack.c.l.b16 %v286
      %v306 = vunpack.c.l.b16 %v287
      %v307 = vunpack.c.l.b16 %v288
      %v308 = vunpack.c.l.b16 %v289
      %v309 = vunpack.c.l.b16 %v290
      %v310 = vunpack.c.l.b16 %v293
      %v311 = vpack.c.b16 %v305, %v304
      %v312 = vpack.c.b16 %v307, %v306
      %v313 = vpack.c.b16 %v309, %v308
      %v314 = vpack.c.b16 %v310, %v310
      %vm315 = vsmask.f32 7424
      %v317 = vshrl.u32 %v311, 16
      %v319 = vshll.u32 %v311, 16
      %v321 = vrot.slane %v319, 1
      %v322 = vor.u32 %v317, %v321
      %v324 = vshll.u32 %v312, 16
      %v326 = vrot.slane %v324, 1
      %v327 = vsel %vm315, %v322, %v326
      %v328 = vshrl.u32 %v312, 16
      %v330 = vor.u32 %v328, %v326
      %v332 = vshll.u32 %v313, 16
      %v334 = vrot.slane %v332, 1
      %v335 = vsel %vm315, %v330, %v334
      %v336 = vshrl.u32 %v313, 16
      %v338 = vor.u32 %v336, %v334
      %v340 = vshll.u32 %v314, 16
      %v342 = vrot.slane %v340, 1
      %v343 = vsel %vm315, %v338, %v342
      %v346 = vunpack.c.l.b16 %v295
      %v347 = vunpack.c.l.b16 %v296
      %v348 = vpack.c.b16 %v347, %v346
      %vm350 = vcmask 130048
      %v352 = vsel %vm350, %v327, 0
      %v355 = vsel %vm350, %v335, 0
      %v358 = vsel %vm350, %v343, 0
      %360 = vmatprep.subr.bf16.mxu0 0
      %361 = vmatpush1.bf16.msra.mxu0 %v348
      %362 = vmatprep.subr.bf16.mxu0 0
      %363 = vmatpush1.bf16.msra.mxu0 0
      %364 = vmatprep.subr.bf16.mxu0 0
      %365 = vmatpush1.bf16.msra.mxu0 0
      %366 = vmatprep.subr.bf16.mxu0 0
      %367 = vmatpush1.bf16.msra.mxu0 0
      %368 = vmatprep.subr.bf16.mxu0 0
      %369 = vmatpush1.bf16.msra.mxu0 0
      %370 = vmatprep.subr.bf16.mxu0 0
      %371 = vmatpush1.bf16.msra.mxu0 0
      %372 = vmatprep.subr.bf16.mxu0 0
      %373 = vmatpush1.bf16.msra.mxu0 0
      %374 = vmatprep.subr.bf16.mxu0 0
      %375 = vmatpush1.bf16.msra.mxu0 0
      %376 = vmatprep.subr.bf16.mxu0 0
      %377 = vmatpush1.bf16.msra.mxu0 0
      %378 = vmatprep.subr.bf16.mxu0 0
      %379 = vmatpush1.bf16.msra.mxu0 0
      %380 = vmatprep.subr.bf16.mxu0 0
      %381 = vmatpush1.bf16.msra.mxu0 0
      %382 = vmatprep.subr.bf16.mxu0 0
      %383 = vmatpush1.bf16.msra.mxu0 0
      %384 = vmatprep.subr.bf16.mxu0 0
      %385 = vmatpush1.bf16.msra.mxu0 0
      %386 = vmatprep.subr.bf16.mxu0 0
      %387 = vmatpush1.bf16.msra.mxu0 0
      %388 = vmatprep.subr.bf16.mxu0 0
      %389 = vmatpush1.bf16.msra.mxu0 0
      %390 = vmatprep.subr.bf16.mxu0 0
      %391 = vmatpush1.bf16.msra.mxu0 0
      %392 = vmatprep.mubr.bf16.mxu0 0
      %393 = vmatmul.mubr.bf16.gmra.mrb[0].mxu0 %v352
      %v394 = vpop.f32.mrb[0].mxu0
      %v395 = vadd.f32 0.0, %v394
      %v396 = vpop.f32.mrb[0].mxu0
      %v397 = vpop.f32.mrb[0].mxu0
      %v398 = vadd.f32 0.0, %v397
      %v399 = vpop.f32.mrb[0].mxu0
      %400 = vmatprep.mubr.bf16.mxu0 0
      %401 = vmatmul.mubr.bf16.gmra.mrb[0].mxu0 %v355
      %v402 = vpop.f32.mrb[0].mxu0
      %v403 = vadd.f32 0.0, %v402
      %v404 = vpop.f32.mrb[0].mxu0
      %v405 = vpop.f32.mrb[0].mxu0
      %v406 = vadd.f32 0.0, %v405
      %v407 = vpop.f32.mrb[0].mxu0
      %408 = vmatprep.mubr.bf16.mxu0 0
      %409 = vmatmul.mubr.bf16.gmra.mrb[0].mxu0 %v358
      %v410 = vpop.f32.mrb[0].mxu0
      %v411 = vadd.f32 0.0, %v410
      %v412 = vpop.f32.mrb[0].mxu0
      %v413 = vpop.f32.mrb[0].mxu0
      %v414 = vadd.f32 0.0, %v413
      %v415 = vpop.f32.mrb[0].mxu0
      %416 = vdwg.mxu0
      %v419 = vunpack.c.l.b16 %v291
      %v420 = vunpack.c.l.b16 %v292
      %v421 = vpack.c.b16 %v420, %v419
      %v423 = vsel %vm350, %v311, 0
      %v425 = vsel %vm350, %v312, 0
      %v427 = vsel %vm350, %v313, 0
      %429 = vmatprep.subr.bf16.mxu0 0
      %430 = vmatpush1.bf16.msra.mxu0 %v421
      %431 = vmatprep.subr.bf16.mxu0 0
      %432 = vmatpush1.bf16.msra.mxu0 0
      %433 = vmatprep.subr.bf16.mxu0 0
      %434 = vmatpush1.bf16.msra.mxu0 0
      %435 = vmatprep.subr.bf16.mxu0 0
      %436 = vmatpush1.bf16.msra.mxu0 0
      %437 = vmatprep.subr.bf16.mxu0 0
      %438 = vmatpush1.bf16.msra.mxu0 0
      %439 = vmatprep.subr.bf16.mxu0 0
      %440 = vmatpush1.bf16.msra.mxu0 0
      %441 = vmatprep.subr.bf16.mxu0 0
      %442 = vmatpush1.bf16.msra.mxu0 0
      %443 = vmatprep.subr.bf16.mxu0 0
      %444 = vmatpush1.bf16.msra.mxu0 0
      %445 = vmatprep.subr.bf16.mxu0 0
      %446 = vmatpush1.bf16.msra.mxu0 0
      %447 = vmatprep.subr.bf16.mxu0 0
      %448 = vmatpush1.bf16.msra.mxu0 0
      %449 = vmatprep.subr.bf16.mxu0 0
      %450 = vmatpush1.bf16.msra.mxu0 0
      %451 = vmatprep.subr.bf16.mxu0 0
      %452 = vmatpush1.bf16.msra.mxu0 0
      %453 = vmatprep.subr.bf16.mxu0 0
      %454 = vmatpush1.bf16.msra.mxu0 0
      %455 = vmatprep.subr.bf16.mxu0 0
      %456 = vmatpush1.bf16.msra.mxu0 0
      %457 = vmatprep.subr.bf16.mxu0 0
      %458 = vmatpush1.bf16.msra.mxu0 0
      %459 = vmatprep.subr.bf16.mxu0 0
      %460 = vmatpush1.bf16.msra.mxu0 0
      %461 = vmatprep.mubr.bf16.mxu0 0
      %462 = vmatmul.mubr.bf16.gmra.mrb[0].mxu0 %v423
      %v463 = vpop.f32.mrb[0].mxu0
      %v464 = vadd.f32 %v395, %v463
      %v465 = vpop.f32.mrb[0].mxu0
      %v466 = vpop.f32.mrb[0].mxu0
      %v467 = vadd.f32 %v398, %v466
      %v468 = vpop.f32.mrb[0].mxu0
      %469 = vmatprep.mubr.bf16.mxu0 0
      %470 = vmatmul.mubr.bf16.gmra.mrb[0].mxu0 %v425
      %v471 = vpop.f32.mrb[0].mxu0
      %v472 = vadd.f32 %v403, %v471
      %v473 = vpop.f32.mrb[0].mxu0
      %v474 = vpop.f32.mrb[0].mxu0
      %v475 = vadd.f32 %v406, %v474
      %v476 = vpop.f32.mrb[0].mxu0
      %477 = vmatprep.mubr.bf16.mxu0 0
      %478 = vmatmul.mubr.bf16.gmra.mrb[0].mxu0 %v427
      %v479 = vpop.f32.mrb[0].mxu0
      %v480 = vadd.f32 %v411, %v479
      %v481 = vpop.f32.mrb[0].mxu0
      %v482 = vpop.f32.mrb[0].mxu0
      %v483 = vadd.f32 %v414, %v482
      %v484 = vpop.f32.mrb[0].mxu0
      %485 = vdwg.mxu0
      %v486 = vld [vmem:[#allocation2] sm:$0xe]
      %s487 = scalar_lea.vmem %s1, 16
      %v488 = vld [vmem:[%s487] sm:$0xf]
      %v489 = vld [vmem:[%s487 + $0x4] sm:$0xf]
      %v491 = vunpack.c.l.b16 %v486
      %v492 = vpack.c.b16 %v305, %v491
      %vm493 = vcmask 1046528
      %v494 = vrot.slane %v492, 1
      %v495 = vrot.slane %v312, 1
      %v496 = vsel %vm493, %v494, %v495
      %v497 = vrot.slane %v313, 1
      %v498 = vsel %vm493, %v495, %v497
      %v499 = vrot.slane %v314, 1
      %v500 = vsel %vm493, %v497, %v499
      %v503 = vunpack.c.l.b16 %v488
      %v504 = vunpack.c.l.b16 %v489
      %v505 = vpack.c.b16 %v504, %v503
      %v508 = vsel %vm350, %v496, 0
      %v511 = vsel %vm350, %v498, 0
      %v514 = vsel %vm350, %v500, 0
      %516 = vmatprep.subr.bf16.mxu0 0
      %517 = vmatpush1.bf16.msra.mxu0 %v505
      %518 = vmatprep.subr.bf16.mxu0 0
      %519 = vmatpush1.bf16.msra.mxu0 0
      %520 = vmatprep.subr.bf16.mxu0 0
      %521 = vmatpush1.bf16.msra.mxu0 0
      %522 = vmatprep.subr.bf16.mxu0 0
      %523 = vmatpush1.bf16.msra.mxu0 0
      %524 = vmatprep.subr.bf16.mxu0 0
      %525 = vmatpush1.bf16.msra.mxu0 0
      %526 = vmatprep.subr.bf16.mxu0 0
      %527 = vmatpush1.bf16.msra.mxu0 0
      %528 = vmatprep.subr.bf16.mxu0 0
      %529 = vmatpush1.bf16.msra.mxu0 0
      %530 = vmatprep.subr.bf16.mxu0 0
      %531 = vmatpush1.bf16.msra.mxu0 0
      %532 = vmatprep.subr.bf16.mxu0 0
      %533 = vmatpush1.bf16.msra.mxu0 0
      %534 = vmatprep.subr.bf16.mxu0 0
      %535 = vmatpush1.bf16.msra.mxu0 0
      %536 = vmatprep.subr.bf16.mxu0 0
      %537 = vmatpush1.bf16.msra.mxu0 0
      %538 = vmatprep.subr.bf16.mxu0 0
      %539 = vmatpush1.bf16.msra.mxu0 0
      %540 = vmatprep.subr.bf16.mxu0 0
      %541 = vmatpush1.bf16.msra.mxu0 0
      %542 = vmatprep.subr.bf16.mxu0 0
      %543 = vmatpush1.bf16.msra.mxu0 0
      %544 = vmatprep.subr.bf16.mxu0 0
      %545 = vmatpush1.bf16.msra.mxu0 0
      %546 = vmatprep.subr.bf16.mxu0 0
      %547 = vmatpush1.bf16.msra.mxu0 0
      %548 = vmatprep.mubr.bf16.mxu0 0
      %549 = vmatmul.mubr.bf16.gmra.mrb[0].mxu0 %v508
      %v550 = vpop.f32.mrb[0].mxu0
      %v551 = vadd.f32 0.0, %v550
      %v552 = vpop.f32.mrb[0].mxu0
      %v553 = vpop.f32.mrb[0].mxu0
      %v554 = vadd.f32 0.0, %v553
      %v555 = vpop.f32.mrb[0].mxu0
      %556 = vmatprep.mubr.bf16.mxu0 0
      %557 = vmatmul.mubr.bf16.gmra.mrb[0].mxu0 %v511
      %v558 = vpop.f32.mrb[0].mxu0
      %v559 = vadd.f32 0.0, %v558
      %v560 = vpop.f32.mrb[0].mxu0
      %v561 = vpop.f32.mrb[0].mxu0
      %v562 = vadd.f32 0.0, %v561
      %v563 = vpop.f32.mrb[0].mxu0
      %564 = vmatprep.mubr.bf16.mxu0 0
      %565 = vmatmul.mubr.bf16.gmra.mrb[0].mxu0 %v514
      %v566 = vpop.f32.mrb[0].mxu0
      %v567 = vadd.f32 0.0, %v566
      %v568 = vpop.f32.mrb[0].mxu0
      %v569 = vpop.f32.mrb[0].mxu0
      %v570 = vadd.f32 0.0, %v569
      %v571 = vpop.f32.mrb[0].mxu0
      %572 = vdwg.mxu0
      %v573 = vadd.f32 %v464, %v551
      %v574 = vadd.f32 %v467, %v554
      %v575 = vadd.f32 %v472, %v559
      %v576 = vadd.f32 %v475, %v562
      %v577 = vadd.f32 %v480, %v567
      %v578 = vadd.f32 %v483, %v570
      %v579 = vld [vmem:[#allocation2] sm:$0x8]
      %v580 = vld [vmem:[#allocation2 + $0x18] sm:$0x7]
      %s581 = scalar_lea.vmem %s1, 24
      %v582 = vld [vmem:[%s581] sm:$0xf]
      %v583 = vld [vmem:[%s581 + $0x4] sm:$0xf]
      %v586 = vunpack.c.l.b16 %v579
      %v587 = vunpack.c.l.b16 %v580
      %v588 = vpack.c.b16 %v305, %v586
      %v589 = vpack.c.b16 %v587, %v587
      %vm590 = vcmask 1044480
      %v591 = vrot.slane %v588, 3
      %v592 = vrot.slane %v312, 3
      %v593 = vsel %vm590, %v591, %v592
      %v594 = vrot.slane %v313, 3
      %v595 = vsel %vm590, %v592, %v594
      %v596 = vrot.slane %v589, 3
      %v597 = vsel %vm590, %v594, %v596
      %v600 = vunpack.c.l.b16 %v582
      %v601 = vunpack.c.l.b16 %v583
      %v602 = vpack.c.b16 %v601, %v600
      %v605 = vsel %vm350, %v593, 0
      %v608 = vsel %vm350, %v595, 0
      %v611 = vsel %vm350, %v597, 0
      %613 = vmatprep.subr.bf16.mxu0 0
      %614 = vmatpush1.bf16.msra.mxu0 %v602
      %615 = vmatprep.subr.bf16.mxu0 0
      %616 = vmatpush1.bf16.msra.mxu0 0
      %617 = vmatprep.subr.bf16.mxu0 0
      %618 = vmatpush1.bf16.msra.mxu0 0
      %619 = vmatprep.subr.bf16.mxu0 0
      %620 = vmatpush1.bf16.msra.mxu0 0
      %621 = vmatprep.subr.bf16.mxu0 0
      %622 = vmatpush1.bf16.msra.mxu0 0
      %623 = vmatprep.subr.bf16.mxu0 0
      %624 = vmatpush1.bf16.msra.mxu0 0
      %625 = vmatprep.subr.bf16.mxu0 0
      %626 = vmatpush1.bf16.msra.mxu0 0
      %627 = vmatprep.subr.bf16.mxu0 0
      %628 = vmatpush1.bf16.msra.mxu0 0
      %629 = vmatprep.subr.bf16.mxu0 0
      %630 = vmatpush1.bf16.msra.mxu0 0
      %631 = vmatprep.subr.bf16.mxu0 0
      %632 = vmatpush1.bf16.msra.mxu0 0
      %633 = vmatprep.subr.bf16.mxu0 0
      %634 = vmatpush1.bf16.msra.mxu0 0
      %635 = vmatprep.subr.bf16.mxu0 0
      %636 = vmatpush1.bf16.msra.mxu0 0
      %637 = vmatprep.subr.bf16.mxu0 0
      %638 = vmatpush1.bf16.msra.mxu0 0
      %639 = vmatprep.subr.bf16.mxu0 0
      %640 = vmatpush1.bf16.msra.mxu0 0
      %641 = vmatprep.subr.bf16.mxu0 0
      %642 = vmatpush1.bf16.msra.mxu0 0
      %643 = vmatprep.subr.bf16.mxu0 0
      %644 = vmatpush1.bf16.msra.mxu0 0
      %645 = vmatprep.mubr.bf16.mxu0 0
      %646 = vmatmul.mubr.bf16.gmra.mrb[0].mxu0 %v605
      %v647 = vpop.f32.mrb[0].mxu0
      %v648 = vadd.f32 0.0, %v647
      %v649 = vpop.f32.mrb[0].mxu0
      %v650 = vpop.f32.mrb[0].mxu0
      %v651 = vadd.f32 0.0, %v650
      %v652 = vpop.f32.mrb[0].mxu0
      %653 = vmatprep.mubr.bf16.mxu0 0
      %654 = vmatmul.mubr.bf16.gmra.mrb[0].mxu0 %v608
      %v655 = vpop.f32.mrb[0].mxu0
      %v656 = vadd.f32 0.0, %v655
      %v657 = vpop.f32.mrb[0].mxu0
      %v658 = vpop.f32.mrb[0].mxu0
      %v659 = vadd.f32 0.0, %v658
      %v660 = vpop.f32.mrb[0].mxu0
      %661 = vmatprep.mubr.bf16.mxu0 0
      %662 = vmatmul.mubr.bf16.gmra.mrb[0].mxu0 %v611
      %v663 = vpop.f32.mrb[0].mxu0
      %v664 = vadd.f32 0.0, %v663
      %v665 = vpop.f32.mrb[0].mxu0
      %v666 = vpop.f32.mrb[0].mxu0
      %v667 = vadd.f32 0.0, %v666
      %v668 = vpop.f32.mrb[0].mxu0
      %669 = vdwg.mxu0
      %v670 = vadd.f32 %v573, %v648
      %v671 = vadd.f32 %v574, %v651
      %v672 = vadd.f32 %v575, %v656
      %v673 = vadd.f32 %v576, %v659
      %v674 = vadd.f32 %v577, %v664
      %v675 = vadd.f32 %v578, %v667
      %v676 = vld [vmem:[#allocation2 + $0x18] sm:$0xf]
      %s677 = scalar_lea.vmem %s1, 32
      %v678 = vld [vmem:[%s677] sm:$0xf]
      %v679 = vld [vmem:[%s677 + $0x4] sm:$0xf]
      %v681 = vunpack.c.l.b16 %v676
      %v682 = vpack.c.b16 %v681, %v681
      %vm683 = vsmask.f32 4352
      %v685 = vshrl.u32 %v588, 16
      %v687 = vrot.slane %v685, 3
      %v688 = vshll.u32 %v588, 16
      %v690 = vrot.slane %v688, 4
      %v691 = vor.u32 %v687, %v690
      %v692 = vrot.slane %v328, 3
      %v693 = vrot.slane %v324, 4
      %v694 = vor.u32 %v692, %v693
      %v695 = vsel %vm683, %v691, %v694
      %v696 = vrot.slane %v336, 3
      %v697 = vrot.slane %v332, 4
      %v698 = vor.u32 %v696, %v697
      %v699 = vsel %vm683, %v694, %v698
      %v701 = vshrl.u32 %v682, 16
      %v703 = vrot.slane %v701, 3
      %v704 = vshll.u32 %v682, 16
      %v706 = vrot.slane %v704, 4
      %v707 = vor.u32 %v703, %v706
      %v708 = vsel %vm683, %v698, %v707
      %v711 = vunpack.c.l.b16 %v678
      %v712 = vunpack.c.l.b16 %v679
      %v713 = vpack.c.b16 %v712, %v711
      %v716 = vsel %vm350, %v695, 0
      %v719 = vsel %vm350, %v699, 0
      %v722 = vsel %vm350, %v708, 0
      %724 = vmatprep.subr.bf16.mxu0 0
      %725 = vmatpush1.bf16.msra.mxu0 %v713
      %726 = vmatprep.subr.bf16.mxu0 0
      %727 = vmatpush1.bf16.msra.mxu0 0
      %728 = vmatprep.subr.bf16.mxu0 0
      %729 = vmatpush1.bf16.msra.mxu0 0
      %730 = vmatprep.subr.bf16.mxu0 0
      %731 = vmatpush1.bf16.msra.mxu0 0
      %732 = vmatprep.subr.bf16.mxu0 0
      %733 = vmatpush1.bf16.msra.mxu0 0
      %734 = vmatprep.subr.bf16.mxu0 0
      %735 = vmatpush1.bf16.msra.mxu0 0
      %736 = vmatprep.subr.bf16.mxu0 0
      %737 = vmatpush1.bf16.msra.mxu0 0
      %738 = vmatprep.subr.bf16.mxu0 0
      %739 = vmatpush1.bf16.msra.mxu0 0
      %740 = vmatprep.subr.bf16.mxu0 0
      %741 = vmatpush1.bf16.msra.mxu0 0
      %742 = vmatprep.subr.bf16.mxu0 0
      %743 = vmatpush1.bf16.msra.mxu0 0
      %744 = vmatprep.subr.bf16.mxu0 0
      %745 = vmatpush1.bf16.msra.mxu0 0
      %746 = vmatprep.subr.bf16.mxu0 0
      %747 = vmatpush1.bf16.msra.mxu0 0
      %748 = vmatprep.subr.bf16.mxu0 0
      %749 = vmatpush1.bf16.msra.mxu0 0
      %750 = vmatprep.subr.bf16.mxu0 0
      %751 = vmatpush1.bf16.msra.mxu0 0
      %752 = vmatprep.subr.bf16.mxu0 0
      %753 = vmatpush1.bf16.msra.mxu0 0
      %754 = vmatprep.subr.bf16.mxu0 0
      %755 = vmatpush1.bf16.msra.mxu0 0
      %756 = vmatprep.mubr.bf16.mxu0 0
      %757 = vmatmul.mubr.bf16.gmra.mrb[0].mxu0 %v716
      %v758 = vpop.f32.mrb[0].mxu0
      %v759 = vadd.f32 0.0, %v758
      %v760 = vpop.f32.mrb[0].mxu0
      %v761 = vpop.f32.mrb[0].mxu0
      %v762 = vadd.f32 0.0, %v761
      %v763 = vpop.f32.mrb[0].mxu0
      %764 = vmatprep.mubr.bf16.mxu0 0
      %765 = vmatmul.mubr.bf16.gmra.mrb[0].mxu0 %v719
      %v766 = vpop.f32.mrb[0].mxu0
      %v767 = vadd.f32 0.0, %v766
      %v768 = vpop.f32.mrb[0].mxu0
      %v769 = vpop.f32.mrb[0].mxu0
      %v770 = vadd.f32 0.0, %v769
      %v771 = vpop.f32.mrb[0].mxu0
      %772 = vmatprep.mubr.bf16.mxu0 0
      %773 = vmatmul.mubr.bf16.gmra.mrb[0].mxu0 %v722
      %v774 = vpop.f32.mrb[0].mxu0
      %v775 = vadd.f32 0.0, %v774
      %v776 = vpop.f32.mrb[0].mxu0
      %v777 = vpop.f32.mrb[0].mxu0
      %v778 = vadd.f32 0.0, %v777
      %v779 = vpop.f32.mrb[0].mxu0
      %780 = vdwg.mxu0
      %v781 = vadd.f32 %v670, %v759
      %v782 = vadd.f32 %v671, %v762
      %v783 = vadd.f32 %v672, %v767
      %v784 = vadd.f32 %v673, %v770
      %v785 = vadd.f32 %v674, %v775
      %v786 = vadd.f32 %v675, %v778
      %s787 = scalar_lea.vmem %s1, 40
      %v788 = vld [vmem:[%s787] sm:$0xf]
      %v789 = vld [vmem:[%s787 + $0x4] sm:$0xf]
      %v790 = vpack.c.b16 %v306, %v305
      %v791 = vpack.c.b16 %v308, %v307
      %v792 = vpack.c.b16 %v681, %v309
      %v795 = vunpack.c.l.b16 %v788
      %v796 = vunpack.c.l.b16 %v789
      %v797 = vpack.c.b16 %v796, %v795
      %v800 = vsel %vm350, %v790, 0
      %v803 = vsel %vm350, %v791, 0
      %v806 = vsel %vm350, %v792, 0
      %808 = vmatprep.subr.bf16.mxu0 0
      %809 = vmatpush1.bf16.msra.mxu0 %v797
      %810 = vmatprep.subr.bf16.mxu0 0
      %811 = vmatpush1.bf16.msra.mxu0 0
      %812 = vmatprep.subr.bf16.mxu0 0
      %813 = vmatpush1.bf16.msra.mxu0 0
      %814 = vmatprep.subr.bf16.mxu0 0
      %815 = vmatpush1.bf16.msra.mxu0 0
      %816 = vmatprep.subr.bf16.mxu0 0
      %817 = vmatpush1.bf16.msra.mxu0 0
      %818 = vmatprep.subr.bf16.mxu0 0
      %819 = vmatpush1.bf16.msra.mxu0 0
      %820 = vmatprep.subr.bf16.mxu0 0
      %821 = vmatpush1.bf16.msra.mxu0 0
      %822 = vmatprep.subr.bf16.mxu0 0
      %823 = vmatpush1.bf16.msra.mxu0 0
      %824 = vmatprep.subr.bf16.mxu0 0
      %825 = vmatpush1.bf16.msra.mxu0 0
      %826 = vmatprep.subr.bf16.mxu0 0
      %827 = vmatpush1.bf16.msra.mxu0 0
      %828 = vmatprep.subr.bf16.mxu0 0
      %829 = vmatpush1.bf16.msra.mxu0 0
      %830 = vmatprep.subr.bf16.mxu0 0
      %831 = vmatpush1.bf16.msra.mxu0 0
      %832 = vmatprep.subr.bf16.mxu0 0
      %833 = vmatpush1.bf16.msra.mxu0 0
      %834 = vmatprep.subr.bf16.mxu0 0
      %835 = vmatpush1.bf16.msra.mxu0 0
      %836 = vmatprep.subr.bf16.mxu0 0
      %837 = vmatpush1.bf16.msra.mxu0 0
      %838 = vmatprep.subr.bf16.mxu0 0
      %839 = vmatpush1.bf16.msra.mxu0 0
      %840 = vmatprep.mubr.bf16.mxu0 0
      %841 = vmatmul.mubr.bf16.gmra.mrb[0].mxu0 %v800
      %v842 = vpop.f32.mrb[0].mxu0
      %v843 = vadd.f32 0.0, %v842
      %v844 = vpop.f32.mrb[0].mxu0
      %v845 = vpop.f32.mrb[0].mxu0
      %v846 = vadd.f32 0.0, %v845
      %v847 = vpop.f32.mrb[0].mxu0
      %848 = vmatprep.mubr.bf16.mxu0 0
      %849 = vmatmul.mubr.bf16.gmra.mrb[0].mxu0 %v803
      %v850 = vpop.f32.mrb[0].mxu0
      %v851 = vadd.f32 0.0, %v850
      %v852 = vpop.f32.mrb[0].mxu0
      %v853 = vpop.f32.mrb[0].mxu0
      %v854 = vadd.f32 0.0, %v853
      %v855 = vpop.f32.mrb[0].mxu0
      %856 = vmatprep.mubr.bf16.mxu0 0
      %857 = vmatmul.mubr.bf16.gmra.mrb[0].mxu0 %v806
      %v858 = vpop.f32.mrb[0].mxu0
      %v859 = vadd.f32 0.0, %v858
      %v860 = vpop.f32.mrb[0].mxu0
      %v861 = vpop.f32.mrb[0].mxu0
      %v862 = vadd.f32 0.0, %v861
      %v863 = vpop.f32.mrb[0].mxu0
      %864 = vdwg.mxu0
      %v865 = vadd.f32 %v781, %v843
      %v866 = vadd.f32 %v782, %v846
      %v867 = vadd.f32 %v783, %v851
      %v868 = vadd.f32 %v784, %v854
      %v869 = vadd.f32 %v785, %v859
      %v870 = vadd.f32 %v786, %v862
      %v871 = vld [vmem:[#allocation2 + $0x4] sm:$0xc]
      %v872 = vld [vmem:[#allocation2 + $0x8] sm:$0xf]
      %v873 = vld [vmem:[#allocation2 + $0xc] sm:$0xf]
      %v874 = vld [vmem:[#allocation2 + $0x10] sm:$0xf]
      %v875 = vld [vmem:[#allocation2 + $0x14] sm:$0xf]
      %v876 = vld [vmem:[#allocation2 + $0x18] sm:$0xf]
      %v877 = vld [vmem:[#allocation2 + $0x1c] sm:$0x3]
      %s878 = scalar_lea.vmem %s1, 48
      %v879 = vld [vmem:[%s878] sm:$0xf]
      %v880 = vld [vmem:[%s878 + $0x4] sm:$0xf]
      %v888 = vunpack.c.l.b16 %v871
      %v889 = vunpack.c.l.b16 %v872
      %v890 = vunpack.c.l.b16 %v873
      %v891 = vunpack.c.l.b16 %v874
      %v892 = vunpack.c.l.b16 %v875
      %v893 = vunpack.c.l.b16 %v876
      %v894 = vunpack.c.l.b16 %v877
      %v895 = vpack.c.b16 %v889, %v888
      %v896 = vpack.c.b16 %v891, %v890
      %v897 = vpack.c.b16 %v893, %v892
      %v898 = vpack.c.b16 %v894, %v894
      %vm899 = vcmask 1045504
      %v900 = vrot.slane %v895, 2
      %v901 = vrot.slane %v896, 2
      %v902 = vsel %vm899, %v900, %v901
      %v903 = vrot.slane %v897, 2
      %v904 = vsel %vm899, %v901, %v903
      %v905 = vrot.slane %v898, 2
      %v906 = vsel %vm899, %v903, %v905
      %v909 = vunpack.c.l.b16 %v879
      %v910 = vunpack.c.l.b16 %v880
      %v911 = vpack.c.b16 %v910, %v909
      %v914 = vsel %vm350, %v902, 0
      %v917 = vsel %vm350, %v904, 0
      %v920 = vsel %vm350, %v906, 0
      %922 = vmatprep.subr.bf16.mxu0 0
      %923 = vmatpush1.bf16.msra.mxu0 %v911
      %924 = vmatprep.subr.bf16.mxu0 0
      %925 = vmatpush1.bf16.msra.mxu0 0
      %926 = vmatprep.subr.bf16.mxu0 0
      %927 = vmatpush1.bf16.msra.mxu0 0
      %928 = vmatprep.subr.bf16.mxu0 0
      %929 = vmatpush1.bf16.msra.mxu0 0
      %930 = vmatprep.subr.bf16.mxu0 0
      %931 = vmatpush1.bf16.msra.mxu0 0
      %932 = vmatprep.subr.bf16.mxu0 0
      %933 = vmatpush1.bf16.msra.mxu0 0
      %934 = vmatprep.subr.bf16.mxu0 0
      %935 = vmatpush1.bf16.msra.mxu0 0
      %936 = vmatprep.subr.bf16.mxu0 0
      %937 = vmatpush1.bf16.msra.mxu0 0
      %938 = vmatprep.subr.bf16.mxu0 0
      %939 = vmatpush1.bf16.msra.mxu0 0
      %940 = vmatprep.subr.bf16.mxu0 0
      %941 = vmatpush1.bf16.msra.mxu0 0
      %942 = vmatprep.subr.bf16.mxu0 0
      %943 = vmatpush1.bf16.msra.mxu0 0
      %944 = vmatprep.subr.bf16.mxu0 0
      %945 = vmatpush1.bf16.msra.mxu0 0
      %946 = vmatprep.subr.bf16.mxu0 0
      %947 = vmatpush1.bf16.msra.mxu0 0
      %948 = vmatprep.subr.bf16.mxu0 0
      %949 = vmatpush1.bf16.msra.mxu0 0
      %950 = vmatprep.subr.bf16.mxu0 0
      %951 = vmatpush1.bf16.msra.mxu0 0
      %952 = vmatprep.subr.bf16.mxu0 0
      %953 = vmatpush1.bf16.msra.mxu0 0
      %954 = vmatprep.mubr.bf16.mxu0 0
      %955 = vmatmul.mubr.bf16.gmra.mrb[0].mxu0 %v914
      %v956 = vpop.f32.mrb[0].mxu0
      %v957 = vadd.f32 0.0, %v956
      %v958 = vpop.f32.mrb[0].mxu0
      %v959 = vpop.f32.mrb[0].mxu0
      %v960 = vadd.f32 0.0, %v959
      %v961 = vpop.f32.mrb[0].mxu0
      %962 = vmatprep.mubr.bf16.mxu0 0
      %963 = vmatmul.mubr.bf16.gmra.mrb[0].mxu0 %v917
      %v964 = vpop.f32.mrb[0].mxu0
      %v965 = vadd.f32 0.0, %v964
      %v966 = vpop.f32.mrb[0].mxu0
      %v967 = vpop.f32.mrb[0].mxu0
      %v968 = vadd.f32 0.0, %v967
      %v969 = vpop.f32.mrb[0].mxu0
      %970 = vmatprep.mubr.bf16.mxu0 0
      %971 = vmatmul.mubr.bf16.gmra.mrb[0].mxu0 %v920
      %v972 = vpop.f32.mrb[0].mxu0
      %v973 = vadd.f32 0.0, %v972
      %v974 = vpop.f32.mrb[0].mxu0
      %v975 = vpop.f32.mrb[0].mxu0
      %v976 = vadd.f32 0.0, %v975
      %v977 = vpop.f32.mrb[0].mxu0
      %978 = vdwg.mxu0
      %v979 = vadd.f32 %v865, %v957
      %v980 = vadd.f32 %v866, %v960
      %v981 = vadd.f32 %v867, %v965
      %v982 = vadd.f32 %v868, %v968
      %v983 = vadd.f32 %v869, %v973
      %v984 = vadd.f32 %v870, %v976
      %v985 = vld [vmem:[#allocation2 + $0x1c] sm:$0x7]
      %s986 = scalar_lea.vmem %s1, 56
      %v987 = vld [vmem:[%s986] sm:$0xf]
      %v988 = vld [vmem:[%s986 + $0x4] sm:$0xf]
      %v990 = vunpack.c.l.b16 %v985
      %v991 = vpack.c.b16 %v990, %v990
      %vm992 = vsmask.f32 5376
      %v994 = vshrl.u32 %v895, 16
      %v996 = vrot.slane %v994, 2
      %v997 = vshll.u32 %v895, 16
      %v999 = vrot.slane %v997, 3
      %v1000 = vor.u32 %v996, %v999
      %v1002 = vshrl.u32 %v896, 16
      %v1004 = vrot.slane %v1002, 2
      %v1005 = vshll.u32 %v896, 16
      %v1007 = vrot.slane %v1005, 3
      %v1008 = vor.u32 %v1004, %v1007
      %v1009 = vsel %vm992, %v1000, %v1008
      %v1011 = vshrl.u32 %v897, 16
      %v1013 = vrot.slane %v1011, 2
      %v1014 = vshll.u32 %v897, 16
      %v1016 = vrot.slane %v1014, 3
      %v1017 = vor.u32 %v1013, %v1016
      %v1018 = vsel %vm992, %v1008, %v1017
      %v1020 = vshrl.u32 %v991, 16
      %v1022 = vrot.slane %v1020, 2
      %v1023 = vshll.u32 %v991, 16
      %v1025 = vrot.slane %v1023, 3
      %v1026 = vor.u32 %v1022, %v1025
      %v1027 = vsel %vm992, %v1017, %v1026
      %v1030 = vunpack.c.l.b16 %v987
      %v1031 = vunpack.c.l.b16 %v988
      %v1032 = vpack.c.b16 %v1031, %v1030
      %v1035 = vsel %vm350, %v1009, 0
      %v1038 = vsel %vm350, %v1018, 0
      %v1041 = vsel %vm350, %v1027, 0
      %1043 = vmatprep.subr.bf16.mxu0 0
      %1044 = vmatpush1.bf16.msra.mxu0 %v1032
      %1045 = vmatprep.subr.bf16.mxu0 0
      %1046 = vmatpush1.bf16.msra.mxu0 0
      %1047 = vmatprep.subr.bf16.mxu0 0
      %1048 = vmatpush1.bf16.msra.mxu0 0
      %1049 = vmatprep.subr.bf16.mxu0 0
      %1050 = vmatpush1.bf16.msra.mxu0 0
      %1051 = vmatprep.subr.bf16.mxu0 0
      %1052 = vmatpush1.bf16.msra.mxu0 0
      %1053 = vmatprep.subr.bf16.mxu0 0
      %1054 = vmatpush1.bf16.msra.mxu0 0
      %1055 = vmatprep.subr.bf16.mxu0 0
      %1056 = vmatpush1.bf16.msra.mxu0 0
      %1057 = vmatprep.subr.bf16.mxu0 0
      %1058 = vmatpush1.bf16.msra.mxu0 0
      %1059 = vmatprep.subr.bf16.mxu0 0
      %1060 = vmatpush1.bf16.msra.mxu0 0
      %1061 = vmatprep.subr.bf16.mxu0 0
      %1062 = vmatpush1.bf16.msra.mxu0 0
      %1063 = vmatprep.subr.bf16.mxu0 0
      %1064 = vmatpush1.bf16.msra.mxu0 0
      %1065 = vmatprep.subr.bf16.mxu0 0
      %1066 = vmatpush1.bf16.msra.mxu0 0
      %1067 = vmatprep.subr.bf16.mxu0 0
      %1068 = vmatpush1.bf16.msra.mxu0 0
      %1069 = vmatprep.subr.bf16.mxu0 0
      %1070 = vmatpush1.bf16.msra.mxu0 0
      %1071 = vmatprep.subr.bf16.mxu0 0
      %1072 = vmatpush1.bf16.msra.mxu0 0
      %1073 = vmatprep.subr.bf16.mxu0 0
      %1074 = vmatpush1.bf16.msra.mxu0 0
      %1075 = vmatprep.mubr.bf16.mxu0 0
      %1076 = vmatmul.mubr.bf16.gmra.mrb[0].mxu0 %v1035
      %v1077 = vpop.f32.mrb[0].mxu0
      %v1078 = vadd.f32 0.0, %v1077
      %v1079 = vpop.f32.mrb[0].mxu0
      %v1080 = vpop.f32.mrb[0].mxu0
      %v1081 = vadd.f32 0.0, %v1080
      %v1082 = vpop.f32.mrb[0].mxu0
      %1083 = vmatprep.mubr.bf16.mxu0 0
      %1084 = vmatmul.mubr.bf16.gmra.mrb[0].mxu0 %v1038
      %v1085 = vpop.f32.mrb[0].mxu0
      %v1086 = vadd.f32 0.0, %v1085
      %v1087 = vpop.f32.mrb[0].mxu0
      %v1088 = vpop.f32.mrb[0].mxu0
      %v1089 = vadd.f32 0.0, %v1088
      %v1090 = vpop.f32.mrb[0].mxu0
      %1091 = vmatprep.mubr.bf16.mxu0 0
      %1092 = vmatmul.mubr.bf16.gmra.mrb[0].mxu0 %v1041
      %v1093 = vpop.f32.mrb[0].mxu0
      %v1094 = vadd.f32 0.0, %v1093
      %v1095 = vpop.f32.mrb[0].mxu0
      %v1096 = vpop.f32.mrb[0].mxu0
      %v1097 = vadd.f32 0.0, %v1096
      %v1098 = vpop.f32.mrb[0].mxu0
      %1099 = vdwg.mxu0
      %v1100 = vadd.f32 %v979, %v1078
      %v1101 = vadd.f32 %v980, %v1081
      %v1102 = vadd.f32 %v981, %v1086
      %v1103 = vadd.f32 %v982, %v1089
      %v1104 = vadd.f32 %v983, %v1094
      %v1105 = vadd.f32 %v984, %v1097
      %v1106 = vld [vmem:[#allocation2 + $0x4] sm:$0x8]
      %s1107 = scalar_lea.vmem %s1, 64
      %v1108 = vld [vmem:[%s1107] sm:$0xf]
      %v1109 = vld [vmem:[%s1107 + $0x4] sm:$0xf]
      %v1111 = vunpack.c.l.b16 %v1106
      %v1112 = vpack.c.b16 %v889, %v1111
      %v1113 = vrot.slane %v1112, 3
      %v1114 = vrot.slane %v896, 3
      %v1115 = vsel %vm590, %v1113, %v1114
      %v1116 = vrot.slane %v897, 3
      %v1117 = vsel %vm590, %v1114, %v1116
      %v1118 = vrot.slane %v991, 3
      %v1119 = vsel %vm590, %v1116, %v1118
      %v1122 = vunpack.c.l.b16 %v1108
      %v1123 = vunpack.c.l.b16 %v1109
      %v1124 = vpack.c.b16 %v1123, %v1122
      %v1127 = vsel %vm350, %v1115, 0
      %v1130 = vsel %vm350, %v1117, 0
      %v1133 = vsel %vm350, %v1119, 0
      %1135 = vmatprep.subr.bf16.mxu0 0
      %1136 = vmatpush1.bf16.msra.mxu0 %v1124
      %1137 = vmatprep.subr.bf16.mxu0 0
      %1138 = vmatpush1.bf16.msra.mxu0 0
      %1139 = vmatprep.subr.bf16.mxu0 0
      %1140 = vmatpush1.bf16.msra.mxu0 0
      %1141 = vmatprep.subr.bf16.mxu0 0
      %1142 = vmatpush1.bf16.msra.mxu0 0
      %1143 = vmatprep.subr.bf16.mxu0 0
      %1144 = vmatpush1.bf16.msra.mxu0 0
      %1145 = vmatprep.subr.bf16.mxu0 0
      %1146 = vmatpush1.bf16.msra.mxu0 0
      %1147 = vmatprep.subr.bf16.mxu0 0
      %1148 = vmatpush1.bf16.msra.mxu0 0
      %1149 = vmatprep.subr.bf16.mxu0 0
      %1150 = vmatpush1.bf16.msra.mxu0 0
      %1151 = vmatprep.subr.bf16.mxu0 0
      %1152 = vmatpush1.bf16.msra.mxu0 0
      %1153 = vmatprep.subr.bf16.mxu0 0
      %1154 = vmatpush1.bf16.msra.mxu0 0
      %1155 = vmatprep.subr.bf16.mxu0 0
      %1156 = vmatpush1.bf16.msra.mxu0 0
      %1157 = vmatprep.subr.bf16.mxu0 0
      %1158 = vmatpush1.bf16.msra.mxu0 0
      %1159 = vmatprep.subr.bf16.mxu0 0
      %1160 = vmatpush1.bf16.msra.mxu0 0
      %1161 = vmatprep.subr.bf16.mxu0 0
      %1162 = vmatpush1.bf16.msra.mxu0 0
      %1163 = vmatprep.subr.bf16.mxu0 0
      %1164 = vmatpush1.bf16.msra.mxu0 0
      %1165 = vmatprep.subr.bf16.mxu0 0
      %1166 = vmatpush1.bf16.msra.mxu0 0
      %1167 = vmatprep.mubr.bf16.mxu0 0
      %1168 = vmatmul.mubr.bf16.gmra.mrb[0].mxu0 %v1127
      %v1169 = vpop.f32.mrb[0].mxu0
      %v1170 = vadd.f32 0.0, %v1169
      %v1171 = vpop.f32.mrb[0].mxu0
      %v1172 = vpop.f32.mrb[0].mxu0
      %v1173 = vadd.f32 0.0, %v1172
      %v1174 = vpop.f32.mrb[0].mxu0
      %1175 = vmatprep.mubr.bf16.mxu0 0
      %1176 = vmatmul.mubr.bf16.gmra.mrb[0].mxu0 %v1130
      %v1177 = vpop.f32.mrb[0].mxu0
      %v1178 = vadd.f32 0.0, %v1177
      %v1179 = vpop.f32.mrb[0].mxu0
      %v1180 = vpop.f32.mrb[0].mxu0
      %v1181 = vadd.f32 0.0, %v1180
      %v1182 = vpop.f32.mrb[0].mxu0
      %1183 = vmatprep.mubr.bf16.mxu0 0
      %1184 = vmatmul.mubr.bf16.gmra.mrb[0].mxu0 %v1133
      %v1185 = vpop.f32.mrb[0].mxu0
      %v1186 = vadd.f32 0.0, %v1185
      %v1187 = vpop.f32.mrb[0].mxu0
      %v1188 = vpop.f32.mrb[0].mxu0
      %v1189 = vadd.f32 0.0, %v1188
      %v1190 = vpop.f32.mrb[0].mxu0
      %1191 = vdwg.mxu0
      %v1192 = vadd.f32 %v1100, %v1170
      %v1193 = vadd.f32 %v1101, %v1173
      %v1194 = vadd.f32 %v1102, %v1178
      %v1195 = vadd.f32 %v1103, %v1181
      %v1196 = vadd.f32 %v1104, %v1186
      %v1197 = vadd.f32 %v1105, %v1189
      %v1198 = vld [vmem:[%s2] sm:$0x1]
      %v1200 = vlaneseq
      %v1201 = vshrl.u32 %v1200, 7
      %v1202 = vsub.s32 0, %v1201
      %v1203 = vrot.slane %v1198, %v1202
      %v1205 = vadd.f32 %v1192, %v1203
      %v1206 = vadd.f32 %v1193, %v1203
      %v1207 = vadd.f32 %v1194, %v1203
      %v1208 = vadd.f32 %v1195, %v1203
      %v1209 = vadd.f32 %v1196, %v1203
      %v1210 = vadd.f32 %v1197, %v1203
      %v1211 = vmax.f32 %v1205, 0.0
      %v1212 = vmax.f32 %v1206, 0.0
      %v1213 = vmax.f32 %v1207, 0.0
      %v1214 = vmax.f32 %v1208, 0.0
      %v1215 = vmax.f32 %v1209, 0.0
      %v1216 = vmax.f32 %v1210, 0.0
      %v1217 = vpack.c.bf16 %v1212, %v1211
      %v1218 = vpack.c.bf16 %v1214, %v1213
      %v1219 = vpack.c.bf16 %v1216, %v1215
      %v1223 = vunpack.c.l.b16 %v1217
      %v1224 = vunpack.c.h.b16 %v1217
      %v1225 = vunpack.c.l.b16 %v1218
      %v1226 = vunpack.c.h.b16 %v1218
      %v1227 = vunpack.c.l.b16 %v1219
      %v1228 = vunpack.c.h.b16 %v1219
      %v1229 = vpack.c.b16 %v1223, %v1223
      %v1230 = vpack.c.b16 %v1224, %v1224
      %v1231 = vpack.c.b16 %v1225, %v1225
      %v1232 = vpack.c.b16 %v1226, %v1226
      %v1233 = vpack.c.b16 %v1227, %v1227
      %v1234 = vpack.c.b16 %v1228, %v1228
      %1241 = vst [vmem:[%s208] sm:$0xf] %v1229
      %1242 = vst [vmem:[%s208 + $0x4] sm:$0xf] %v1230
      %1243 = vst [vmem:[%s208 + $0x8] sm:$0xf] %v1231
      %1244 = vst [vmem:[%s208 + $0xc] sm:$0xf] %v1232
      %1245 = vst [vmem:[%s208 + $0x10] sm:$0xf] %v1233
      %1246 = vst [vmem:[%s208 + $0x14] sm:$0xf] %v1234
      %s1247 = smul.u32 6, %s19
      %p1248 = scmp.lt.s32.totalorder %s18, 1
      %s1249 = scalar_select %p1248, %s18, 1
      %p1250 = scmp.lt.s32.totalorder %s1247, 5
      %s1251 = scalar_select %p1250, %s1247, 5
      %s1252 = smul.addr %s1249, 6
      %s1253 = sadd.s32 %s1251, %s1252
      %s1254 = smul.addr %s1253, 4
      %s1255 = scalar_lea.vmem %s3, %s1254
      // Predicated region
      $region37: #{fwd.7} parent=31 // pred_check
        %p1256 = pneg %p116
      $region38: #{fwd.7} parent=31 // pred_check_branch
        %1258 = sbr.rel (%p1256) target = $region40
      $region39: #{fwd.7} parent=31 // pred_region
        %s1259 = smul.u32 6, %s19
      $region40: #{fwd.7} parent=31 // pred_fallthru
        _
    $region32: #{fwd.7} parent=5 // pred_fallthru
      _
    %p1260 = scmp.le.s32.totalorder 2, %s9
    // Predicated region
    $region41: #{fwd.7} parent=5 // pred_check
      %p1261 = pneg %p1260
    $region42: #{fwd.7} parent=5 // pred_check_branch
      %1263 = sbr.rel (%p1261) target = $region44
    $region43: #{fwd.7} parent=5 // pred_region
      %s1264 = ssub.s32 %s9, 2
      // Predicated region
      $region45: #{fwd.7} parent=43 // pred_check
        %p1265 = pneg %p122
      $region46: #{fwd.7} parent=43 // pred_check_branch
        %1267 = sbr.rel (%p1265) target = $region48
      $region47: #{fwd.7} parent=43 // pred_region
        %s1268 = smul.u32 6, %s21
        %p1269 = scmp.lt.s32.totalorder %s20, 1
        %s1270 = scalar_select %p1269, %s20, 1
        %p1271 = scmp.lt.s32.totalorder %s1268, 5
        %s1272 = scalar_select %p1271, %s1268, 5
        %s1273 = smul.addr %s1270, 6
        %s1274 = sadd.s32 %s1272, %s1273
        %s1275 = smul.addr %s1274, 4
        %s1276 = scalar_lea.vmem %s3, %s1275
      $region48: #{fwd.7} parent=43 // pred_fallthru
        _
    $region44: #{fwd.7} parent=5 // pred_fallthru
      _
  $region6: #{fwd.7} parent=0 // loop_footer
    %s13 = sadd.s32 1, %s9
  $region7: #{fwd.7} parent=0 // loop_footer_branch
    %8 = sbr.rel target = $region3
  $region8: #{fwd.7} parent=0 // loop_exit
    _

</llo_original>
